<compile_context>
chip_gen: v5e
topology: v5e:2x2
jax: 0.10.0
libtpu: 0.0.40
codegen_flags: <defaults>
</compile_context>

<pallas_src>
import functools

import jax
import jax.numpy as jnp
from jax.experimental import pallas as pl
from jax.experimental.pallas import tpu as pltpu


def _lga_kernel(x_ref, wq_ref, wk_ref, wv_ref, bq_ref, bk_ref, bv_ref,
                wproj_ref, bproj_ref, o_ref, attn_buf,
                *, num_heads, head_dim, gb, s):
    """Gb windows of locally-grouped attention.

    x_ref:     (Gb, S, C)  window tokens
    wq/wk/wv:  (C, C)      q/k/v weights (scale pre-folded into wq)
    bq/bk/bv:  (1, C)      q/k/v biases (scale pre-folded into bq)
    wproj:     (C, C)      output projection weight
    bproj:     (1, C)      output projection bias
    o_ref:     (Gb, S, C)  projected window output
    attn_buf:  (Gb*S, C)   VMEM scratch holding per-head attention outputs
    """
    C = num_heads * head_dim
    R = gb * s
    in_dt = x_ref.dtype

    x = x_ref[...].reshape(R, C)                                    # (R, C)

    # q/k/v projections: full-width MXU matmuls, f32 accumulation.
    q = jnp.dot(x, wq_ref[...], preferred_element_type=jnp.float32) + bq_ref[...]
    k = jnp.dot(x, wk_ref[...], preferred_element_type=jnp.float32) + bk_ref[...]
    v = jnp.dot(x, wv_ref[...], preferred_element_type=jnp.float32) + bv_ref[...]

    # Per-head attention, batched over the Gb windows (single leading batch dim).
    for h in range(num_heads):
        lo = h * head_dim
        qh = q[:, lo:lo + head_dim].astype(in_dt).reshape(gb, s, head_dim)
        kh = k[:, lo:lo + head_dim].astype(in_dt).reshape(gb, s, head_dim)
        vh = v[:, lo:lo + head_dim].astype(in_dt).reshape(gb, s, head_dim)

        att = jnp.einsum('gqd,gkd->gqk', qh, kh,
                         preferred_element_type=jnp.float32)        # (Gb, S, S)
        att = att - jnp.max(att, axis=-1, keepdims=True)
        p = jnp.exp(att)
        inv = pl.reciprocal(jnp.sum(p, axis=-1, keepdims=True), approx=True)
        p = p * inv                                                  # softmax

        oh = jnp.einsum('gqk,gkd->gqd', p.astype(in_dt), vh,
                        preferred_element_type=jnp.float32)          # (Gb, S, D)
        # Scatter head output into its lane slice of the shared buffer
        # (replaces the old lane-axis concatenate).
        attn_buf[:, lo:lo + head_dim] = oh.reshape(R, head_dim).astype(in_dt)

    # Output projection: one full-width MXU matmul over all Gb*S tokens.
    y = jnp.dot(attn_buf[...], wproj_ref[...],
                preferred_element_type=jnp.float32) + bproj_ref[...]
    o_ref[...] = y.reshape(gb, s, C).astype(o_ref.dtype)


def locally_grouped_attn(x, size, params, *, num_heads, ws, window_batch=32):
    """x: (B, N, C) tokens, size = (H, W) with N == H*W."""
    B, N, C = x.shape
    H, W = size
    assert N == H * W and C % num_heads == 0 and ws != 1
    head_dim = C // num_heads
    scale = head_dim ** (-0.5)

    wqkv, bqkv, wproj, bproj = params

    # ---- parameter prep: split qkv weight, fold attention scale into q ----
    wq = wqkv[:, 0 * C:1 * C] * scale
    wk = wqkv[:, 1 * C:2 * C]
    wv = wqkv[:, 2 * C:3 * C]
    bq = bqkv[:, 0 * C:1 * C] * scale
    bk = bqkv[:, 1 * C:2 * C]
    bv = bqkv[:, 2 * C:3 * C]

    # ---- JAX glue: pad + rearrange tokens into windows (G, S, C) ----
    xh = x.reshape(B, H, W, C)
    pad_r = (ws - W % ws) % ws
    pad_b = (ws - H % ws) % ws
    if pad_r > 0 or pad_b > 0:
        xh = jnp.pad(xh, ((0, 0), (0, pad_b), (0, pad_r), (0, 0)))
    Hp, Wp = H + pad_b, W + pad_r
    _h, _w = Hp // ws, Wp // ws
    S = ws * ws
    G = B * _h * _w
    xw = (xh.reshape(B, _h, ws, _w, ws, C)
            .transpose(0, 1, 3, 2, 4, 5)
            .reshape(G, S, C))

    # Gb windows per grid step (amortize per-step overhead, feed the MXU).
    # NOTE: for large realistic configs (e.g. C=512, ws=7) size Gb against the
    # VMEM budget (v7x has 64 MiB total vs 128 MiB on v5e/v6e).
    gb = max(1, min(window_batch, G))
    Gpad = -(-G // gb) * gb
    if Gpad != G:
        xw = jnp.pad(xw, ((0, Gpad - G), (0, 0), (0, 0)))

    # ---- Pallas kernel: per-window-batch qkv + attention + proj ----
    kernel = functools.partial(_lga_kernel, num_heads=num_heads,
                               head_dim=head_dim, gb=gb, s=S)
    out_w = pl.pallas_call(
        kernel,
        out_shape=jax.ShapeDtypeStruct((Gpad, S, C), x.dtype),
        grid=(Gpad // gb,),
        in_specs=[
            pl.BlockSpec((gb, S, C), lambda g: (g, 0, 0)),
            pl.BlockSpec((C, C), lambda g: (0, 0)),
            pl.BlockSpec((C, C), lambda g: (0, 0)),
            pl.BlockSpec((C, C), lambda g: (0, 0)),
            pl.BlockSpec((1, C), lambda g: (0, 0)),
            pl.BlockSpec((1, C), lambda g: (0, 0)),
            pl.BlockSpec((1, C), lambda g: (0, 0)),
            pl.BlockSpec((C, C), lambda g: (0, 0)),
            pl.BlockSpec((1, C), lambda g: (0, 0)),
        ],
        out_specs=pl.BlockSpec((gb, S, C), lambda g: (g, 0, 0)),
        scratch_shapes=[pltpu.VMEM((gb * S, C), x.dtype)],
        compiler_params=pltpu.CompilerParams(
            dimension_semantics=("parallel",)),
    )(xw, wq, wk, wv, bq, bk, bv, wproj, bproj)

    # ---- JAX glue: windows back to (B, N, C), crop padding ----
    out = (out_w[:G].reshape(B, _h, _w, ws, ws, C)
                    .transpose(0, 1, 3, 2, 4, 5)
                    .reshape(B, Hp, Wp, C))
    out = out[:, :H, :W, :].reshape(B, N, C)
    return out


def _reference(x, size, params, *, num_heads, ws):
    """Pure-JAX mirror of the PyTorch forward (for correctness check)."""
    B, N, C = x.shape
    H, W = size
    head_dim = C // num_heads
    scale = head_dim ** (-0.5)
    wqkv, bqkv, wproj, bproj = params

    xh = x.reshape(B, H, W, C)
    pad_r = (ws - W % ws) % ws
    pad_b = (ws - H % ws) % ws
    xh = jnp.pad(xh, ((0, 0), (0, pad_b), (0, pad_r), (0, 0)))
    Hp, Wp = H + pad_b, W + pad_r
    _h, _w = Hp // ws, Wp // ws
    xw = (xh.reshape(B, _h, ws, _w, ws, C)
            .transpose(0, 1, 3, 2, 4, 5))                        # (B,_h,_w,ws,ws,C)
    qkv = xw @ wqkv + bqkv[0]
    qkv = qkv.reshape(B, _h * _w, ws * ws, 3, num_heads, head_dim)
    qkv = qkv.transpose(3, 0, 1, 4, 2, 5)                        # (3,B,G',h,S,D)
    q, k, v = qkv[0], qkv[1], qkv[2]
    attn = jnp.einsum('bghqd,bghkd->bghqk', q, k) * scale
    attn = jax.nn.softmax(attn, axis=-1)
    o = jnp.einsum('bghqk,bghkd->bghqd', attn, v)
    o = o.transpose(0, 1, 3, 2, 4).reshape(B, _h, _w, ws, ws, C)
    o = o.transpose(0, 1, 3, 2, 4, 5).reshape(B, Hp, Wp, C)
    o = o[:, :H, :W, :].reshape(B, N, C)
    return o @ wproj + bproj[0]


if __name__ == "__main__":
    B, H, W = 2, 8, 8
    C, num_heads, ws = 32, 4, 4
    N = H * W

    key = jax.random.PRNGKey(0)
    kx, kw1, kb1, kw2, kb2 = jax.random.split(key, 5)
    x = jax.random.normal(kx, (B, N, C), jnp.float32)
    wqkv = 0.05 * jax.random.normal(kw1, (C, 3 * C), jnp.float32)
    bqkv = 0.05 * jax.random.normal(kb1, (1, 3 * C), jnp.float32)
    wproj = 0.05 * jax.random.normal(kw2, (C, C), jnp.float32)
    bproj = 0.05 * jax.random.normal(kb2, (1, C), jnp.float32)
    params = (wqkv, bqkv, wproj, bproj)

    out = locally_grouped_attn(x, (H, W), params, num_heads=num_heads, ws=ws)
    out = jax.block_until_ready(out)

    ref = _reference(x, (H, W), params, num_heads=num_heads, ws=ws)
    assert out.shape == (B, N, C)
    # tolerance accounts for approx EUP reciprocal in the in-kernel softmax
    assert jnp.allclose(out, ref, atol=2e-3, rtol=2e-3), "mismatch vs reference"
    print("KERNEL_OK")
</pallas_src>

<mosaic_0001>
module attributes {stable_mosaic.version = 11 : i64} {
  func.func @_lga_kernel(%arg0: i32, %arg1: memref<8x16x32xf32, #tpu.memory_space<vmem>>, %arg2: memref<32x32xf32, #tpu.memory_space<vmem>>, %arg3: memref<32x32xf32, #tpu.memory_space<vmem>>, %arg4: memref<32x32xf32, #tpu.memory_space<vmem>>, %arg5: memref<1x32xf32, #tpu.memory_space<vmem>>, %arg6: memref<1x32xf32, #tpu.memory_space<vmem>>, %arg7: memref<1x32xf32, #tpu.memory_space<vmem>>, %arg8: memref<32x32xf32, #tpu.memory_space<vmem>>, %arg9: memref<1x32xf32, #tpu.memory_space<vmem>>, %arg10: memref<8x16x32xf32, #tpu.memory_space<vmem>>, %arg11: memref<128x32xf32, #tpu.memory_space<vmem>>) attributes {dimension_semantics = [#tpu.dimension_semantics<parallel>], iteration_bounds = array<i64: 1>, scalar_prefetch = 0 : i64, scratch_operands = 1 : i64, tpu.core_type = #tpu.core_type<tc>, window_params = [{transform_indices = @transform_0, window_bounds = array<i64: 8, 16, 32>}, {pipeline_mode = #tpu.pipeline_mode<synchronous>, transform_indices = @transform_1, window_bounds = array<i64: 32, 32>}, {pipeline_mode = #tpu.pipeline_mode<synchronous>, transform_indices = @transform_2, window_bounds = array<i64: 32, 32>}, {pipeline_mode = #tpu.pipeline_mode<synchronous>, transform_indices = @transform_3, window_bounds = array<i64: 32, 32>}, {pipeline_mode = #tpu.pipeline_mode<synchronous>, transform_indices = @transform_4, window_bounds = array<i64: 1, 32>}, {pipeline_mode = #tpu.pipeline_mode<synchronous>, transform_indices = @transform_5, window_bounds = array<i64: 1, 32>}, {pipeline_mode = #tpu.pipeline_mode<synchronous>, transform_indices = @transform_6, window_bounds = array<i64: 1, 32>}, {pipeline_mode = #tpu.pipeline_mode<synchronous>, transform_indices = @transform_7, window_bounds = array<i64: 32, 32>}, {pipeline_mode = #tpu.pipeline_mode<synchronous>, transform_indices = @transform_8, window_bounds = array<i64: 1, 32>}, {transform_indices = @transform_9, window_bounds = array<i64: 8, 16, 32>}]} {
    %c0 = arith.constant 0 : index
    %c0_0 = arith.constant 0 : index
    %c0_1 = arith.constant 0 : index
    %0 = vector.load %arg1[%c0, %c0_0, %c0_1] : memref<8x16x32xf32, #tpu.memory_space<vmem>>, vector<8x16x32xf32>
    %1 = vector.shape_cast %0 : vector<8x16x32xf32> to vector<128x32xf32>
    %c0_2 = arith.constant 0 : index
    %c0_3 = arith.constant 0 : index
    %2 = vector.load %arg2[%c0_2, %c0_3] : memref<32x32xf32, #tpu.memory_space<vmem>>, vector<32x32xf32>
    %cst = arith.constant dense<0.000000e+00> : vector<128x32xf32>
    %3 = tpu.matmul %1, %2, %cst {dimension_numbers = #tpu.dot_dimension_numbers<[1], [0], [0], [1], [0, 0, 1, 1], [], []>} : vector<128x32xf32>, vector<32x32xf32>, vector<128x32xf32> -> vector<128x32xf32>
    %c0_4 = arith.constant 0 : index
    %c0_5 = arith.constant 0 : index
    %4 = vector.load %arg5[%c0_4, %c0_5] : memref<1x32xf32, #tpu.memory_space<vmem>>, vector<1x32xf32>
    %5 = vector.broadcast %4 : vector<1x32xf32> to vector<128x32xf32>
    %6 = arith.addf %3, %5 : vector<128x32xf32>
    %c0_6 = arith.constant 0 : index
    %c0_7 = arith.constant 0 : index
    %7 = vector.load %arg3[%c0_6, %c0_7] : memref<32x32xf32, #tpu.memory_space<vmem>>, vector<32x32xf32>
    %cst_8 = arith.constant dense<0.000000e+00> : vector<128x32xf32>
    %8 = tpu.matmul %1, %7, %cst_8 {dimension_numbers = #tpu.dot_dimension_numbers<[1], [0], [0], [1], [0, 0, 1, 1], [], []>} : vector<128x32xf32>, vector<32x32xf32>, vector<128x32xf32> -> vector<128x32xf32>
    %c0_9 = arith.constant 0 : index
    %c0_10 = arith.constant 0 : index
    %9 = vector.load %arg6[%c0_9, %c0_10] : memref<1x32xf32, #tpu.memory_space<vmem>>, vector<1x32xf32>
    %10 = vector.broadcast %9 : vector<1x32xf32> to vector<128x32xf32>
    %11 = arith.addf %8, %10 : vector<128x32xf32>
    %c0_11 = arith.constant 0 : index
    %c0_12 = arith.constant 0 : index
    %12 = vector.load %arg4[%c0_11, %c0_12] : memref<32x32xf32, #tpu.memory_space<vmem>>, vector<32x32xf32>
    %cst_13 = arith.constant dense<0.000000e+00> : vector<128x32xf32>
    %13 = tpu.matmul %1, %12, %cst_13 {dimension_numbers = #tpu.dot_dimension_numbers<[1], [0], [0], [1], [0, 0, 1, 1], [], []>} : vector<128x32xf32>, vector<32x32xf32>, vector<128x32xf32> -> vector<128x32xf32>
    %c0_14 = arith.constant 0 : index
    %c0_15 = arith.constant 0 : index
    %14 = vector.load %arg7[%c0_14, %c0_15] : memref<1x32xf32, #tpu.memory_space<vmem>>, vector<1x32xf32>
    %15 = vector.broadcast %14 : vector<1x32xf32> to vector<128x32xf32>
    %16 = arith.addf %13, %15 : vector<128x32xf32>
    %17 = vector.extract_strided_slice %6 {offsets = [0, 0], sizes = [128, 8], strides = [1, 1]} : vector<128x32xf32> to vector<128x8xf32>
    %18 = vector.shape_cast %17 : vector<128x8xf32> to vector<8x16x8xf32>
    %19 = vector.extract_strided_slice %11 {offsets = [0, 0], sizes = [128, 8], strides = [1, 1]} : vector<128x32xf32> to vector<128x8xf32>
    %20 = vector.shape_cast %19 : vector<128x8xf32> to vector<8x16x8xf32>
    %21 = vector.extract_strided_slice %16 {offsets = [0, 0], sizes = [128, 8], strides = [1, 1]} : vector<128x32xf32> to vector<128x8xf32>
    %22 = vector.shape_cast %21 : vector<128x8xf32> to vector<8x16x8xf32>
    "tpu.trace_start"() <{level = 10 : i32, message = "gqd,gkd->gqk"}> : () -> ()
    %cst_16 = arith.constant dense<0.000000e+00> : vector<8x16x16xf32>
    %23 = tpu.matmul %18, %20, %cst_16 {dimension_numbers = #tpu.dot_dimension_numbers<[2], [2], [1], [1], [0, 0, 0, 1, 1, 1], [0], [0]>} : vector<8x16x8xf32>, vector<8x16x8xf32>, vector<8x16x16xf32> -> vector<8x16x16xf32>
    "tpu.trace_stop"() : () -> ()
    %cst_17 = arith.constant dense<0xFF800000> : vector<8x16xf32>
    %24 = vector.multi_reduction <maximumf>, %23, %cst_17 [2] : vector<8x16x16xf32> to vector<8x16xf32>
    %25 = vector.shape_cast %24 : vector<8x16xf32> to vector<8x16x1xf32>
    %26 = vector.broadcast %25 : vector<8x16x1xf32> to vector<8x16x16xf32>
    %27 = arith.subf %23, %26 : vector<8x16x16xf32>
    %28 = math.exp %27 : vector<8x16x16xf32>
    %cst_18 = arith.constant dense<0.000000e+00> : vector<8x16xf32>
    %29 = vector.multi_reduction <add>, %28, %cst_18 [2] : vector<8x16x16xf32> to vector<8x16xf32>
    %30 = vector.shape_cast %29 : vector<8x16xf32> to vector<8x16x1xf32>
    %31 = tpu.reciprocal %30 {approx = true} : vector<8x16x1xf32> -> vector<8x16x1xf32>
    %32 = vector.broadcast %31 : vector<8x16x1xf32> to vector<8x16x16xf32>
    %33 = arith.mulf %28, %32 : vector<8x16x16xf32>
    "tpu.trace_start"() <{level = 10 : i32, message = "gqk,gkd->gqd"}> : () -> ()
    %cst_19 = arith.constant dense<0.000000e+00> : vector<8x16x8xf32>
    %34 = tpu.matmul %33, %22, %cst_19 {dimension_numbers = #tpu.dot_dimension_numbers<[2], [1], [1], [2], [0, 0, 0, 1, 1, 2], [0], [0]>} : vector<8x16x16xf32>, vector<8x16x8xf32>, vector<8x16x8xf32> -> vector<8x16x8xf32>
    "tpu.trace_stop"() : () -> ()
    %35 = vector.shape_cast %34 : vector<8x16x8xf32> to vector<128x8xf32>
    %c0_20 = arith.constant 0 : index
    %c0_21 = arith.constant 0 : index
    %36 = vector.load %arg11[%c0_20, %c0_21] : memref<128x32xf32, #tpu.memory_space<vmem>>, vector<128x8xf32>
    tpu.vector_store %arg11[%c0_20, %c0_21], %35 {strides = array<i32>} : memref<128x32xf32, #tpu.memory_space<vmem>>, vector<128x8xf32>,
    %37 = vector.extract_strided_slice %6 {offsets = [0, 8], sizes = [128, 8], strides = [1, 1]} : vector<128x32xf32> to vector<128x8xf32>
    %38 = vector.shape_cast %37 : vector<128x8xf32> to vector<8x16x8xf32>
    %39 = vector.extract_strided_slice %11 {offsets = [0, 8], sizes = [128, 8], strides = [1, 1]} : vector<128x32xf32> to vector<128x8xf32>
    %40 = vector.shape_cast %39 : vector<128x8xf32> to vector<8x16x8xf32>
    %41 = vector.extract_strided_slice %16 {offsets = [0, 8], sizes = [128, 8], strides = [1, 1]} : vector<128x32xf32> to vector<128x8xf32>
    %42 = vector.shape_cast %41 : vector<128x8xf32> to vector<8x16x8xf32>
    "tpu.trace_start"() <{level = 10 : i32, message = "gqd,gkd->gqk"}> : () -> ()
    %cst_22 = arith.constant dense<0.000000e+00> : vector<8x16x16xf32>
    %43 = tpu.matmul %38, %40, %cst_22 {dimension_numbers = #tpu.dot_dimension_numbers<[2], [2], [1], [1], [0, 0, 0, 1, 1, 1], [0], [0]>} : vector<8x16x8xf32>, vector<8x16x8xf32>, vector<8x16x16xf32> -> vector<8x16x16xf32>
    "tpu.trace_stop"() : () -> ()
    %cst_23 = arith.constant dense<0xFF800000> : vector<8x16xf32>
    %44 = vector.multi_reduction <maximumf>, %43, %cst_23 [2] : vector<8x16x16xf32> to vector<8x16xf32>
    %45 = vector.shape_cast %44 : vector<8x16xf32> to vector<8x16x1xf32>
    %46 = vector.broadcast %45 : vector<8x16x1xf32> to vector<8x16x16xf32>
    %47 = arith.subf %43, %46 : vector<8x16x16xf32>
    %48 = math.exp %47 : vector<8x16x16xf32>
    %cst_24 = arith.constant dense<0.000000e+00> : vector<8x16xf32>
    %49 = vector.multi_reduction <add>, %48, %cst_24 [2] : vector<8x16x16xf32> to vector<8x16xf32>
    %50 = vector.shape_cast %49 : vector<8x16xf32> to vector<8x16x1xf32>
    %51 = tpu.reciprocal %50 {approx = true} : vector<8x16x1xf32> -> vector<8x16x1xf32>
    %52 = vector.broadcast %51 : vector<8x16x1xf32> to vector<8x16x16xf32>
    %53 = arith.mulf %48, %52 : vector<8x16x16xf32>
    "tpu.trace_start"() <{level = 10 : i32, message = "gqk,gkd->gqd"}> : () -> ()
    %cst_25 = arith.constant dense<0.000000e+00> : vector<8x16x8xf32>
    %54 = tpu.matmul %53, %42, %cst_25 {dimension_numbers = #tpu.dot_dimension_numbers<[2], [1], [1], [2], [0, 0, 0, 1, 1, 2], [0], [0]>} : vector<8x16x16xf32>, vector<8x16x8xf32>, vector<8x16x8xf32> -> vector<8x16x8xf32>
    "tpu.trace_stop"() : () -> ()
    %55 = vector.shape_cast %54 : vector<8x16x8xf32> to vector<128x8xf32>
    %c0_26 = arith.constant 0 : index
    %c8 = arith.constant 8 : index
    %56 = vector.load %arg11[%c0_26, %c8] : memref<128x32xf32, #tpu.memory_space<vmem>>, vector<128x8xf32>
    tpu.vector_store %arg11[%c0_26, %c8], %55 {strides = array<i32>} : memref<128x32xf32, #tpu.memory_space<vmem>>, vector<128x8xf32>,
    %57 = vector.extract_strided_slice %6 {offsets = [0, 16], sizes = [128, 8], strides = [1, 1]} : vector<128x32xf32> to vector<128x8xf32>
    %58 = vector.shape_cast %57 : vector<128x8xf32> to vector<8x16x8xf32>
    %59 = vector.extract_strided_slice %11 {offsets = [0, 16], sizes = [128, 8], strides = [1, 1]} : vector<128x32xf32> to vector<128x8xf32>
    %60 = vector.shape_cast %59 : vector<128x8xf32> to vector<8x16x8xf32>
    %61 = vector.extract_strided_slice %16 {offsets = [0, 16], sizes = [128, 8], strides = [1, 1]} : vector<128x32xf32> to vector<128x8xf32>
    %62 = vector.shape_cast %61 : vector<128x8xf32> to vector<8x16x8xf32>
    "tpu.trace_start"() <{level = 10 : i32, message = "gqd,gkd->gqk"}> : () -> ()
    %cst_27 = arith.constant dense<0.000000e+00> : vector<8x16x16xf32>
    %63 = tpu.matmul %58, %60, %cst_27 {dimension_numbers = #tpu.dot_dimension_numbers<[2], [2], [1], [1], [0, 0, 0, 1, 1, 1], [0], [0]>} : vector<8x16x8xf32>, vector<8x16x8xf32>, vector<8x16x16xf32> -> vector<8x16x16xf32>
    "tpu.trace_stop"() : () -> ()
    %cst_28 = arith.constant dense<0xFF800000> : vector<8x16xf32>
    %64 = vector.multi_reduction <maximumf>, %63, %cst_28 [2] : vector<8x16x16xf32> to vector<8x16xf32>
    %65 = vector.shape_cast %64 : vector<8x16xf32> to vector<8x16x1xf32>
    %66 = vector.broadcast %65 : vector<8x16x1xf32> to vector<8x16x16xf32>
    %67 = arith.subf %63, %66 : vector<8x16x16xf32>
    %68 = math.exp %67 : vector<8x16x16xf32>
    %cst_29 = arith.constant dense<0.000000e+00> : vector<8x16xf32>
    %69 = vector.multi_reduction <add>, %68, %cst_29 [2] : vector<8x16x16xf32> to vector<8x16xf32>
    %70 = vector.shape_cast %69 : vector<8x16xf32> to vector<8x16x1xf32>
    %71 = tpu.reciprocal %70 {approx = true} : vector<8x16x1xf32> -> vector<8x16x1xf32>
    %72 = vector.broadcast %71 : vector<8x16x1xf32> to vector<8x16x16xf32>
    %73 = arith.mulf %68, %72 : vector<8x16x16xf32>
    "tpu.trace_start"() <{level = 10 : i32, message = "gqk,gkd->gqd"}> : () -> ()
    %cst_30 = arith.constant dense<0.000000e+00> : vector<8x16x8xf32>
    %74 = tpu.matmul %73, %62, %cst_30 {dimension_numbers = #tpu.dot_dimension_numbers<[2], [1], [1], [2], [0, 0, 0, 1, 1, 2], [0], [0]>} : vector<8x16x16xf32>, vector<8x16x8xf32>, vector<8x16x8xf32> -> vector<8x16x8xf32>
    "tpu.trace_stop"() : () -> ()
    %75 = vector.shape_cast %74 : vector<8x16x8xf32> to vector<128x8xf32>
    %c0_31 = arith.constant 0 : index
    %c16 = arith.constant 16 : index
    %76 = vector.load %arg11[%c0_31, %c16] : memref<128x32xf32, #tpu.memory_space<vmem>>, vector<128x8xf32>
    tpu.vector_store %arg11[%c0_31, %c16], %75 {strides = array<i32>} : memref<128x32xf32, #tpu.memory_space<vmem>>, vector<128x8xf32>,
    %77 = vector.extract_strided_slice %6 {offsets = [0, 24], sizes = [128, 8], strides = [1, 1]} : vector<128x32xf32> to vector<128x8xf32>
    %78 = vector.shape_cast %77 : vector<128x8xf32> to vector<8x16x8xf32>
    %79 = vector.extract_strided_slice %11 {offsets = [0, 24], sizes = [128, 8], strides = [1, 1]} : vector<128x32xf32> to vector<128x8xf32>
    %80 = vector.shape_cast %79 : vector<128x8xf32> to vector<8x16x8xf32>
    %81 = vector.extract_strided_slice %16 {offsets = [0, 24], sizes = [128, 8], strides = [1, 1]} : vector<128x32xf32> to vector<128x8xf32>
    %82 = vector.shape_cast %81 : vector<128x8xf32> to vector<8x16x8xf32>
    "tpu.trace_start"() <{level = 10 : i32, message = "gqd,gkd->gqk"}> : () -> ()
    %cst_32 = arith.constant dense<0.000000e+00> : vector<8x16x16xf32>
    %83 = tpu.matmul %78, %80, %cst_32 {dimension_numbers = #tpu.dot_dimension_numbers<[2], [2], [1], [1], [0, 0, 0, 1, 1, 1], [0], [0]>} : vector<8x16x8xf32>, vector<8x16x8xf32>, vector<8x16x16xf32> -> vector<8x16x16xf32>
    "tpu.trace_stop"() : () -> ()
    %cst_33 = arith.constant dense<0xFF800000> : vector<8x16xf32>
    %84 = vector.multi_reduction <maximumf>, %83, %cst_33 [2] : vector<8x16x16xf32> to vector<8x16xf32>
    %85 = vector.shape_cast %84 : vector<8x16xf32> to vector<8x16x1xf32>
    %86 = vector.broadcast %85 : vector<8x16x1xf32> to vector<8x16x16xf32>
    %87 = arith.subf %83, %86 : vector<8x16x16xf32>
    %88 = math.exp %87 : vector<8x16x16xf32>
    %cst_34 = arith.constant dense<0.000000e+00> : vector<8x16xf32>
    %89 = vector.multi_reduction <add>, %88, %cst_34 [2] : vector<8x16x16xf32> to vector<8x16xf32>
    %90 = vector.shape_cast %89 : vector<8x16xf32> to vector<8x16x1xf32>
    %91 = tpu.reciprocal %90 {approx = true} : vector<8x16x1xf32> -> vector<8x16x1xf32>
    %92 = vector.broadcast %91 : vector<8x16x1xf32> to vector<8x16x16xf32>
    %93 = arith.mulf %88, %92 : vector<8x16x16xf32>
    "tpu.trace_start"() <{level = 10 : i32, message = "gqk,gkd->gqd"}> : () -> ()
    %cst_35 = arith.constant dense<0.000000e+00> : vector<8x16x8xf32>
    %94 = tpu.matmul %93, %82, %cst_35 {dimension_numbers = #tpu.dot_dimension_numbers<[2], [1], [1], [2], [0, 0, 0, 1, 1, 2], [0], [0]>} : vector<8x16x16xf32>, vector<8x16x8xf32>, vector<8x16x8xf32> -> vector<8x16x8xf32>
    "tpu.trace_stop"() : () -> ()
    %95 = vector.shape_cast %94 : vector<8x16x8xf32> to vector<128x8xf32>
    %c0_36 = arith.constant 0 : index
    %c24 = arith.constant 24 : index
    %96 = vector.load %arg11[%c0_36, %c24] : memref<128x32xf32, #tpu.memory_space<vmem>>, vector<128x8xf32>
    tpu.vector_store %arg11[%c0_36, %c24], %95 {strides = array<i32>} : memref<128x32xf32, #tpu.memory_space<vmem>>, vector<128x8xf32>,
    %c0_37 = arith.constant 0 : index
    %c0_38 = arith.constant 0 : index
    %97 = vector.load %arg11[%c0_37, %c0_38] : memref<128x32xf32, #tpu.memory_space<vmem>>, vector<128x32xf32>
    %c0_39 = arith.constant 0 : index
    %c0_40 = arith.constant 0 : index
    %98 = vector.load %arg8[%c0_39, %c0_40] : memref<32x32xf32, #tpu.memory_space<vmem>>, vector<32x32xf32>
    %cst_41 = arith.constant dense<0.000000e+00> : vector<128x32xf32>
    %99 = tpu.matmul %97, %98, %cst_41 {dimension_numbers = #tpu.dot_dimension_numbers<[1], [0], [0], [1], [0, 0, 1, 1], [], []>} : vector<128x32xf32>, vector<32x32xf32>, vector<128x32xf32> -> vector<128x32xf32>
    %c0_42 = arith.constant 0 : index
    %c0_43 = arith.constant 0 : index
    %100 = vector.load %arg9[%c0_42, %c0_43] : memref<1x32xf32, #tpu.memory_space<vmem>>, vector<1x32xf32>
    %101 = vector.broadcast %100 : vector<1x32xf32> to vector<128x32xf32>
    %102 = arith.addf %99, %101 : vector<128x32xf32>
    %103 = vector.shape_cast %102 : vector<128x32xf32> to vector<8x16x32xf32>
    %c0_44 = arith.constant 0 : index
    %c0_45 = arith.constant 0 : index
    %c0_46 = arith.constant 0 : index
    %104 = vector.load %arg10[%c0_44, %c0_45, %c0_46] : memref<8x16x32xf32, #tpu.memory_space<vmem>>, vector<8x16x32xf32>
    tpu.vector_store %arg10[%c0_44, %c0_45, %c0_46], %103 {strides = array<i32>} : memref<8x16x32xf32, #tpu.memory_space<vmem>>, vector<8x16x32xf32>,
    return
  }
  func.func @transform_0(%arg0: i32) -> (i32, i32, i32) {
    %c0_i32 = arith.constant 0 : i32
    %c0_i32_0 = arith.constant 0 : i32
    %c0_i32_1 = arith.constant 0 : i32
    return %arg0, %c0_i32, %c0_i32_0 : i32, i32, i32
  }
  func.func @transform_1(%arg0: i32) -> (i32, i32) {
    %c0_i32 = arith.constant 0 : i32
    %c0_i32_0 = arith.constant 0 : i32
    %c0_i32_1 = arith.constant 0 : i32
    return %c0_i32, %c0_i32_0 : i32, i32
  }
  func.func @transform_2(%arg0: i32) -> (i32, i32) {
    %c0_i32 = arith.constant 0 : i32
    %c0_i32_0 = arith.constant 0 : i32
    %c0_i32_1 = arith.constant 0 : i32
    return %c0_i32, %c0_i32_0 : i32, i32
  }
  func.func @transform_3(%arg0: i32) -> (i32, i32) {
    %c0_i32 = arith.constant 0 : i32
    %c0_i32_0 = arith.constant 0 : i32
    %c0_i32_1 = arith.constant 0 : i32
    return %c0_i32, %c0_i32_0 : i32, i32
  }
  func.func @transform_4(%arg0: i32) -> (i32, i32) {
    %c0_i32 = arith.constant 0 : i32
    %c0_i32_0 = arith.constant 0 : i32
    %c0_i32_1 = arith.constant 0 : i32
    return %c0_i32, %c0_i32_0 : i32, i32
  }
  func.func @transform_5(%arg0: i32) -> (i32, i32) {
    %c0_i32 = arith.constant 0 : i32
    %c0_i32_0 = arith.constant 0 : i32
    %c0_i32_1 = arith.constant 0 : i32
    return %c0_i32, %c0_i32_0 : i32, i32
  }
  func.func @transform_6(%arg0: i32) -> (i32, i32) {
    %c0_i32 = arith.constant 0 : i32
    %c0_i32_0 = arith.constant 0 : i32
    %c0_i32_1 = arith.constant 0 : i32
    return %c0_i32, %c0_i32_0 : i32, i32
  }
  func.func @transform_7(%arg0: i32) -> (i32, i32) {
    %c0_i32 = arith.constant 0 : i32
    %c0_i32_0 = arith.constant 0 : i32
    %c0_i32_1 = arith.constant 0 : i32
    return %c0_i32, %c0_i32_0 : i32, i32
  }
  func.func @transform_8(%arg0: i32) -> (i32, i32) {
    %c0_i32 = arith.constant 0 : i32
    %c0_i32_0 = arith.constant 0 : i32
    %c0_i32_1 = arith.constant 0 : i32
    return %c0_i32, %c0_i32_0 : i32, i32
  }
  func.func @transform_9(%arg0: i32) -> (i32, i32, i32) {
    %c0_i32 = arith.constant 0 : i32
    %c0_i32_0 = arith.constant 0 : i32
    %c0_i32_1 = arith.constant 0 : i32
    return %arg0, %c0_i32, %c0_i32_0 : i32, i32, i32
  }
}

</mosaic_0001>

<llo_original>
// kernel: tpu_custom_call.1
$region0: #{tpu_custom_call.1}
  #allocation0 [shape = 'u32[]', space=smem, size = 0x4, offset = 0x4, fixed_abs, tag = 'smem constant byte address 0x4 - core index']
  #allocation1 [shape = 'u32[72,128]{1,0:T(1,128)}', space=vmem, size = 0x9000, scoped, tag = 'internal scratch']
  #allocation2 [shape = 'f32[128,32]{1,0:T(8,128)}', space=vmem, size = 0x10000, scoped, tag = 'scratch operand']
  %s0 = inlined_call_operand.hbm [shape: f32[8,16,32], index: 0, kind: input, shape index: {}]
  %s1 = inlined_call_operand.hbm [shape: f32[32,32], index: 1, kind: input, shape index: {}]
  %s2 = inlined_call_operand.hbm [shape: f32[32,32], index: 2, kind: input, shape index: {}]
  %s3 = inlined_call_operand.hbm [shape: f32[32,32], index: 3, kind: input, shape index: {}]
  %s4 = inlined_call_operand.vmem [shape: f32[1,32], index: 4, kind: input, shape index: {}]
  %s5 = inlined_call_operand.vmem [shape: f32[1,32], index: 5, kind: input, shape index: {}]
  %s6 = inlined_call_operand.vmem [shape: f32[1,32], index: 6, kind: input, shape index: {}]
  %s7 = inlined_call_operand.hbm [shape: f32[32,32], index: 7, kind: input, shape index: {}]
  %s8 = inlined_call_operand.vmem [shape: f32[1,32], index: 8, kind: input, shape index: {}]
  %s9 = inlined_call_operand.hbm [shape: f32[8,16,32], index: 9, kind: output, shape index: {}]
  %s10 = sld [smem:[#allocation0]]
  $region66: #{tpu_custom_call.1} parent=0
    _
  %s12 = ssub.s32 1, %s10
  %s13 = scalar_select 0, %s12, %s10
  $region1: #{tpu_custom_call.1} parent=0
    #allocation3 [shape = 'u8[65536]{0}', space=vmem, size = 0x10000, scoped, tag = 'input window, operand 0, single buffered']
    #allocation4 [shape = 's32[1]{0}', space=sflag, size = 0x4, scoped, tag = 'scoped memory for tpu_custom_call.1']
    #allocation5 [shape = 's32[1]{0}', space=sflag, size = 0x4, scoped, tag = 'scoped memory for tpu_custom_call.1']
    #allocation6 [shape = 'u8[16384]{0}', space=vmem, size = 0x4000, scoped, tag = 'input window, operand 1, single buffered']
    #allocation7 [shape = 's32[1]{0}', space=sflag, size = 0x4, scoped, tag = 'scoped memory for tpu_custom_call.1']
    #allocation8 [shape = 'u8[16384]{0}', space=vmem, size = 0x4000, scoped, tag = 'input window, operand 2, single buffered']
    #allocation9 [shape = 'u8[16384]{0}', space=vmem, size = 0x4000, scoped, tag = 'input window, operand 3, single buffered']
    #allocation10 [shape = 's32[1]{0}', space=sflag, size = 0x4, scoped, tag = 'scoped memory for tpu_custom_call.1']
    #allocation11 [shape = 'u8[16384]{0}', space=vmem, size = 0x4000, scoped, tag = 'input window, operand 7, single buffered']
    #allocation12 [shape = 'u8[65536]{0}', space=vmem, size = 0x10000, scoped, tag = 'output window, operand 0, single buffered']
    %14 = vsyncpa [#allocation4], 0
    %15 = vsyncpa [#allocation7], 0
    %16 = vsyncpa [#allocation10], 0
    %17 = vsyncpa [#allocation5], 0
    // Predicated region
    $region2: #{tpu_custom_call.1} parent=1 // pred_check
      _
    $region3: #{tpu_custom_call.1} parent=1 // pred_check_branch
      %19 = sbr.rel (0) target = $region5
    $region4: #{tpu_custom_call.1} parent=1 // pred_region
      %21 = vsyncadd [#allocation4], 0
      %s22 = sshll.u32 %s0, 4
      %s23 = int_to_ptr.hbm [resolvable:$true] %s22
      %s24 = sshll.u32 [#allocation3], 4
      %s25 = int_to_ptr.vmem [resolvable:$true] %s24
      %30 = dma.hbm_to_vmem [thread:$0]  %s23, 2048, %s25, [#allocation4], 128, 128, 8
    $region5: #{tpu_custom_call.1} parent=1 // pred_fallthru
      _
    // Predicated region
    $region6: #{tpu_custom_call.1} parent=1 // pred_check
      _
    $region7: #{tpu_custom_call.1} parent=1 // pred_check_branch
      %32 = sbr.rel (0) target = $region9
    $region8: #{tpu_custom_call.1} parent=1 // pred_region
      %34 = vsyncadd [#allocation7], 0
      %s35 = sshll.u32 %s1, 4
      %s36 = int_to_ptr.hbm [resolvable:$true] %s35
      %s37 = sshll.u32 [#allocation6], 4
      %s38 = int_to_ptr.vmem [resolvable:$true] %s37
      %43 = dma.hbm_to_vmem [thread:$0]  %s36, 512, %s38, [#allocation7], 128, 128, 8
    $region9: #{tpu_custom_call.1} parent=1 // pred_fallthru
      _
    // Predicated region
    $region10: #{tpu_custom_call.1} parent=1 // pred_check
      _
    $region11: #{tpu_custom_call.1} parent=1 // pred_check_branch
      %45 = sbr.rel (0) target = $region13
    $region12: #{tpu_custom_call.1} parent=1 // pred_region
      %47 = vsyncadd [#allocation7], 0
      %s48 = sshll.u32 %s2, 4
      %s49 = int_to_ptr.hbm [resolvable:$true] %s48
      %s50 = sshll.u32 [#allocation8], 4
      %s51 = int_to_ptr.vmem [resolvable:$true] %s50
      %56 = dma.hbm_to_vmem [thread:$0]  %s49, 512, %s51, [#allocation7], 128, 128, 8
    $region13: #{tpu_custom_call.1} parent=1 // pred_fallthru
      _
    // Predicated region
    $region14: #{tpu_custom_call.1} parent=1 // pred_check
      _
    $region15: #{tpu_custom_call.1} parent=1 // pred_check_branch
      %58 = sbr.rel (0) target = $region17
    $region16: #{tpu_custom_call.1} parent=1 // pred_region
      %60 = vsyncadd [#allocation10], 0
      %s61 = sshll.u32 %s3, 4
      %s62 = int_to_ptr.hbm [resolvable:$true] %s61
      %s63 = sshll.u32 [#allocation9], 4
      %s64 = int_to_ptr.vmem [resolvable:$true] %s63
      %69 = dma.hbm_to_vmem [thread:$0]  %s62, 512, %s64, [#allocation10], 128, 128, 8
    $region17: #{tpu_custom_call.1} parent=1 // pred_fallthru
      _
    // Predicated region
    $region18: #{tpu_custom_call.1} parent=1 // pred_check
      _
    $region19: #{tpu_custom_call.1} parent=1 // pred_check_branch
      %71 = sbr.rel (0) target = $region21
    $region20: #{tpu_custom_call.1} parent=1 // pred_region
      _
    $region21: #{tpu_custom_call.1} parent=1 // pred_fallthru
      _
    // Predicated region
    $region22: #{tpu_custom_call.1} parent=1 // pred_check
      _
    $region23: #{tpu_custom_call.1} parent=1 // pred_check_branch
      %73 = sbr.rel (0) target = $region25
    $region24: #{tpu_custom_call.1} parent=1 // pred_region
      _
    $region25: #{tpu_custom_call.1} parent=1 // pred_fallthru
      _
    // Predicated region
    $region26: #{tpu_custom_call.1} parent=1 // pred_check
      _
    $region27: #{tpu_custom_call.1} parent=1 // pred_check_branch
      %75 = sbr.rel (0) target = $region29
    $region28: #{tpu_custom_call.1} parent=1 // pred_region
      _
    $region29: #{tpu_custom_call.1} parent=1 // pred_fallthru
      _
    // Predicated region
    $region30: #{tpu_custom_call.1} parent=1 // pred_check
      _
    $region31: #{tpu_custom_call.1} parent=1 // pred_check_branch
      %77 = sbr.rel (0) target = $region33
    $region32: #{tpu_custom_call.1} parent=1 // pred_region
      %79 = vsyncadd [#allocation10], 0
      %s80 = sshll.u32 %s7, 4
      %s81 = int_to_ptr.hbm [resolvable:$true] %s80
      %s82 = sshll.u32 [#allocation11], 4
      %s83 = int_to_ptr.vmem [resolvable:$true] %s82
      %88 = dma.hbm_to_vmem [thread:$0]  %s81, 512, %s83, [#allocation10], 128, 128, 8
    $region33: #{tpu_custom_call.1} parent=1 // pred_fallthru
      _
    // Predicated region
    $region34: #{tpu_custom_call.1} parent=1 // pred_check
      _
    $region35: #{tpu_custom_call.1} parent=1 // pred_check_branch
      %90 = sbr.rel (0) target = $region37
    $region36: #{tpu_custom_call.1} parent=1 // pred_region
      _
    $region37: #{tpu_custom_call.1} parent=1 // pred_fallthru
      _
    // Predicated region
    $region38: #{tpu_custom_call.1} parent=1 // pred_check
      _
    $region39: #{tpu_custom_call.1} parent=1 // pred_check_branch
      %92 = sbr.rel (0) target = $region41
    $region40: #{tpu_custom_call.1} parent=1 // pred_region
      %94 = dma.done [#allocation4], 2048
    $region41: #{tpu_custom_call.1} parent=1 // pred_fallthru
      _
    // Predicated region
    $region42: #{tpu_custom_call.1} parent=1 // pred_check
      _
    $region43: #{tpu_custom_call.1} parent=1 // pred_check_branch
      %96 = sbr.rel (0) target = $region45
    $region44: #{tpu_custom_call.1} parent=1 // pred_region
      %98 = dma.done [#allocation7], 512
    $region45: #{tpu_custom_call.1} parent=1 // pred_fallthru
      _
    // Predicated region
    $region46: #{tpu_custom_call.1} parent=1 // pred_check
      _
    $region47: #{tpu_custom_call.1} parent=1 // pred_check_branch
      %100 = sbr.rel (0) target = $region49
    $region48: #{tpu_custom_call.1} parent=1 // pred_region
      %102 = dma.done [#allocation7], 512
    $region49: #{tpu_custom_call.1} parent=1 // pred_fallthru
      _
    // Predicated region
    $region50: #{tpu_custom_call.1} parent=1 // pred_check
      _
    $region51: #{tpu_custom_call.1} parent=1 // pred_check_branch
      %104 = sbr.rel (0) target = $region53
    $region52: #{tpu_custom_call.1} parent=1 // pred_region
      %106 = dma.done [#allocation10], 512
    $region53: #{tpu_custom_call.1} parent=1 // pred_fallthru
      _
    // Predicated region
    $region54: #{tpu_custom_call.1} parent=1 // pred_check
      _
    $region55: #{tpu_custom_call.1} parent=1 // pred_check_branch
      %108 = sbr.rel (0) target = $region57
    $region56: #{tpu_custom_call.1} parent=1 // pred_region
      %110 = dma.done [#allocation10], 512
    $region57: #{tpu_custom_call.1} parent=1 // pred_fallthru
      _
    %v111 = vld [vmem:[#allocation3] sm:$0xff]
    %v112 = vld [vmem:[#allocation3 + $0x8] sm:$0xff]
    %v113 = vld [vmem:[#allocation3 + $0x10] sm:$0xff]
    %v114 = vld [vmem:[#allocation3 + $0x18] sm:$0xff]
    %v115 = vld [vmem:[#allocation3 + $0x20] sm:$0xff]
    %v116 = vld [vmem:[#allocation3 + $0x28] sm:$0xff]
    %v117 = vld [vmem:[#allocation3 + $0x30] sm:$0xff]
    %v118 = vld [vmem:[#allocation3 + $0x38] sm:$0xff]
    %v119 = vld [vmem:[#allocation3 + $0x40] sm:$0xff]
    %v120 = vld [vmem:[#allocation3 + $0x48] sm:$0xff]
    %v121 = vld [vmem:[#allocation3 + $0x50] sm:$0xff]
    %v122 = vld [vmem:[#allocation3 + $0x58] sm:$0xff]
    %v123 = vld [vmem:[#allocation3 + $0x60] sm:$0xff]
    %v124 = vld [vmem:[#allocation3 + $0x68] sm:$0xff]
    %v125 = vld [vmem:[#allocation3 + $0x70] sm:$0xff]
    %v126 = vld [vmem:[#allocation3 + $0x78] sm:$0xff]
    %v127 = vld [vmem:[#allocation6] sm:$0xff]
    %v128 = vld [vmem:[#allocation6 + $0x8] sm:$0xff]
    %v129 = vld [vmem:[#allocation6 + $0x10] sm:$0xff]
    %v130 = vld [vmem:[#allocation6 + $0x18] sm:$0xff]
    %v131 = vld [vmem:[%s4] sm:$0x1]
    %v133 = vperm.slane %v131, 0
    %vm135 = vcmask 261120
    %v137 = vsel %vm135, %v111, 0
    %v140 = vsel %vm135, %v112, 0
    %v143 = vsel %vm135, %v113, 0
    %v146 = vsel %vm135, %v114, 0
    %v149 = vsel %vm135, %v115, 0
    %v152 = vsel %vm135, %v116, 0
    %v155 = vsel %vm135, %v117, 0
    %v158 = vsel %vm135, %v118, 0
    %v161 = vsel %vm135, %v119, 0
    %v164 = vsel %vm135, %v120, 0
    %v167 = vsel %vm135, %v121, 0
    %v170 = vsel %vm135, %v122, 0
    %v173 = vsel %vm135, %v123, 0
    %v176 = vsel %vm135, %v124, 0
    %v179 = vsel %vm135, %v125, 0
    %v182 = vsel %vm135, %v126, 0
    %184 = vmatpush.msra.mxu0 0.0
    %185 = vmatpush.msra.mxu0 0.0
    %186 = vmatpush.msra.mxu0 0.0
    %187 = vmatpush.msra.mxu0 0.0
    %188 = vmatpush.msra.mxu0 0.0
    %189 = vmatpush.msra.mxu0 0.0
    %190 = vmatpush.msra.mxu0 0.0
    %191 = vmatpush.msra.mxu0 0.0
    %192 = vmatpush.msra.mxu0 0.0
    %193 = vmatpush.msra.mxu0 0.0
    %194 = vmatpush.msra.mxu0 0.0
    %195 = vmatpush.msra.mxu0 0.0
    %196 = vmatpush.msra.mxu0 %v130
    %197 = vmatpush.msra.mxu0 %v129
    %198 = vmatpush.msra.mxu0 %v128
    %199 = vmatpush.msra.mxu0 %v127
    %200 = vmatmul.f32.gmra.mxu0 %v137
    %v201 = vpop.f32.mrf.mxu0
    %v202 = vadd.f32 %v133, %v201
    %203 = vmatmul.f32.gmra.mxu0 %v140
    %v204 = vpop.f32.mrf.mxu0
    %v205 = vadd.f32 %v133, %v204
    %206 = vmatmul.f32.gmra.mxu0 %v143
    %v207 = vpop.f32.mrf.mxu0
    %v208 = vadd.f32 %v133, %v207
    %209 = vmatmul.f32.gmra.mxu0 %v146
    %v210 = vpop.f32.mrf.mxu0
    %v211 = vadd.f32 %v133, %v210
    %212 = vmatmul.f32.gmra.mxu0 %v149
    %v213 = vpop.f32.mrf.mxu0
    %v214 = vadd.f32 %v133, %v213
    %215 = vmatmul.f32.gmra.mxu0 %v152
    %v216 = vpop.f32.mrf.mxu0
    %v217 = vadd.f32 %v133, %v216
    %218 = vmatmul.f32.gmra.mxu0 %v155
    %v219 = vpop.f32.mrf.mxu0
    %v220 = vadd.f32 %v133, %v219
    %221 = vmatmul.f32.gmra.mxu0 %v158
    %v222 = vpop.f32.mrf.mxu0
    %v223 = vadd.f32 %v133, %v222
    %224 = vmatmul.f32.gmra.mxu0 %v161
    %v225 = vpop.f32.mrf.mxu0
    %v226 = vadd.f32 %v133, %v225
    %227 = vmatmul.f32.gmra.mxu0 %v164
    %v228 = vpop.f32.mrf.mxu0
    %v229 = vadd.f32 %v133, %v228
    %230 = vmatmul.f32.gmra.mxu0 %v167
    %v231 = vpop.f32.mrf.mxu0
    %v232 = vadd.f32 %v133, %v231
    %233 = vmatmul.f32.gmra.mxu0 %v170
    %v234 = vpop.f32.mrf.mxu0
    %v235 = vadd.f32 %v133, %v234
    %236 = vmatmul.f32.gmra.mxu0 %v173
    %v237 = vpop.f32.mrf.mxu0
    %v238 = vadd.f32 %v133, %v237
    %239 = vmatmul.f32.gmra.mxu0 %v176
    %v240 = vpop.f32.mrf.mxu0
    %v241 = vadd.f32 %v133, %v240
    %242 = vmatmul.f32.gmra.mxu0 %v179
    %v243 = vpop.f32.mrf.mxu0
    %v244 = vadd.f32 %v133, %v243
    %245 = vmatmul.f32.gmra.mxu0 %v182
    %v246 = vpop.f32.mrf.mxu0
    %v247 = vadd.f32 %v133, %v246
    %248 = vdwg.mxu0
    %v249 = vld [vmem:[#allocation8] sm:$0xff]
    %v250 = vld [vmem:[#allocation8 + $0x8] sm:$0xff]
    %v251 = vld [vmem:[#allocation8 + $0x10] sm:$0xff]
    %v252 = vld [vmem:[#allocation8 + $0x18] sm:$0xff]
    %v253 = vld [vmem:[%s5] sm:$0x1]
    %v255 = vperm.slane %v253, 0
    %257 = vmatpush.msra.mxu0 0.0
    %258 = vmatpush.msra.mxu0 0.0
    %259 = vmatpush.msra.mxu0 0.0
    %260 = vmatpush.msra.mxu0 0.0
    %261 = vmatpush.msra.mxu0 0.0
    %262 = vmatpush.msra.mxu0 0.0
    %263 = vmatpush.msra.mxu0 0.0
    %264 = vmatpush.msra.mxu0 0.0
    %265 = vmatpush.msra.mxu0 0.0
    %266 = vmatpush.msra.mxu0 0.0
    %267 = vmatpush.msra.mxu0 0.0
    %268 = vmatpush.msra.mxu0 0.0
    %269 = vmatpush.msra.mxu0 %v252
    %270 = vmatpush.msra.mxu0 %v251
    %271 = vmatpush.msra.mxu0 %v250
    %272 = vmatpush.msra.mxu0 %v249
    %273 = vmatmul.f32.gmra.mxu0 %v137
    %v274 = vpop.f32.mrf.mxu0
    %v275 = vadd.f32 %v255, %v274
    %276 = vmatmul.f32.gmra.mxu0 %v140
    %v277 = vpop.f32.mrf.mxu0
    %v278 = vadd.f32 %v255, %v277
    %279 = vmatmul.f32.gmra.mxu0 %v143
    %v280 = vpop.f32.mrf.mxu0
    %v281 = vadd.f32 %v255, %v280
    %282 = vmatmul.f32.gmra.mxu0 %v146
    %v283 = vpop.f32.mrf.mxu0
    %v284 = vadd.f32 %v255, %v283
    %285 = vmatmul.f32.gmra.mxu0 %v149
    %v286 = vpop.f32.mrf.mxu0
    %v287 = vadd.f32 %v255, %v286
    %288 = vmatmul.f32.gmra.mxu0 %v152
    %v289 = vpop.f32.mrf.mxu0
    %v290 = vadd.f32 %v255, %v289
    %291 = vmatmul.f32.gmra.mxu0 %v155
    %v292 = vpop.f32.mrf.mxu0
    %v293 = vadd.f32 %v255, %v292
    %294 = vmatmul.f32.gmra.mxu0 %v158
    %v295 = vpop.f32.mrf.mxu0
    %v296 = vadd.f32 %v255, %v295
    %297 = vmatmul.f32.gmra.mxu0 %v161
    %v298 = vpop.f32.mrf.mxu0
    %v299 = vadd.f32 %v255, %v298
    %300 = vmatmul.f32.gmra.mxu0 %v164
    %v301 = vpop.f32.mrf.mxu0
    %v302 = vadd.f32 %v255, %v301
    %303 = vmatmul.f32.gmra.mxu0 %v167
    %v304 = vpop.f32.mrf.mxu0
    %v305 = vadd.f32 %v255, %v304
    %306 = vmatmul.f32.gmra.mxu0 %v170
    %v307 = vpop.f32.mrf.mxu0
    %v308 = vadd.f32 %v255, %v307
    %309 = vmatmul.f32.gmra.mxu0 %v173
    %v310 = vpop.f32.mrf.mxu0
    %v311 = vadd.f32 %v255, %v310
    %312 = vmatmul.f32.gmra.mxu0 %v176
    %v313 = vpop.f32.mrf.mxu0
    %v314 = vadd.f32 %v255, %v313
    %315 = vmatmul.f32.gmra.mxu0 %v179
    %v316 = vpop.f32.mrf.mxu0
    %v317 = vadd.f32 %v255, %v316
    %318 = vmatmul.f32.gmra.mxu0 %v182
    %v319 = vpop.f32.mrf.mxu0
    %v320 = vadd.f32 %v255, %v319
    %321 = vdwg.mxu0
    %v322 = vld [vmem:[#allocation9] sm:$0xff]
    %v323 = vld [vmem:[#allocation9 + $0x8] sm:$0xff]
    %v324 = vld [vmem:[#allocation9 + $0x10] sm:$0xff]
    %v325 = vld [vmem:[#allocation9 + $0x18] sm:$0xff]
    %v326 = vld [vmem:[%s6] sm:$0x1]
    %v328 = vperm.slane %v326, 0
    %330 = vmatpush.msra.mxu0 0.0
    %331 = vmatpush.msra.mxu0 0.0
    %332 = vmatpush.msra.mxu0 0.0
    %333 = vmatpush.msra.mxu0 0.0
    %334 = vmatpush.msra.mxu0 0.0
    %335 = vmatpush.msra.mxu0 0.0
    %336 = vmatpush.msra.mxu0 0.0
    %337 = vmatpush.msra.mxu0 0.0
    %338 = vmatpush.msra.mxu0 0.0
    %339 = vmatpush.msra.mxu0 0.0
    %340 = vmatpush.msra.mxu0 0.0
    %341 = vmatpush.msra.mxu0 0.0
    %342 = vmatpush.msra.mxu0 %v325
    %343 = vmatpush.msra.mxu0 %v324
    %344 = vmatpush.msra.mxu0 %v323
    %345 = vmatpush.msra.mxu0 %v322
    %346 = vmatmul.f32.gmra.mxu0 %v137
    %v347 = vpop.f32.mrf.mxu0
    %v348 = vadd.f32 %v328, %v347
    %349 = vmatmul.f32.gmra.mxu0 %v140
    %v350 = vpop.f32.mrf.mxu0
    %v351 = vadd.f32 %v328, %v350
    %352 = vmatmul.f32.gmra.mxu0 %v143
    %v353 = vpop.f32.mrf.mxu0
    %v354 = vadd.f32 %v328, %v353
    %355 = vmatmul.f32.gmra.mxu0 %v146
    %v356 = vpop.f32.mrf.mxu0
    %v357 = vadd.f32 %v328, %v356
    %358 = vmatmul.f32.gmra.mxu0 %v149
    %v359 = vpop.f32.mrf.mxu0
    %v360 = vadd.f32 %v328, %v359
    %361 = vmatmul.f32.gmra.mxu0 %v152
    %v362 = vpop.f32.mrf.mxu0
    %v363 = vadd.f32 %v328, %v362
    %364 = vmatmul.f32.gmra.mxu0 %v155
    %v365 = vpop.f32.mrf.mxu0
    %v366 = vadd.f32 %v328, %v365
    %367 = vmatmul.f32.gmra.mxu0 %v158
    %v368 = vpop.f32.mrf.mxu0
    %v369 = vadd.f32 %v328, %v368
    %370 = vmatmul.f32.gmra.mxu0 %v161
    %v371 = vpop.f32.mrf.mxu0
    %v372 = vadd.f32 %v328, %v371
    %373 = vmatmul.f32.gmra.mxu0 %v164
    %v374 = vpop.f32.mrf.mxu0
    %v375 = vadd.f32 %v328, %v374
    %376 = vmatmul.f32.gmra.mxu0 %v167
    %v377 = vpop.f32.mrf.mxu0
    %v378 = vadd.f32 %v328, %v377
    %379 = vmatmul.f32.gmra.mxu0 %v170
    %v380 = vpop.f32.mrf.mxu0
    %v381 = vadd.f32 %v328, %v380
    %382 = vmatmul.f32.gmra.mxu0 %v173
    %v383 = vpop.f32.mrf.mxu0
    %v384 = vadd.f32 %v328, %v383
    %385 = vmatmul.f32.gmra.mxu0 %v176
    %v386 = vpop.f32.mrf.mxu0
    %v387 = vadd.f32 %v328, %v386
    %388 = vmatmul.f32.gmra.mxu0 %v179
    %v389 = vpop.f32.mrf.mxu0
    %v390 = vadd.f32 %v328, %v389
    %391 = vmatmul.f32.gmra.mxu0 %v182
    %v392 = vpop.f32.mrf.mxu0
    %v393 = vadd.f32 %v328, %v392
    %394 = vdwg.mxu0
    %vm395 = vcmask 64512
    %v397 = vsel %vm395, %v202, 0
    %v400 = vsel %vm395, %v205, 0
    %v403 = vsel %vm395, %v275, 0
    %v406 = vsel %vm395, %v278, 0
    %408 = vmatpush.xpose.msra.mxu0 0.0
    %409 = vmatpush.xpose.msra.mxu0 0.0
    %410 = vmatpush.xpose.msra.mxu0 0.0
    %411 = vmatpush.xpose.msra.mxu0 0.0
    %412 = vmatpush.xpose.msra.mxu0 0.0
    %413 = vmatpush.xpose.msra.mxu0 0.0
    %414 = vmatpush.xpose.msra.mxu0 0.0
    %415 = vmatpush.xpose.msra.mxu0 0.0
    %416 = vmatpush.xpose.msra.mxu0 0.0
    %417 = vmatpush.xpose.msra.mxu0 0.0
    %418 = vmatpush.xpose.msra.mxu0 0.0
    %419 = vmatpush.xpose.msra.mxu0 0.0
    %420 = vmatpush.xpose.msra.mxu0 0.0
    %421 = vmatpush.xpose.msra.mxu0 0.0
    %422 = vmatpush.xpose.msra.mxu0 %v406
    %423 = vmatpush.xpose.msra.mxu0 %v403
    %424 = vmatmul.f32.gmra.mxu0 %v397
    %v425 = vpop.f32.mrf.mxu0
    %v426 = vadd.f32 0.0, %v425
    %427 = vmatmul.f32.gmra.mxu0 %v400
    %v428 = vpop.f32.mrf.mxu0
    %v429 = vadd.f32 0.0, %v428
    %430 = vdwg.mxu0
    %v432 = vsel %vm395, %v208, 0
    %v435 = vsel %vm395, %v211, 0
    %v438 = vsel %vm395, %v281, 0
    %v441 = vsel %vm395, %v284, 0
    %443 = vmatpush.xpose.msra.mxu0 0.0
    %444 = vmatpush.xpose.msra.mxu0 0.0
    %445 = vmatpush.xpose.msra.mxu0 0.0
    %446 = vmatpush.xpose.msra.mxu0 0.0
    %447 = vmatpush.xpose.msra.mxu0 0.0
    %448 = vmatpush.xpose.msra.mxu0 0.0
    %449 = vmatpush.xpose.msra.mxu0 0.0
    %450 = vmatpush.xpose.msra.mxu0 0.0
    %451 = vmatpush.xpose.msra.mxu0 0.0
    %452 = vmatpush.xpose.msra.mxu0 0.0
    %453 = vmatpush.xpose.msra.mxu0 0.0
    %454 = vmatpush.xpose.msra.mxu0 0.0
    %455 = vmatpush.xpose.msra.mxu0 0.0
    %456 = vmatpush.xpose.msra.mxu0 0.0
    %457 = vmatpush.xpose.msra.mxu0 %v441
    %458 = vmatpush.xpose.msra.mxu0 %v438
    %459 = vmatmul.f32.gmra.mxu0 %v432
    %v460 = vpop.f32.mrf.mxu0
    %v461 = vadd.f32 0.0, %v460
    %462 = vmatmul.f32.gmra.mxu0 %v435
    %v463 = vpop.f32.mrf.mxu0
    %v464 = vadd.f32 0.0, %v463
    %465 = vdwg.mxu0
    %v467 = vsel %vm395, %v214, 0
    %v470 = vsel %vm395, %v217, 0
    %v473 = vsel %vm395, %v287, 0
    %v476 = vsel %vm395, %v290, 0
    %478 = vmatpush.xpose.msra.mxu0 0.0
    %479 = vmatpush.xpose.msra.mxu0 0.0
    %480 = vmatpush.xpose.msra.mxu0 0.0
    %481 = vmatpush.xpose.msra.mxu0 0.0
    %482 = vmatpush.xpose.msra.mxu0 0.0
    %483 = vmatpush.xpose.msra.mxu0 0.0
    %484 = vmatpush.xpose.msra.mxu0 0.0
    %485 = vmatpush.xpose.msra.mxu0 0.0
    %486 = vmatpush.xpose.msra.mxu0 0.0
    %487 = vmatpush.xpose.msra.mxu0 0.0
    %488 = vmatpush.xpose.msra.mxu0 0.0
    %489 = vmatpush.xpose.msra.mxu0 0.0
    %490 = vmatpush.xpose.msra.mxu0 0.0
    %491 = vmatpush.xpose.msra.mxu0 0.0
    %492 = vmatpush.xpose.msra.mxu0 %v476
    %493 = vmatpush.xpose.msra.mxu0 %v473
    %494 = vmatmul.f32.gmra.mxu0 %v467
    %v495 = vpop.f32.mrf.mxu0
    %v496 = vadd.f32 0.0, %v495
    %497 = vmatmul.f32.gmra.mxu0 %v470
    %v498 = vpop.f32.mrf.mxu0
    %v499 = vadd.f32 0.0, %v498
    %500 = vdwg.mxu0
    %v502 = vsel %vm395, %v220, 0
    %v505 = vsel %vm395, %v223, 0
    %v508 = vsel %vm395, %v293, 0
    %v511 = vsel %vm395, %v296, 0
    %513 = vmatpush.xpose.msra.mxu0 0.0
    %514 = vmatpush.xpose.msra.mxu0 0.0
    %515 = vmatpush.xpose.msra.mxu0 0.0
    %516 = vmatpush.xpose.msra.mxu0 0.0
    %517 = vmatpush.xpose.msra.mxu0 0.0
    %518 = vmatpush.xpose.msra.mxu0 0.0
    %519 = vmatpush.xpose.msra.mxu0 0.0
    %520 = vmatpush.xpose.msra.mxu0 0.0
    %521 = vmatpush.xpose.msra.mxu0 0.0
    %522 = vmatpush.xpose.msra.mxu0 0.0
    %523 = vmatpush.xpose.msra.mxu0 0.0
    %524 = vmatpush.xpose.msra.mxu0 0.0
    %525 = vmatpush.xpose.msra.mxu0 0.0
    %526 = vmatpush.xpose.msra.mxu0 0.0
    %527 = vmatpush.xpose.msra.mxu0 %v511
    %528 = vmatpush.xpose.msra.mxu0 %v508
    %529 = vmatmul.f32.gmra.mxu0 %v502
    %v530 = vpop.f32.mrf.mxu0
    %v531 = vadd.f32 0.0, %v530
    %532 = vmatmul.f32.gmra.mxu0 %v505
    %v533 = vpop.f32.mrf.mxu0
    %v534 = vadd.f32 0.0, %v533
    %535 = vdwg.mxu0
    %v537 = vsel %vm395, %v226, 0
    %v540 = vsel %vm395, %v229, 0
    %v543 = vsel %vm395, %v299, 0
    %v546 = vsel %vm395, %v302, 0
    %548 = vmatpush.xpose.msra.mxu0 0.0
    %549 = vmatpush.xpose.msra.mxu0 0.0
    %550 = vmatpush.xpose.msra.mxu0 0.0
    %551 = vmatpush.xpose.msra.mxu0 0.0
    %552 = vmatpush.xpose.msra.mxu0 0.0
    %553 = vmatpush.xpose.msra.mxu0 0.0
    %554 = vmatpush.xpose.msra.mxu0 0.0
    %555 = vmatpush.xpose.msra.mxu0 0.0
    %556 = vmatpush.xpose.msra.mxu0 0.0
    %557 = vmatpush.xpose.msra.mxu0 0.0
    %558 = vmatpush.xpose.msra.mxu0 0.0
    %559 = vmatpush.xpose.msra.mxu0 0.0
    %560 = vmatpush.xpose.msra.mxu0 0.0
    %561 = vmatpush.xpose.msra.mxu0 0.0
    %562 = vmatpush.xpose.msra.mxu0 %v546
    %563 = vmatpush.xpose.msra.mxu0 %v543
    %564 = vmatmul.f32.gmra.mxu0 %v537
    %v565 = vpop.f32.mrf.mxu0
    %v566 = vadd.f32 0.0, %v565
    %567 = vmatmul.f32.gmra.mxu0 %v540
    %v568 = vpop.f32.mrf.mxu0
    %v569 = vadd.f32 0.0, %v568
    %570 = vdwg.mxu0
    %v572 = vsel %vm395, %v232, 0
    %v575 = vsel %vm395, %v235, 0
    %v578 = vsel %vm395, %v305, 0
    %v581 = vsel %vm395, %v308, 0
    %583 = vmatpush.xpose.msra.mxu0 0.0
    %584 = vmatpush.xpose.msra.mxu0 0.0
    %585 = vmatpush.xpose.msra.mxu0 0.0
    %586 = vmatpush.xpose.msra.mxu0 0.0
    %587 = vmatpush.xpose.msra.mxu0 0.0
    %588 = vmatpush.xpose.msra.mxu0 0.0
    %589 = vmatpush.xpose.msra.mxu0 0.0
    %590 = vmatpush.xpose.msra.mxu0 0.0
    %591 = vmatpush.xpose.msra.mxu0 0.0
    %592 = vmatpush.xpose.msra.mxu0 0.0
    %593 = vmatpush.xpose.msra.mxu0 0.0
    %594 = vmatpush.xpose.msra.mxu0 0.0
    %595 = vmatpush.xpose.msra.mxu0 0.0
    %596 = vmatpush.xpose.msra.mxu0 0.0
    %597 = vmatpush.xpose.msra.mxu0 %v581
    %598 = vmatpush.xpose.msra.mxu0 %v578
    %599 = vmatmul.f32.gmra.mxu0 %v572
    %v600 = vpop.f32.mrf.mxu0
    %v601 = vadd.f32 0.0, %v600
    %602 = vmatmul.f32.gmra.mxu0 %v575
    %v603 = vpop.f32.mrf.mxu0
    %v604 = vadd.f32 0.0, %v603
    %605 = vdwg.mxu0
    %v607 = vsel %vm395, %v238, 0
    %v610 = vsel %vm395, %v241, 0
    %v613 = vsel %vm395, %v311, 0
    %v616 = vsel %vm395, %v314, 0
    %618 = vmatpush.xpose.msra.mxu0 0.0
    %619 = vmatpush.xpose.msra.mxu0 0.0
    %620 = vmatpush.xpose.msra.mxu0 0.0
    %621 = vmatpush.xpose.msra.mxu0 0.0
    %622 = vmatpush.xpose.msra.mxu0 0.0
    %623 = vmatpush.xpose.msra.mxu0 0.0
    %624 = vmatpush.xpose.msra.mxu0 0.0
    %625 = vmatpush.xpose.msra.mxu0 0.0
    %626 = vmatpush.xpose.msra.mxu0 0.0
    %627 = vmatpush.xpose.msra.mxu0 0.0
    %628 = vmatpush.xpose.msra.mxu0 0.0
    %629 = vmatpush.xpose.msra.mxu0 0.0
    %630 = vmatpush.xpose.msra.mxu0 0.0
    %631 = vmatpush.xpose.msra.mxu0 0.0
    %632 = vmatpush.xpose.msra.mxu0 %v616
    %633 = vmatpush.xpose.msra.mxu0 %v613
    %634 = vmatmul.f32.gmra.mxu0 %v607
    %v635 = vpop.f32.mrf.mxu0
    %v636 = vadd.f32 0.0, %v635
    %637 = vmatmul.f32.gmra.mxu0 %v610
    %v638 = vpop.f32.mrf.mxu0
    %v639 = vadd.f32 0.0, %v638
    %640 = vdwg.mxu0
    %v642 = vsel %vm395, %v244, 0
    %v645 = vsel %vm395, %v247, 0
    %v648 = vsel %vm395, %v317, 0
    %v651 = vsel %vm395, %v320, 0
    %653 = vmatpush.xpose.msra.mxu0 0.0
    %654 = vmatpush.xpose.msra.mxu0 0.0
    %655 = vmatpush.xpose.msra.mxu0 0.0
    %656 = vmatpush.xpose.msra.mxu0 0.0
    %657 = vmatpush.xpose.msra.mxu0 0.0
    %658 = vmatpush.xpose.msra.mxu0 0.0
    %659 = vmatpush.xpose.msra.mxu0 0.0
    %660 = vmatpush.xpose.msra.mxu0 0.0
    %661 = vmatpush.xpose.msra.mxu0 0.0
    %662 = vmatpush.xpose.msra.mxu0 0.0
    %663 = vmatpush.xpose.msra.mxu0 0.0
    %664 = vmatpush.xpose.msra.mxu0 0.0
    %665 = vmatpush.xpose.msra.mxu0 0.0
    %666 = vmatpush.xpose.msra.mxu0 0.0
    %667 = vmatpush.xpose.msra.mxu0 %v651
    %668 = vmatpush.xpose.msra.mxu0 %v648
    %669 = vmatmul.f32.gmra.mxu0 %v642
    %v670 = vpop.f32.mrf.mxu0
    %v671 = vadd.f32 0.0, %v670
    %672 = vmatmul.f32.gmra.mxu0 %v645
    %v673 = vpop.f32.mrf.mxu0
    %v674 = vadd.f32 0.0, %v673
    %675 = vdwg.mxu0
    %vm676 = vcmask 130048
    %v677 = vsel %vm676, %v426, -inf
    %678 = vmax.xlane.f32.xlu0 %v677
    %v679 = vpop.xlane.xlu0 %678
    %v680 = vsel %vm676, %v429, -inf
    %681 = vmax.xlane.f32.xlu0 %v680
    %v682 = vpop.xlane.xlu0 %681
    %v683 = vsel %vm676, %v461, -inf
    %684 = vmax.xlane.f32.xlu0 %v683
    %v685 = vpop.xlane.xlu0 %684
    %v686 = vsel %vm676, %v464, -inf
    %687 = vmax.xlane.f32.xlu0 %v686
    %v688 = vpop.xlane.xlu0 %687
    %v689 = vsel %vm676, %v496, -inf
    %690 = vmax.xlane.f32.xlu0 %v689
    %v691 = vpop.xlane.xlu0 %690
    %v692 = vsel %vm676, %v499, -inf
    %693 = vmax.xlane.f32.xlu0 %v692
    %v694 = vpop.xlane.xlu0 %693
    %v695 = vsel %vm676, %v531, -inf
    %696 = vmax.xlane.f32.xlu0 %v695
    %v697 = vpop.xlane.xlu0 %696
    %v698 = vsel %vm676, %v534, -inf
    %699 = vmax.xlane.f32.xlu0 %v698
    %v700 = vpop.xlane.xlu0 %699
    %v701 = vsel %vm676, %v566, -inf
    %702 = vmax.xlane.f32.xlu0 %v701
    %v703 = vpop.xlane.xlu0 %702
    %v704 = vsel %vm676, %v569, -inf
    %705 = vmax.xlane.f32.xlu0 %v704
    %v706 = vpop.xlane.xlu0 %705
    %v707 = vsel %vm676, %v601, -inf
    %708 = vmax.xlane.f32.xlu0 %v707
    %v709 = vpop.xlane.xlu0 %708
    %v710 = vsel %vm676, %v604, -inf
    %711 = vmax.xlane.f32.xlu0 %v710
    %v712 = vpop.xlane.xlu0 %711
    %v713 = vsel %vm676, %v636, -inf
    %714 = vmax.xlane.f32.xlu0 %v713
    %v715 = vpop.xlane.xlu0 %714
    %v716 = vsel %vm676, %v639, -inf
    %717 = vmax.xlane.f32.xlu0 %v716
    %v718 = vpop.xlane.xlu0 %717
    %v719 = vsel %vm676, %v671, -inf
    %720 = vmax.xlane.f32.xlu0 %v719
    %v721 = vpop.xlane.xlu0 %720
    %v722 = vsel %vm676, %v674, -inf
    %723 = vmax.xlane.f32.xlu0 %v722
    %v724 = vpop.xlane.xlu0 %723
    %v725 = vsub.f32 %v426, %v679
    %v726 = vsub.f32 %v429, %v682
    %v727 = vsub.f32 %v461, %v685
    %v728 = vsub.f32 %v464, %v688
    %v729 = vsub.f32 %v496, %v691
    %v730 = vsub.f32 %v499, %v694
    %v731 = vsub.f32 %v531, %v697
    %v732 = vsub.f32 %v534, %v700
    %v733 = vsub.f32 %v566, %v703
    %v734 = vsub.f32 %v569, %v706
    %v735 = vsub.f32 %v601, %v709
    %v736 = vsub.f32 %v604, %v712
    %v737 = vsub.f32 %v636, %v715
    %v738 = vsub.f32 %v639, %v718
    %v739 = vsub.f32 %v671, %v721
    %v740 = vsub.f32 %v674, %v724
    %v741 = vmul.f32 %v725, 1.442695
    %v742 = vpow.pop %v741
    %v743 = vmul.f32 %v726, 1.442695
    %v744 = vpow.pop %v743
    %v745 = vmul.f32 %v727, 1.442695
    %v746 = vpow.pop %v745
    %v747 = vmul.f32 %v728, 1.442695
    %v748 = vpow.pop %v747
    %v749 = vmul.f32 %v729, 1.442695
    %v750 = vpow.pop %v749
    %v751 = vmul.f32 %v730, 1.442695
    %v752 = vpow.pop %v751
    %v753 = vmul.f32 %v731, 1.442695
    %v754 = vpow.pop %v753
    %v755 = vmul.f32 %v732, 1.442695
    %v756 = vpow.pop %v755
    %v757 = vmul.f32 %v733, 1.442695
    %v758 = vpow.pop %v757
    %v759 = vmul.f32 %v734, 1.442695
    %v760 = vpow.pop %v759
    %v761 = vmul.f32 %v735, 1.442695
    %v762 = vpow.pop %v761
    %v763 = vmul.f32 %v736, 1.442695
    %v764 = vpow.pop %v763
    %v765 = vmul.f32 %v737, 1.442695
    %v766 = vpow.pop %v765
    %v767 = vmul.f32 %v738, 1.442695
    %v768 = vpow.pop %v767
    %v769 = vmul.f32 %v739, 1.442695
    %v770 = vpow.pop %v769
    %v771 = vmul.f32 %v740, 1.442695
    %v772 = vpow.pop %v771
    %v773 = vsel %vm676, %v742, 0.0
    %774 = vadd.xlane.f32.xlu0 %v773
    %v775 = vpop.xlane.xlu0 %774
    %v776 = vsel %vm676, %v744, 0.0
    %777 = vadd.xlane.f32.xlu0 %v776
    %v778 = vpop.xlane.xlu0 %777
    %v779 = vsel %vm676, %v746, 0.0
    %780 = vadd.xlane.f32.xlu0 %v779
    %v781 = vpop.xlane.xlu0 %780
    %v782 = vsel %vm676, %v748, 0.0
    %783 = vadd.xlane.f32.xlu0 %v782
    %v784 = vpop.xlane.xlu0 %783
    %v785 = vsel %vm676, %v750, 0.0
    %786 = vadd.xlane.f32.xlu0 %v785
    %v787 = vpop.xlane.xlu0 %786
    %v788 = vsel %vm676, %v752, 0.0
    %789 = vadd.xlane.f32.xlu0 %v788
    %v790 = vpop.xlane.xlu0 %789
    %v791 = vsel %vm676, %v754, 0.0
    %792 = vadd.xlane.f32.xlu0 %v791
    %v793 = vpop.xlane.xlu0 %792
    %v794 = vsel %vm676, %v756, 0.0
    %795 = vadd.xlane.f32.xlu0 %v794
    %v796 = vpop.xlane.xlu0 %795
    %v797 = vsel %vm676, %v758, 0.0
    %798 = vadd.xlane.f32.xlu0 %v797
    %v799 = vpop.xlane.xlu0 %798
    %v800 = vsel %vm676, %v760, 0.0
    %801 = vadd.xlane.f32.xlu0 %v800
    %v802 = vpop.xlane.xlu0 %801
    %v803 = vsel %vm676, %v762, 0.0
    %804 = vadd.xlane.f32.xlu0 %v803
    %v805 = vpop.xlane.xlu0 %804
    %v806 = vsel %vm676, %v764, 0.0
    %807 = vadd.xlane.f32.xlu0 %v806
    %v808 = vpop.xlane.xlu0 %807
    %v809 = vsel %vm676, %v766, 0.0
    %810 = vadd.xlane.f32.xlu0 %v809
    %v811 = vpop.xlane.xlu0 %810
    %v812 = vsel %vm676, %v768, 0.0
    %813 = vadd.xlane.f32.xlu0 %v812
    %v814 = vpop.xlane.xlu0 %813
    %v815 = vsel %vm676, %v770, 0.0
    %816 = vadd.xlane.f32.xlu0 %v815
    %v817 = vpop.xlane.xlu0 %816
    %v818 = vsel %vm676, %v772, 0.0
    %819 = vadd.xlane.f32.xlu0 %v818
    %v820 = vpop.xlane.xlu0 %819
    %v821 = vrcp.pop %v775
    %v822 = vrcp.pop %v778
    %v823 = vrcp.pop %v781
    %v824 = vrcp.pop %v784
    %v825 = vrcp.pop %v787
    %v826 = vrcp.pop %v790
    %v827 = vrcp.pop %v793
    %v828 = vrcp.pop %v796
    %v829 = vrcp.pop %v799
    %v830 = vrcp.pop %v802
    %v831 = vrcp.pop %v805
    %v832 = vrcp.pop %v808
    %v833 = vrcp.pop %v811
    %v834 = vrcp.pop %v814
    %v835 = vrcp.pop %v817
    %v836 = vrcp.pop %v820
    %v837 = vmul.f32 %v742, %v821
    %v838 = vmul.f32 %v744, %v822
    %v839 = vmul.f32 %v746, %v823
    %v840 = vmul.f32 %v748, %v824
    %v841 = vmul.f32 %v750, %v825
    %v842 = vmul.f32 %v752, %v826
    %v843 = vmul.f32 %v754, %v827
    %v844 = vmul.f32 %v756, %v828
    %v845 = vmul.f32 %v758, %v829
    %v846 = vmul.f32 %v760, %v830
    %v847 = vmul.f32 %v762, %v831
    %v848 = vmul.f32 %v764, %v832
    %v849 = vmul.f32 %v766, %v833
    %v850 = vmul.f32 %v768, %v834
    %v851 = vmul.f32 %v770, %v835
    %v852 = vmul.f32 %v772, %v836
    %v854 = vsel %vm676, %v837, 0
    %v857 = vsel %vm676, %v838, 0
    %859 = vmatpush.msra.mxu0 0.0
    %860 = vmatpush.msra.mxu0 0.0
    %861 = vmatpush.msra.mxu0 0.0
    %862 = vmatpush.msra.mxu0 0.0
    %863 = vmatpush.msra.mxu0 0.0
    %864 = vmatpush.msra.mxu0 0.0
    %865 = vmatpush.msra.mxu0 0.0
    %866 = vmatpush.msra.mxu0 0.0
    %867 = vmatpush.msra.mxu0 0.0
    %868 = vmatpush.msra.mxu0 0.0
    %869 = vmatpush.msra.mxu0 0.0
    %870 = vmatpush.msra.mxu0 0.0
    %871 = vmatpush.msra.mxu0 0.0
    %872 = vmatpush.msra.mxu0 0.0
    %873 = vmatpush.msra.mxu0 %v351
    %874 = vmatpush.msra.mxu0 %v348
    %875 = vmatmul.f32.gmra.mxu0 %v854
    %v876 = vpop.f32.mrf.mxu0
    %v877 = vadd.f32 0.0, %v876
    %878 = vmatmul.f32.gmra.mxu0 %v857
    %v879 = vpop.f32.mrf.mxu0
    %v880 = vadd.f32 0.0, %v879
    %881 = vdwg.mxu0
    %v883 = vsel %vm676, %v839, 0
    %v886 = vsel %vm676, %v840, 0
    %888 = vmatpush.msra.mxu0 0.0
    %889 = vmatpush.msra.mxu0 0.0
    %890 = vmatpush.msra.mxu0 0.0
    %891 = vmatpush.msra.mxu0 0.0
    %892 = vmatpush.msra.mxu0 0.0
    %893 = vmatpush.msra.mxu0 0.0
    %894 = vmatpush.msra.mxu0 0.0
    %895 = vmatpush.msra.mxu0 0.0
    %896 = vmatpush.msra.mxu0 0.0
    %897 = vmatpush.msra.mxu0 0.0
    %898 = vmatpush.msra.mxu0 0.0
    %899 = vmatpush.msra.mxu0 0.0
    %900 = vmatpush.msra.mxu0 0.0
    %901 = vmatpush.msra.mxu0 0.0
    %902 = vmatpush.msra.mxu0 %v357
    %903 = vmatpush.msra.mxu0 %v354
    %904 = vmatmul.f32.gmra.mxu0 %v883
    %v905 = vpop.f32.mrf.mxu0
    %v906 = vadd.f32 0.0, %v905
    %907 = vmatmul.f32.gmra.mxu0 %v886
    %v908 = vpop.f32.mrf.mxu0
    %v909 = vadd.f32 0.0, %v908
    %910 = vdwg.mxu0
    %v912 = vsel %vm676, %v841, 0
    %v915 = vsel %vm676, %v842, 0
    %917 = vmatpush.msra.mxu0 0.0
    %918 = vmatpush.msra.mxu0 0.0
    %919 = vmatpush.msra.mxu0 0.0
    %920 = vmatpush.msra.mxu0 0.0
    %921 = vmatpush.msra.mxu0 0.0
    %922 = vmatpush.msra.mxu0 0.0
    %923 = vmatpush.msra.mxu0 0.0
    %924 = vmatpush.msra.mxu0 0.0
    %925 = vmatpush.msra.mxu0 0.0
    %926 = vmatpush.msra.mxu0 0.0
    %927 = vmatpush.msra.mxu0 0.0
    %928 = vmatpush.msra.mxu0 0.0
    %929 = vmatpush.msra.mxu0 0.0
    %930 = vmatpush.msra.mxu0 0.0
    %931 = vmatpush.msra.mxu0 %v363
    %932 = vmatpush.msra.mxu0 %v360
    %933 = vmatmul.f32.gmra.mxu0 %v912
    %v934 = vpop.f32.mrf.mxu0
    %v935 = vadd.f32 0.0, %v934
    %936 = vmatmul.f32.gmra.mxu0 %v915
    %v937 = vpop.f32.mrf.mxu0
    %v938 = vadd.f32 0.0, %v937
    %939 = vdwg.mxu0
    %v941 = vsel %vm676, %v843, 0
    %v944 = vsel %vm676, %v844, 0
    %946 = vmatpush.msra.mxu0 0.0
    %947 = vmatpush.msra.mxu0 0.0
    %948 = vmatpush.msra.mxu0 0.0
    %949 = vmatpush.msra.mxu0 0.0
    %950 = vmatpush.msra.mxu0 0.0
    %951 = vmatpush.msra.mxu0 0.0
    %952 = vmatpush.msra.mxu0 0.0
    %953 = vmatpush.msra.mxu0 0.0
    %954 = vmatpush.msra.mxu0 0.0
    %955 = vmatpush.msra.mxu0 0.0
    %956 = vmatpush.msra.mxu0 0.0
    %957 = vmatpush.msra.mxu0 0.0
    %958 = vmatpush.msra.mxu0 0.0
    %959 = vmatpush.msra.mxu0 0.0
    %960 = vmatpush.msra.mxu0 %v369
    %961 = vmatpush.msra.mxu0 %v366
    %962 = vmatmul.f32.gmra.mxu0 %v941
    %v963 = vpop.f32.mrf.mxu0
    %v964 = vadd.f32 0.0, %v963
    %965 = vmatmul.f32.gmra.mxu0 %v944
    %v966 = vpop.f32.mrf.mxu0
    %v967 = vadd.f32 0.0, %v966
    %968 = vdwg.mxu0
    %v970 = vsel %vm676, %v845, 0
    %v973 = vsel %vm676, %v846, 0
    %975 = vmatpush.msra.mxu0 0.0
    %976 = vmatpush.msra.mxu0 0.0
    %977 = vmatpush.msra.mxu0 0.0
    %978 = vmatpush.msra.mxu0 0.0
    %979 = vmatpush.msra.mxu0 0.0
    %980 = vmatpush.msra.mxu0 0.0
    %981 = vmatpush.msra.mxu0 0.0
    %982 = vmatpush.msra.mxu0 0.0
    %983 = vmatpush.msra.mxu0 0.0
    %984 = vmatpush.msra.mxu0 0.0
    %985 = vmatpush.msra.mxu0 0.0
    %986 = vmatpush.msra.mxu0 0.0
    %987 = vmatpush.msra.mxu0 0.0
    %988 = vmatpush.msra.mxu0 0.0
    %989 = vmatpush.msra.mxu0 %v375
    %990 = vmatpush.msra.mxu0 %v372
    %991 = vmatmul.f32.gmra.mxu0 %v970
    %v992 = vpop.f32.mrf.mxu0
    %v993 = vadd.f32 0.0, %v992
    %994 = vmatmul.f32.gmra.mxu0 %v973
    %v995 = vpop.f32.mrf.mxu0
    %v996 = vadd.f32 0.0, %v995
    %997 = vdwg.mxu0
    %v999 = vsel %vm676, %v847, 0
    %v1002 = vsel %vm676, %v848, 0
    %1004 = vmatpush.msra.mxu0 0.0
    %1005 = vmatpush.msra.mxu0 0.0
    %1006 = vmatpush.msra.mxu0 0.0
    %1007 = vmatpush.msra.mxu0 0.0
    %1008 = vmatpush.msra.mxu0 0.0
    %1009 = vmatpush.msra.mxu0 0.0
    %1010 = vmatpush.msra.mxu0 0.0
    %1011 = vmatpush.msra.mxu0 0.0
    %1012 = vmatpush.msra.mxu0 0.0
    %1013 = vmatpush.msra.mxu0 0.0
    %1014 = vmatpush.msra.mxu0 0.0
    %1015 = vmatpush.msra.mxu0 0.0
    %1016 = vmatpush.msra.mxu0 0.0
    %1017 = vmatpush.msra.mxu0 0.0
    %1018 = vmatpush.msra.mxu0 %v381
    %1019 = vmatpush.msra.mxu0 %v378
    %1020 = vmatmul.f32.gmra.mxu0 %v999
    %v1021 = vpop.f32.mrf.mxu0
    %v1022 = vadd.f32 0.0, %v1021
    %1023 = vmatmul.f32.gmra.mxu0 %v1002
    %v1024 = vpop.f32.mrf.mxu0
    %v1025 = vadd.f32 0.0, %v1024
    %1026 = vdwg.mxu0
    %v1028 = vsel %vm676, %v849, 0
    %v1031 = vsel %vm676, %v850, 0
    %1033 = vmatpush.msra.mxu0 0.0
    %1034 = vmatpush.msra.mxu0 0.0
    %1035 = vmatpush.msra.mxu0 0.0
    %1036 = vmatpush.msra.mxu0 0.0
    %1037 = vmatpush.msra.mxu0 0.0
    %1038 = vmatpush.msra.mxu0 0.0
    %1039 = vmatpush.msra.mxu0 0.0
    %1040 = vmatpush.msra.mxu0 0.0
    %1041 = vmatpush.msra.mxu0 0.0
    %1042 = vmatpush.msra.mxu0 0.0
    %1043 = vmatpush.msra.mxu0 0.0
    %1044 = vmatpush.msra.mxu0 0.0
    %1045 = vmatpush.msra.mxu0 0.0
    %1046 = vmatpush.msra.mxu0 0.0
    %1047 = vmatpush.msra.mxu0 %v387
    %1048 = vmatpush.msra.mxu0 %v384
    %1049 = vmatmul.f32.gmra.mxu0 %v1028
    %v1050 = vpop.f32.mrf.mxu0
    %v1051 = vadd.f32 0.0, %v1050
    %1052 = vmatmul.f32.gmra.mxu0 %v1031
    %v1053 = vpop.f32.mrf.mxu0
    %v1054 = vadd.f32 0.0, %v1053
    %1055 = vdwg.mxu0
    %v1057 = vsel %vm676, %v851, 0
    %v1060 = vsel %vm676, %v852, 0
    %1062 = vmatpush.msra.mxu0 0.0
    %1063 = vmatpush.msra.mxu0 0.0
    %1064 = vmatpush.msra.mxu0 0.0
    %1065 = vmatpush.msra.mxu0 0.0
    %1066 = vmatpush.msra.mxu0 0.0
    %1067 = vmatpush.msra.mxu0 0.0
    %1068 = vmatpush.msra.mxu0 0.0
    %1069 = vmatpush.msra.mxu0 0.0
    %1070 = vmatpush.msra.mxu0 0.0
    %1071 = vmatpush.msra.mxu0 0.0
    %1072 = vmatpush.msra.mxu0 0.0
    %1073 = vmatpush.msra.mxu0 0.0
    %1074 = vmatpush.msra.mxu0 0.0
    %1075 = vmatpush.msra.mxu0 0.0
    %1076 = vmatpush.msra.mxu0 %v393
    %1077 = vmatpush.msra.mxu0 %v390
    %1078 = vmatmul.f32.gmra.mxu0 %v1057
    %v1079 = vpop.f32.mrf.mxu0
    %v1080 = vadd.f32 0.0, %v1079
    %1081 = vmatmul.f32.gmra.mxu0 %v1060
    %v1082 = vpop.f32.mrf.mxu0
    %v1083 = vadd.f32 0.0, %v1082
    %1084 = vdwg.mxu0
    %1085 = vst.msk [vmem:[#allocation2] sm:$0xff] %vm395, %v877
    %1086 = vst.msk [vmem:[#allocation2 + $0x8] sm:$0xff] %vm395, %v880
    %1087 = vst.msk [vmem:[#allocation2 + $0x10] sm:$0xff] %vm395, %v906
    %1088 = vst.msk [vmem:[#allocation2 + $0x18] sm:$0xff] %vm395, %v909
    %1089 = vst.msk [vmem:[#allocation2 + $0x20] sm:$0xff] %vm395, %v935
    %1090 = vst.msk [vmem:[#allocation2 + $0x28] sm:$0xff] %vm395, %v938
    %1091 = vst.msk [vmem:[#allocation2 + $0x30] sm:$0xff] %vm395, %v964
    %1092 = vst.msk [vmem:[#allocation2 + $0x38] sm:$0xff] %vm395, %v967
    %1093 = vst.msk [vmem:[#allocation2 + $0x40] sm:$0xff] %vm395, %v993
    %1094 = vst.msk [vmem:[#allocation2 + $0x48] sm:$0xff] %vm395, %v996
    %1095 = vst.msk [vmem:[#allocation2 + $0x50] sm:$0xff] %vm395, %v1022
    %1096 = vst.msk [vmem:[#allocation2 + $0x58] sm:$0xff] %vm395, %v1025
    %1097 = vst.msk [vmem:[#allocation2 + $0x60] sm:$0xff] %vm395, %v1051
    %1098 = vst.msk [vmem:[#allocation2 + $0x68] sm:$0xff] %vm395, %v1054
    %1099 = vst.msk [vmem:[#allocation2 + $0x70] sm:$0xff] %vm395, %v1080
    %1100 = vst.msk [vmem:[#allocation2 + $0x78] sm:$0xff] %vm395, %v1083
    %1101 = vrot.lane.b32.xlu0 %v202, 120
    %v1102 = vpop.permute.xlu0 %1101
    %1103 = vrot.lane.b32.xlu0 %v205, 120
    %v1104 = vpop.permute.xlu0 %1103
    %1105 = vrot.lane.b32.xlu0 %v275, 120
    %v1106 = vpop.permute.xlu0 %1105
    %1107 = vrot.lane.b32.xlu0 %v278, 120
    %v1108 = vpop.permute.xlu0 %1107
    %v1109 = vsel %vm395, %v1102, 0
    %v1111 = vsel %vm395, %v1104, 0
    %v1113 = vsel %vm395, %v1106, 0
    %v1115 = vsel %vm395, %v1108, 0
    %1117 = vmatpush.xpose.msra.mxu0 0.0
    %1118 = vmatpush.xpose.msra.mxu0 0.0
    %1119 = vmatpush.xpose.msra.mxu0 0.0
    %1120 = vmatpush.xpose.msra.mxu0 0.0
    %1121 = vmatpush.xpose.msra.mxu0 0.0
    %1122 = vmatpush.xpose.msra.mxu0 0.0
    %1123 = vmatpush.xpose.msra.mxu0 0.0
    %1124 = vmatpush.xpose.msra.mxu0 0.0
    %1125 = vmatpush.xpose.msra.mxu0 0.0
    %1126 = vmatpush.xpose.msra.mxu0 0.0
    %1127 = vmatpush.xpose.msra.mxu0 0.0
    %1128 = vmatpush.xpose.msra.mxu0 0.0
    %1129 = vmatpush.xpose.msra.mxu0 0.0
    %1130 = vmatpush.xpose.msra.mxu0 0.0
    %1131 = vmatpush.xpose.msra.mxu0 %v1115
    %1132 = vmatpush.xpose.msra.mxu0 %v1113
    %1133 = vmatmul.f32.gmra.mxu0 %v1109
    %v1134 = vpop.f32.mrf.mxu0
    %v1135 = vadd.f32 0.0, %v1134
    %1136 = vmatmul.f32.gmra.mxu0 %v1111
    %v1137 = vpop.f32.mrf.mxu0
    %v1138 = vadd.f32 0.0, %v1137
    %1139 = vdwg.mxu0
    %1140 = vrot.lane.b32.xlu0 %v208, 120
    %v1141 = vpop.permute.xlu0 %1140
    %1142 = vrot.lane.b32.xlu0 %v211, 120
    %v1143 = vpop.permute.xlu0 %1142
    %1144 = vrot.lane.b32.xlu0 %v281, 120
    %v1145 = vpop.permute.xlu0 %1144
    %1146 = vrot.lane.b32.xlu0 %v284, 120
    %v1147 = vpop.permute.xlu0 %1146
    %v1148 = vsel %vm395, %v1141, 0
    %v1150 = vsel %vm395, %v1143, 0
    %v1152 = vsel %vm395, %v1145, 0
    %v1154 = vsel %vm395, %v1147, 0
    %1156 = vmatpush.xpose.msra.mxu0 0.0
    %1157 = vmatpush.xpose.msra.mxu0 0.0
    %1158 = vmatpush.xpose.msra.mxu0 0.0
    %1159 = vmatpush.xpose.msra.mxu0 0.0
    %1160 = vmatpush.xpose.msra.mxu0 0.0
    %1161 = vmatpush.xpose.msra.mxu0 0.0
    %1162 = vmatpush.xpose.msra.mxu0 0.0
    %1163 = vmatpush.xpose.msra.mxu0 0.0
    %1164 = vmatpush.xpose.msra.mxu0 0.0
    %1165 = vmatpush.xpose.msra.mxu0 0.0
    %1166 = vmatpush.xpose.msra.mxu0 0.0
    %1167 = vmatpush.xpose.msra.mxu0 0.0
    %1168 = vmatpush.xpose.msra.mxu0 0.0
    %1169 = vmatpush.xpose.msra.mxu0 0.0
    %1170 = vmatpush.xpose.msra.mxu0 %v1154
    %1171 = vmatpush.xpose.msra.mxu0 %v1152
    %1172 = vmatmul.f32.gmra.mxu0 %v1148
    %v1173 = vpop.f32.mrf.mxu0
    %v1174 = vadd.f32 0.0, %v1173
    %1175 = vmatmul.f32.gmra.mxu0 %v1150
    %v1176 = vpop.f32.mrf.mxu0
    %v1177 = vadd.f32 0.0, %v1176
    %1178 = vdwg.mxu0
    %1179 = vrot.lane.b32.xlu0 %v214, 120
    %v1180 = vpop.permute.xlu0 %1179
    %1181 = vrot.lane.b32.xlu0 %v217, 120
    %v1182 = vpop.permute.xlu0 %1181
    %1183 = vrot.lane.b32.xlu0 %v287, 120
    %v1184 = vpop.permute.xlu0 %1183
    %1185 = vrot.lane.b32.xlu0 %v290, 120
    %v1186 = vpop.permute.xlu0 %1185
    %v1187 = vsel %vm395, %v1180, 0
    %v1189 = vsel %vm395, %v1182, 0
    %v1191 = vsel %vm395, %v1184, 0
    %v1193 = vsel %vm395, %v1186, 0
    %1195 = vmatpush.xpose.msra.mxu0 0.0
    %1196 = vmatpush.xpose.msra.mxu0 0.0
    %1197 = vmatpush.xpose.msra.mxu0 0.0
    %1198 = vmatpush.xpose.msra.mxu0 0.0
    %1199 = vmatpush.xpose.msra.mxu0 0.0
    %1200 = vmatpush.xpose.msra.mxu0 0.0
    %1201 = vmatpush.xpose.msra.mxu0 0.0
    %1202 = vmatpush.xpose.msra.mxu0 0.0
    %1203 = vmatpush.xpose.msra.mxu0 0.0
    %1204 = vmatpush.xpose.msra.mxu0 0.0
    %1205 = vmatpush.xpose.msra.mxu0 0.0
    %1206 = vmatpush.xpose.msra.mxu0 0.0
    %1207 = vmatpush.xpose.msra.mxu0 0.0
    %1208 = vmatpush.xpose.msra.mxu0 0.0
    %1209 = vmatpush.xpose.msra.mxu0 %v1193
    %1210 = vmatpush.xpose.msra.mxu0 %v1191
    %1211 = vmatmul.f32.gmra.mxu0 %v1187
    %v1212 = vpop.f32.mrf.mxu0
    %v1213 = vadd.f32 0.0, %v1212
    %1214 = vmatmul.f32.gmra.mxu0 %v1189
    %v1215 = vpop.f32.mrf.mxu0
    %v1216 = vadd.f32 0.0, %v1215
    %1217 = vdwg.mxu0
    %1218 = vrot.lane.b32.xlu0 %v220, 120
    %v1219 = vpop.permute.xlu0 %1218
    %1220 = vrot.lane.b32.xlu0 %v223, 120
    %v1221 = vpop.permute.xlu0 %1220
    %1222 = vrot.lane.b32.xlu0 %v293, 120
    %v1223 = vpop.permute.xlu0 %1222
    %1224 = vrot.lane.b32.xlu0 %v296, 120
    %v1225 = vpop.permute.xlu0 %1224
    %v1226 = vsel %vm395, %v1219, 0
    %v1228 = vsel %vm395, %v1221, 0
    %v1230 = vsel %vm395, %v1223, 0
    %v1232 = vsel %vm395, %v1225, 0
    %1234 = vmatpush.xpose.msra.mxu0 0.0
    %1235 = vmatpush.xpose.msra.mxu0 0.0
    %1236 = vmatpush.xpose.msra.mxu0 0.0
    %1237 = vmatpush.xpose.msra.mxu0 0.0
    %1238 = vmatpush.xpose.msra.mxu0 0.0
    %1239 = vmatpush.xpose.msra.mxu0 0.0
    %1240 = vmatpush.xpose.msra.mxu0 0.0
    %1241 = vmatpush.xpose.msra.mxu0 0.0
    %1242 = vmatpush.xpose.msra.mxu0 0.0
    %1243 = vmatpush.xpose.msra.mxu0 0.0
    %1244 = vmatpush.xpose.msra.mxu0 0.0
    %1245 = vmatpush.xpose.msra.mxu0 0.0
    %1246 = vmatpush.xpose.msra.mxu0 0.0
    %1247 = vmatpush.xpose.msra.mxu0 0.0
    %1248 = vmatpush.xpose.msra.mxu0 %v1232
    %1249 = vmatpush.xpose.msra.mxu0 %v1230
    %1250 = vmatmul.f32.gmra.mxu0 %v1226
    %v1251 = vpop.f32.mrf.mxu0
    %v1252 = vadd.f32 0.0, %v1251
    %1253 = vmatmul.f32.gmra.mxu0 %v1228
    %v1254 = vpop.f32.mrf.mxu0
    %v1255 = vadd.f32 0.0, %v1254
    %1256 = vdwg.mxu0
    %1257 = vrot.lane.b32.xlu0 %v226, 120
    %v1258 = vpop.permute.xlu0 %1257
    %1259 = vrot.lane.b32.xlu0 %v229, 120
    %v1260 = vpop.permute.xlu0 %1259
    %1261 = vrot.lane.b32.xlu0 %v299, 120
    %v1262 = vpop.permute.xlu0 %1261
    %1263 = vrot.lane.b32.xlu0 %v302, 120
    %v1264 = vpop.permute.xlu0 %1263
    %v1265 = vsel %vm395, %v1258, 0
    %v1267 = vsel %vm395, %v1260, 0
    %v1269 = vsel %vm395, %v1262, 0
    %v1271 = vsel %vm395, %v1264, 0
    %1273 = vmatpush.xpose.msra.mxu0 0.0
    %1274 = vmatpush.xpose.msra.mxu0 0.0
    %1275 = vmatpush.xpose.msra.mxu0 0.0
    %1276 = vmatpush.xpose.msra.mxu0 0.0
    %1277 = vmatpush.xpose.msra.mxu0 0.0
    %1278 = vmatpush.xpose.msra.mxu0 0.0
    %1279 = vmatpush.xpose.msra.mxu0 0.0
    %1280 = vmatpush.xpose.msra.mxu0 0.0
    %1281 = vmatpush.xpose.msra.mxu0 0.0
    %1282 = vmatpush.xpose.msra.mxu0 0.0
    %1283 = vmatpush.xpose.msra.mxu0 0.0
    %1284 = vmatpush.xpose.msra.mxu0 0.0
    %1285 = vmatpush.xpose.msra.mxu0 0.0
    %1286 = vmatpush.xpose.msra.mxu0 0.0
    %1287 = vmatpush.xpose.msra.mxu0 %v1271
    %1288 = vmatpush.xpose.msra.mxu0 %v1269
    %1289 = vmatmul.f32.gmra.mxu0 %v1265
    %v1290 = vpop.f32.mrf.mxu0
    %v1291 = vadd.f32 0.0, %v1290
    %1292 = vmatmul.f32.gmra.mxu0 %v1267
    %v1293 = vpop.f32.mrf.mxu0
    %v1294 = vadd.f32 0.0, %v1293
    %1295 = vdwg.mxu0
    %1296 = vrot.lane.b32.xlu0 %v232, 120
    %v1297 = vpop.permute.xlu0 %1296
    %1298 = vrot.lane.b32.xlu0 %v235, 120
    %v1299 = vpop.permute.xlu0 %1298
    %1300 = vrot.lane.b32.xlu0 %v305, 120
    %v1301 = vpop.permute.xlu0 %1300
    %1302 = vrot.lane.b32.xlu0 %v308, 120
    %v1303 = vpop.permute.xlu0 %1302
    %v1304 = vsel %vm395, %v1297, 0
    %v1306 = vsel %vm395, %v1299, 0
    %v1308 = vsel %vm395, %v1301, 0
    %v1310 = vsel %vm395, %v1303, 0
    %1312 = vmatpush.xpose.msra.mxu0 0.0
    %1313 = vmatpush.xpose.msra.mxu0 0.0
    %1314 = vmatpush.xpose.msra.mxu0 0.0
    %1315 = vmatpush.xpose.msra.mxu0 0.0
    %1316 = vmatpush.xpose.msra.mxu0 0.0
    %1317 = vmatpush.xpose.msra.mxu0 0.0
    %1318 = vmatpush.xpose.msra.mxu0 0.0
    %1319 = vmatpush.xpose.msra.mxu0 0.0
    %1320 = vmatpush.xpose.msra.mxu0 0.0
    %1321 = vmatpush.xpose.msra.mxu0 0.0
    %1322 = vmatpush.xpose.msra.mxu0 0.0
    %1323 = vmatpush.xpose.msra.mxu0 0.0
    %1324 = vmatpush.xpose.msra.mxu0 0.0
    %1325 = vmatpush.xpose.msra.mxu0 0.0
    %1326 = vmatpush.xpose.msra.mxu0 %v1310
    %1327 = vmatpush.xpose.msra.mxu0 %v1308
    %1328 = vmatmul.f32.gmra.mxu0 %v1304
    %v1329 = vpop.f32.mrf.mxu0
    %v1330 = vadd.f32 0.0, %v1329
    %1331 = vmatmul.f32.gmra.mxu0 %v1306
    %v1332 = vpop.f32.mrf.mxu0
    %v1333 = vadd.f32 0.0, %v1332
    %1334 = vdwg.mxu0
    %1335 = vrot.lane.b32.xlu0 %v238, 120
    %v1336 = vpop.permute.xlu0 %1335
    %1337 = vrot.lane.b32.xlu0 %v241, 120
    %v1338 = vpop.permute.xlu0 %1337
    %1339 = vrot.lane.b32.xlu0 %v311, 120
    %v1340 = vpop.permute.xlu0 %1339
    %1341 = vrot.lane.b32.xlu0 %v314, 120
    %v1342 = vpop.permute.xlu0 %1341
    %v1343 = vsel %vm395, %v1336, 0
    %v1345 = vsel %vm395, %v1338, 0
    %v1347 = vsel %vm395, %v1340, 0
    %v1349 = vsel %vm395, %v1342, 0
    %1351 = vmatpush.xpose.msra.mxu0 0.0
    %1352 = vmatpush.xpose.msra.mxu0 0.0
    %1353 = vmatpush.xpose.msra.mxu0 0.0
    %1354 = vmatpush.xpose.msra.mxu0 0.0
    %1355 = vmatpush.xpose.msra.mxu0 0.0
    %1356 = vmatpush.xpose.msra.mxu0 0.0
    %1357 = vmatpush.xpose.msra.mxu0 0.0
    %1358 = vmatpush.xpose.msra.mxu0 0.0
    %1359 = vmatpush.xpose.msra.mxu0 0.0
    %1360 = vmatpush.xpose.msra.mxu0 0.0
    %1361 = vmatpush.xpose.msra.mxu0 0.0
    %1362 = vmatpush.xpose.msra.mxu0 0.0
    %1363 = vmatpush.xpose.msra.mxu0 0.0
    %1364 = vmatpush.xpose.msra.mxu0 0.0
    %1365 = vmatpush.xpose.msra.mxu0 %v1349
    %1366 = vmatpush.xpose.msra.mxu0 %v1347
    %1367 = vmatmul.f32.gmra.mxu0 %v1343
    %v1368 = vpop.f32.mrf.mxu0
    %v1369 = vadd.f32 0.0, %v1368
    %1370 = vmatmul.f32.gmra.mxu0 %v1345
    %v1371 = vpop.f32.mrf.mxu0
    %v1372 = vadd.f32 0.0, %v1371
    %1373 = vdwg.mxu0
    %1374 = vrot.lane.b32.xlu0 %v244, 120
    %v1375 = vpop.permute.xlu0 %1374
    %1376 = vrot.lane.b32.xlu0 %v247, 120
    %v1377 = vpop.permute.xlu0 %1376
    %1378 = vrot.lane.b32.xlu0 %v317, 120
    %v1379 = vpop.permute.xlu0 %1378
    %1380 = vrot.lane.b32.xlu0 %v320, 120
    %v1381 = vpop.permute.xlu0 %1380
    %v1382 = vsel %vm395, %v1375, 0
    %v1384 = vsel %vm395, %v1377, 0
    %v1386 = vsel %vm395, %v1379, 0
    %v1388 = vsel %vm395, %v1381, 0
    %1390 = vmatpush.xpose.msra.mxu0 0.0
    %1391 = vmatpush.xpose.msra.mxu0 0.0
    %1392 = vmatpush.xpose.msra.mxu0 0.0
    %1393 = vmatpush.xpose.msra.mxu0 0.0
    %1394 = vmatpush.xpose.msra.mxu0 0.0
    %1395 = vmatpush.xpose.msra.mxu0 0.0
    %1396 = vmatpush.xpose.msra.mxu0 0.0
    %1397 = vmatpush.xpose.msra.mxu0 0.0
    %1398 = vmatpush.xpose.msra.mxu0 0.0
    %1399 = vmatpush.xpose.msra.mxu0 0.0
    %1400 = vmatpush.xpose.msra.mxu0 0.0
    %1401 = vmatpush.xpose.msra.mxu0 0.0
    %1402 = vmatpush.xpose.msra.mxu0 0.0
    %1403 = vmatpush.xpose.msra.mxu0 0.0
    %1404 = vmatpush.xpose.msra.mxu0 %v1388
    %1405 = vmatpush.xpose.msra.mxu0 %v1386
    %1406 = vmatmul.f32.gmra.mxu0 %v1382
    %v1407 = vpop.f32.mrf.mxu0
    %v1408 = vadd.f32 0.0, %v1407
    %1409 = vmatmul.f32.gmra.mxu0 %v1384
    %v1410 = vpop.f32.mrf.mxu0
    %v1411 = vadd.f32 0.0, %v1410
    %1412 = vdwg.mxu0
    %v1413 = vsel %vm676, %v1135, -inf
    %1414 = vmax.xlane.f32.xlu0 %v1413
    %v1415 = vpop.xlane.xlu0 %1414
    %v1416 = vsel %vm676, %v1138, -inf
    %1417 = vmax.xlane.f32.xlu0 %v1416
    %v1418 = vpop.xlane.xlu0 %1417
    %v1419 = vsel %vm676, %v1174, -inf
    %1420 = vmax.xlane.f32.xlu0 %v1419
    %v1421 = vpop.xlane.xlu0 %1420
    %v1422 = vsel %vm676, %v1177, -inf
    %1423 = vmax.xlane.f32.xlu0 %v1422
    %v1424 = vpop.xlane.xlu0 %1423
    %v1425 = vsel %vm676, %v1213, -inf
    %1426 = vmax.xlane.f32.xlu0 %v1425
    %v1427 = vpop.xlane.xlu0 %1426
    %v1428 = vsel %vm676, %v1216, -inf
    %1429 = vmax.xlane.f32.xlu0 %v1428
    %v1430 = vpop.xlane.xlu0 %1429
    %v1431 = vsel %vm676, %v1252, -inf
    %1432 = vmax.xlane.f32.xlu0 %v1431
    %v1433 = vpop.xlane.xlu0 %1432
    %v1434 = vsel %vm676, %v1255, -inf
    %1435 = vmax.xlane.f32.xlu0 %v1434
    %v1436 = vpop.xlane.xlu0 %1435
    %v1437 = vsel %vm676, %v1291, -inf
    %1438 = vmax.xlane.f32.xlu0 %v1437
    %v1439 = vpop.xlane.xlu0 %1438
    %v1440 = vsel %vm676, %v1294, -inf
    %1441 = vmax.xlane.f32.xlu0 %v1440
    %v1442 = vpop.xlane.xlu0 %1441
    %v1443 = vsel %vm676, %v1330, -inf
    %1444 = vmax.xlane.f32.xlu0 %v1443
    %v1445 = vpop.xlane.xlu0 %1444
    %v1446 = vsel %vm676, %v1333, -inf
    %1447 = vmax.xlane.f32.xlu0 %v1446
    %v1448 = vpop.xlane.xlu0 %1447
    %v1449 = vsel %vm676, %v1369, -inf
    %1450 = vmax.xlane.f32.xlu0 %v1449
    %v1451 = vpop.xlane.xlu0 %1450
    %v1452 = vsel %vm676, %v1372, -inf
    %1453 = vmax.xlane.f32.xlu0 %v1452
    %v1454 = vpop.xlane.xlu0 %1453
    %v1455 = vsel %vm676, %v1408, -inf
    %1456 = vmax.xlane.f32.xlu0 %v1455
    %v1457 = vpop.xlane.xlu0 %1456
    %v1458 = vsel %vm676, %v1411, -inf
    %1459 = vmax.xlane.f32.xlu0 %v1458
    %v1460 = vpop.xlane.xlu0 %1459
    %v1461 = vsub.f32 %v1135, %v1415
    %v1462 = vsub.f32 %v1138, %v1418
    %v1463 = vsub.f32 %v1174, %v1421
    %v1464 = vsub.f32 %v1177, %v1424
    %v1465 = vsub.f32 %v1213, %v1427
    %v1466 = vsub.f32 %v1216, %v1430
    %v1467 = vsub.f32 %v1252, %v1433
    %v1468 = vsub.f32 %v1255, %v1436
    %v1469 = vsub.f32 %v1291, %v1439
    %v1470 = vsub.f32 %v1294, %v1442
    %v1471 = vsub.f32 %v1330, %v1445
    %v1472 = vsub.f32 %v1333, %v1448
    %v1473 = vsub.f32 %v1369, %v1451
    %v1474 = vsub.f32 %v1372, %v1454
    %v1475 = vsub.f32 %v1408, %v1457
    %v1476 = vsub.f32 %v1411, %v1460
    %v1477 = vmul.f32 %v1461, 1.442695
    %v1478 = vpow.pop %v1477
    %v1479 = vmul.f32 %v1462, 1.442695
    %v1480 = vpow.pop %v1479
    %v1481 = vmul.f32 %v1463, 1.442695
    %v1482 = vpow.pop %v1481
    %v1483 = vmul.f32 %v1464, 1.442695
    %v1484 = vpow.pop %v1483
    %v1485 = vmul.f32 %v1465, 1.442695
    %v1486 = vpow.pop %v1485
    %v1487 = vmul.f32 %v1466, 1.442695
    %v1488 = vpow.pop %v1487
    %v1489 = vmul.f32 %v1467, 1.442695
    %v1490 = vpow.pop %v1489
    %v1491 = vmul.f32 %v1468, 1.442695
    %v1492 = vpow.pop %v1491
    %v1493 = vmul.f32 %v1469, 1.442695
    %v1494 = vpow.pop %v1493
    %v1495 = vmul.f32 %v1470, 1.442695
    %v1496 = vpow.pop %v1495
    %v1497 = vmul.f32 %v1471, 1.442695
    %v1498 = vpow.pop %v1497
    %v1499 = vmul.f32 %v1472, 1.442695
    %v1500 = vpow.pop %v1499
    %v1501 = vmul.f32 %v1473, 1.442695
    %v1502 = vpow.pop %v1501
    %v1503 = vmul.f32 %v1474, 1.442695
    %v1504 = vpow.pop %v1503
    %v1505 = vmul.f32 %v1475, 1.442695
    %v1506 = vpow.pop %v1505
    %v1507 = vmul.f32 %v1476, 1.442695
    %v1508 = vpow.pop %v1507
    %v1509 = vsel %vm676, %v1478, 0.0
    %1510 = vadd.xlane.f32.xlu0 %v1509
    %v1511 = vpop.xlane.xlu0 %1510
    %v1512 = vsel %vm676, %v1480, 0.0
    %1513 = vadd.xlane.f32.xlu0 %v1512
    %v1514 = vpop.xlane.xlu0 %1513
    %v1515 = vsel %vm676, %v1482, 0.0
    %1516 = vadd.xlane.f32.xlu0 %v1515
    %v1517 = vpop.xlane.xlu0 %1516
    %v1518 = vsel %vm676, %v1484, 0.0
    %1519 = vadd.xlane.f32.xlu0 %v1518
    %v1520 = vpop.xlane.xlu0 %1519
    %v1521 = vsel %vm676, %v1486, 0.0
    %1522 = vadd.xlane.f32.xlu0 %v1521
    %v1523 = vpop.xlane.xlu0 %1522
    %v1524 = vsel %vm676, %v1488, 0.0
    %1525 = vadd.xlane.f32.xlu0 %v1524
    %v1526 = vpop.xlane.xlu0 %1525
    %v1527 = vsel %vm676, %v1490, 0.0
    %1528 = vadd.xlane.f32.xlu0 %v1527
    %v1529 = vpop.xlane.xlu0 %1528
    %v1530 = vsel %vm676, %v1492, 0.0
    %1531 = vadd.xlane.f32.xlu0 %v1530
    %v1532 = vpop.xlane.xlu0 %1531
    %v1533 = vsel %vm676, %v1494, 0.0
    %1534 = vadd.xlane.f32.xlu0 %v1533
    %v1535 = vpop.xlane.xlu0 %1534
    %v1536 = vsel %vm676, %v1496, 0.0
    %1537 = vadd.xlane.f32.xlu0 %v1536
    %v1538 = vpop.xlane.xlu0 %1537
    %v1539 = vsel %vm676, %v1498, 0.0
    %1540 = vadd.xlane.f32.xlu0 %v1539
    %v1541 = vpop.xlane.xlu0 %1540
    %v1542 = vsel %vm676, %v1500, 0.0
    %1543 = vadd.xlane.f32.xlu0 %v1542
    %v1544 = vpop.xlane.xlu0 %1543
    %v1545 = vsel %vm676, %v1502, 0.0
    %1546 = vadd.xlane.f32.xlu0 %v1545
    %v1547 = vpop.xlane.xlu0 %1546
    %v1548 = vsel %vm676, %v1504, 0.0
    %1549 = vadd.xlane.f32.xlu0 %v1548
    %v1550 = vpop.xlane.xlu0 %1549
    %v1551 = vsel %vm676, %v1506, 0.0
    %1552 = vadd.xlane.f32.xlu0 %v1551
    %v1553 = vpop.xlane.xlu0 %1552
    %v1554 = vsel %vm676, %v1508, 0.0
    %1555 = vadd.xlane.f32.xlu0 %v1554
    %v1556 = vpop.xlane.xlu0 %1555
    %v1557 = vrcp.pop %v1511
    %v1558 = vrcp.pop %v1514
    %v1559 = vrcp.pop %v1517
    %v1560 = vrcp.pop %v1520
    %v1561 = vrcp.pop %v1523
    %v1562 = vrcp.pop %v1526
    %v1563 = vrcp.pop %v1529
    %v1564 = vrcp.pop %v1532
    %v1565 = vrcp.pop %v1535
    %v1566 = vrcp.pop %v1538
    %v1567 = vrcp.pop %v1541
    %v1568 = vrcp.pop %v1544
    %v1569 = vrcp.pop %v1547
    %v1570 = vrcp.pop %v1550
    %v1571 = vrcp.pop %v1553
    %v1572 = vrcp.pop %v1556
    %v1573 = vmul.f32 %v1478, %v1557
    %v1574 = vmul.f32 %v1480, %v1558
    %v1575 = vmul.f32 %v1482, %v1559
    %v1576 = vmul.f32 %v1484, %v1560
    %v1577 = vmul.f32 %v1486, %v1561
    %v1578 = vmul.f32 %v1488, %v1562
    %v1579 = vmul.f32 %v1490, %v1563
    %v1580 = vmul.f32 %v1492, %v1564
    %v1581 = vmul.f32 %v1494, %v1565
    %v1582 = vmul.f32 %v1496, %v1566
    %v1583 = vmul.f32 %v1498, %v1567
    %v1584 = vmul.f32 %v1500, %v1568
    %v1585 = vmul.f32 %v1502, %v1569
    %v1586 = vmul.f32 %v1504, %v1570
    %v1587 = vmul.f32 %v1506, %v1571
    %v1588 = vmul.f32 %v1508, %v1572
    %1591 = vrot.lane.b32.xlu0 %v348, 120
    %v1592 = vpop.permute.xlu0 %1591
    %1593 = vrot.lane.b32.xlu0 %v351, 120
    %v1594 = vpop.permute.xlu0 %1593
    %v1598 = vsel %vm676, %v1573, 0
    %v1601 = vsel %vm676, %v1574, 0
    %1603 = vmatpush.msra.mxu0 0.0
    %1604 = vmatpush.msra.mxu0 0.0
    %1605 = vmatpush.msra.mxu0 0.0
    %1606 = vmatpush.msra.mxu0 0.0
    %1607 = vmatpush.msra.mxu0 0.0
    %1608 = vmatpush.msra.mxu0 0.0
    %1609 = vmatpush.msra.mxu0 0.0
    %1610 = vmatpush.msra.mxu0 0.0
    %1611 = vmatpush.msra.mxu0 0.0
    %1612 = vmatpush.msra.mxu0 0.0
    %1613 = vmatpush.msra.mxu0 0.0
    %1614 = vmatpush.msra.mxu0 0.0
    %1615 = vmatpush.msra.mxu0 0.0
    %1616 = vmatpush.msra.mxu0 0.0
    %1617 = vmatpush.msra.mxu0 %v1594
    %1618 = vmatpush.msra.mxu0 %v1592
    %1619 = vmatmul.f32.gmra.mxu0 %v1598
    %v1620 = vpop.f32.mrf.mxu0
    %v1621 = vadd.f32 0.0, %v1620
    %1622 = vmatmul.f32.gmra.mxu0 %v1601
    %v1623 = vpop.f32.mrf.mxu0
    %v1624 = vadd.f32 0.0, %v1623
    %1625 = vdwg.mxu0
    %1628 = vrot.lane.b32.xlu0 %v354, 120
    %v1629 = vpop.permute.xlu0 %1628
    %1630 = vrot.lane.b32.xlu0 %v357, 120
    %v1631 = vpop.permute.xlu0 %1630
    %v1635 = vsel %vm676, %v1575, 0
    %v1638 = vsel %vm676, %v1576, 0
    %1640 = vmatpush.msra.mxu0 0.0
    %1641 = vmatpush.msra.mxu0 0.0
    %1642 = vmatpush.msra.mxu0 0.0
    %1643 = vmatpush.msra.mxu0 0.0
    %1644 = vmatpush.msra.mxu0 0.0
    %1645 = vmatpush.msra.mxu0 0.0
    %1646 = vmatpush.msra.mxu0 0.0
    %1647 = vmatpush.msra.mxu0 0.0
    %1648 = vmatpush.msra.mxu0 0.0
    %1649 = vmatpush.msra.mxu0 0.0
    %1650 = vmatpush.msra.mxu0 0.0
    %1651 = vmatpush.msra.mxu0 0.0
    %1652 = vmatpush.msra.mxu0 0.0
    %1653 = vmatpush.msra.mxu0 0.0
    %1654 = vmatpush.msra.mxu0 %v1631
    %1655 = vmatpush.msra.mxu0 %v1629
    %1656 = vmatmul.f32.gmra.mxu0 %v1635
    %v1657 = vpop.f32.mrf.mxu0
    %v1658 = vadd.f32 0.0, %v1657
    %1659 = vmatmul.f32.gmra.mxu0 %v1638
    %v1660 = vpop.f32.mrf.mxu0
    %v1661 = vadd.f32 0.0, %v1660
    %1662 = vdwg.mxu0
    %1665 = vrot.lane.b32.xlu0 %v360, 120
    %v1666 = vpop.permute.xlu0 %1665
    %1667 = vrot.lane.b32.xlu0 %v363, 120
    %v1668 = vpop.permute.xlu0 %1667
    %v1672 = vsel %vm676, %v1577, 0
    %v1675 = vsel %vm676, %v1578, 0
    %1677 = vmatpush.msra.mxu0 0.0
    %1678 = vmatpush.msra.mxu0 0.0
    %1679 = vmatpush.msra.mxu0 0.0
    %1680 = vmatpush.msra.mxu0 0.0
    %1681 = vmatpush.msra.mxu0 0.0
    %1682 = vmatpush.msra.mxu0 0.0
    %1683 = vmatpush.msra.mxu0 0.0
    %1684 = vmatpush.msra.mxu0 0.0
    %1685 = vmatpush.msra.mxu0 0.0
    %1686 = vmatpush.msra.mxu0 0.0
    %1687 = vmatpush.msra.mxu0 0.0
    %1688 = vmatpush.msra.mxu0 0.0
    %1689 = vmatpush.msra.mxu0 0.0
    %1690 = vmatpush.msra.mxu0 0.0
    %1691 = vmatpush.msra.mxu0 %v1668
    %1692 = vmatpush.msra.mxu0 %v1666
    %1693 = vmatmul.f32.gmra.mxu0 %v1672
    %v1694 = vpop.f32.mrf.mxu0
    %v1695 = vadd.f32 0.0, %v1694
    %1696 = vmatmul.f32.gmra.mxu0 %v1675
    %v1697 = vpop.f32.mrf.mxu0
    %v1698 = vadd.f32 0.0, %v1697
    %1699 = vdwg.mxu0
    %1702 = vrot.lane.b32.xlu0 %v366, 120
    %v1703 = vpop.permute.xlu0 %1702
    %1704 = vrot.lane.b32.xlu0 %v369, 120
    %v1705 = vpop.permute.xlu0 %1704
    %v1709 = vsel %vm676, %v1579, 0
    %v1712 = vsel %vm676, %v1580, 0
    %1714 = vmatpush.msra.mxu0 0.0
    %1715 = vmatpush.msra.mxu0 0.0
    %1716 = vmatpush.msra.mxu0 0.0
    %1717 = vmatpush.msra.mxu0 0.0
    %1718 = vmatpush.msra.mxu0 0.0
    %1719 = vmatpush.msra.mxu0 0.0
    %1720 = vmatpush.msra.mxu0 0.0
    %1721 = vmatpush.msra.mxu0 0.0
    %1722 = vmatpush.msra.mxu0 0.0
    %1723 = vmatpush.msra.mxu0 0.0
    %1724 = vmatpush.msra.mxu0 0.0
    %1725 = vmatpush.msra.mxu0 0.0
    %1726 = vmatpush.msra.mxu0 0.0
    %1727 = vmatpush.msra.mxu0 0.0
    %1728 = vmatpush.msra.mxu0 %v1705
    %1729 = vmatpush.msra.mxu0 %v1703
    %1730 = vmatmul.f32.gmra.mxu0 %v1709
    %v1731 = vpop.f32.mrf.mxu0
    %v1732 = vadd.f32 0.0, %v1731
    %1733 = vmatmul.f32.gmra.mxu0 %v1712
    %v1734 = vpop.f32.mrf.mxu0
    %v1735 = vadd.f32 0.0, %v1734
    %1736 = vdwg.mxu0
    %1739 = vrot.lane.b32.xlu0 %v372, 120
    %v1740 = vpop.permute.xlu0 %1739
    %1741 = vrot.lane.b32.xlu0 %v375, 120
    %v1742 = vpop.permute.xlu0 %1741
    %v1746 = vsel %vm676, %v1581, 0
    %v1749 = vsel %vm676, %v1582, 0
    %1751 = vmatpush.msra.mxu0 0.0
    %1752 = vmatpush.msra.mxu0 0.0
    %1753 = vmatpush.msra.mxu0 0.0
    %1754 = vmatpush.msra.mxu0 0.0
    %1755 = vmatpush.msra.mxu0 0.0
    %1756 = vmatpush.msra.mxu0 0.0
    %1757 = vmatpush.msra.mxu0 0.0
    %1758 = vmatpush.msra.mxu0 0.0
    %1759 = vmatpush.msra.mxu0 0.0
    %1760 = vmatpush.msra.mxu0 0.0
    %1761 = vmatpush.msra.mxu0 0.0
    %1762 = vmatpush.msra.mxu0 0.0
    %1763 = vmatpush.msra.mxu0 0.0
    %1764 = vmatpush.msra.mxu0 0.0
    %1765 = vmatpush.msra.mxu0 %v1742
    %1766 = vmatpush.msra.mxu0 %v1740
    %1767 = vmatmul.f32.gmra.mxu0 %v1746
    %v1768 = vpop.f32.mrf.mxu0
    %v1769 = vadd.f32 0.0, %v1768
    %1770 = vmatmul.f32.gmra.mxu0 %v1749
    %v1771 = vpop.f32.mrf.mxu0
    %v1772 = vadd.f32 0.0, %v1771
    %1773 = vdwg.mxu0
    %1776 = vrot.lane.b32.xlu0 %v378, 120
    %v1777 = vpop.permute.xlu0 %1776
    %1778 = vrot.lane.b32.xlu0 %v381, 120
    %v1779 = vpop.permute.xlu0 %1778
    %v1783 = vsel %vm676, %v1583, 0
    %v1786 = vsel %vm676, %v1584, 0
    %1788 = vmatpush.msra.mxu0 0.0
    %1789 = vmatpush.msra.mxu0 0.0
    %1790 = vmatpush.msra.mxu0 0.0
    %1791 = vmatpush.msra.mxu0 0.0
    %1792 = vmatpush.msra.mxu0 0.0
    %1793 = vmatpush.msra.mxu0 0.0
    %1794 = vmatpush.msra.mxu0 0.0
    %1795 = vmatpush.msra.mxu0 0.0
    %1796 = vmatpush.msra.mxu0 0.0
    %1797 = vmatpush.msra.mxu0 0.0
    %1798 = vmatpush.msra.mxu0 0.0
    %1799 = vmatpush.msra.mxu0 0.0
    %1800 = vmatpush.msra.mxu0 0.0
    %1801 = vmatpush.msra.mxu0 0.0
    %1802 = vmatpush.msra.mxu0 %v1779
    %1803 = vmatpush.msra.mxu0 %v1777
    %1804 = vmatmul.f32.gmra.mxu0 %v1783
    %v1805 = vpop.f32.mrf.mxu0
    %v1806 = vadd.f32 0.0, %v1805
    %1807 = vmatmul.f32.gmra.mxu0 %v1786
    %v1808 = vpop.f32.mrf.mxu0
    %v1809 = vadd.f32 0.0, %v1808
    %1810 = vdwg.mxu0
    %1813 = vrot.lane.b32.xlu0 %v384, 120
    %v1814 = vpop.permute.xlu0 %1813
    %1815 = vrot.lane.b32.xlu0 %v387, 120
    %v1816 = vpop.permute.xlu0 %1815
    %v1820 = vsel %vm676, %v1585, 0
    %v1823 = vsel %vm676, %v1586, 0
    %1825 = vmatpush.msra.mxu0 0.0
    %1826 = vmatpush.msra.mxu0 0.0
    %1827 = vmatpush.msra.mxu0 0.0
    %1828 = vmatpush.msra.mxu0 0.0
    %1829 = vmatpush.msra.mxu0 0.0
    %1830 = vmatpush.msra.mxu0 0.0
    %1831 = vmatpush.msra.mxu0 0.0
    %1832 = vmatpush.msra.mxu0 0.0
    %1833 = vmatpush.msra.mxu0 0.0
    %1834 = vmatpush.msra.mxu0 0.0
    %1835 = vmatpush.msra.mxu0 0.0
    %1836 = vmatpush.msra.mxu0 0.0
    %1837 = vmatpush.msra.mxu0 0.0
    %1838 = vmatpush.msra.mxu0 0.0
    %1839 = vmatpush.msra.mxu0 %v1816
    %1840 = vmatpush.msra.mxu0 %v1814
    %1841 = vmatmul.f32.gmra.mxu0 %v1820
    %v1842 = vpop.f32.mrf.mxu0
    %v1843 = vadd.f32 0.0, %v1842
    %1844 = vmatmul.f32.gmra.mxu0 %v1823
    %v1845 = vpop.f32.mrf.mxu0
    %v1846 = vadd.f32 0.0, %v1845
    %1847 = vdwg.mxu0
    %1850 = vrot.lane.b32.xlu0 %v390, 120
    %v1851 = vpop.permute.xlu0 %1850
    %1852 = vrot.lane.b32.xlu0 %v393, 120
    %v1853 = vpop.permute.xlu0 %1852
    %v1857 = vsel %vm676, %v1587, 0
    %v1860 = vsel %vm676, %v1588, 0
    %1862 = vmatpush.msra.mxu0 0.0
    %1863 = vmatpush.msra.mxu0 0.0
    %1864 = vmatpush.msra.mxu0 0.0
    %1865 = vmatpush.msra.mxu0 0.0
    %1866 = vmatpush.msra.mxu0 0.0
    %1867 = vmatpush.msra.mxu0 0.0
    %1868 = vmatpush.msra.mxu0 0.0
    %1869 = vmatpush.msra.mxu0 0.0
    %1870 = vmatpush.msra.mxu0 0.0
    %1871 = vmatpush.msra.mxu0 0.0
    %1872 = vmatpush.msra.mxu0 0.0
    %1873 = vmatpush.msra.mxu0 0.0
    %1874 = vmatpush.msra.mxu0 0.0
    %1875 = vmatpush.msra.mxu0 0.0
    %1876 = vmatpush.msra.mxu0 %v1853
    %1877 = vmatpush.msra.mxu0 %v1851
    %1878 = vmatmul.f32.gmra.mxu0 %v1857
    %v1879 = vpop.f32.mrf.mxu0
    %v1880 = vadd.f32 0.0, %v1879
    %1881 = vmatmul.f32.gmra.mxu0 %v1860
    %v1882 = vpop.f32.mrf.mxu0
    %v1883 = vadd.f32 0.0, %v1882
    %1884 = vdwg.mxu0
    %1901 = vrot.lane.b32.xlu0 %v1621, 8
    %v1902 = vpop.permute.xlu0 %1901
    %1903 = vrot.lane.b32.xlu0 %v1624, 8
    %v1904 = vpop.permute.xlu0 %1903
    %1905 = vrot.lane.b32.xlu0 %v1658, 8
    %v1906 = vpop.permute.xlu0 %1905
    %1907 = vrot.lane.b32.xlu0 %v1661, 8
    %v1908 = vpop.permute.xlu0 %1907
    %1909 = vrot.lane.b32.xlu0 %v1695, 8
    %v1910 = vpop.permute.xlu0 %1909
    %1911 = vrot.lane.b32.xlu0 %v1698, 8
    %v1912 = vpop.permute.xlu0 %1911
    %1913 = vrot.lane.b32.xlu0 %v1732, 8
    %v1914 = vpop.permute.xlu0 %1913
    %1915 = vrot.lane.b32.xlu0 %v1735, 8
    %v1916 = vpop.permute.xlu0 %1915
    %1917 = vrot.lane.b32.xlu0 %v1769, 8
    %v1918 = vpop.permute.xlu0 %1917
    %1919 = vrot.lane.b32.xlu0 %v1772, 8
    %v1920 = vpop.permute.xlu0 %1919
    %1921 = vrot.lane.b32.xlu0 %v1806, 8
    %v1922 = vpop.permute.xlu0 %1921
    %1923 = vrot.lane.b32.xlu0 %v1809, 8
    %v1924 = vpop.permute.xlu0 %1923
    %1925 = vrot.lane.b32.xlu0 %v1843, 8
    %v1926 = vpop.permute.xlu0 %1925
    %1927 = vrot.lane.b32.xlu0 %v1846, 8
    %v1928 = vpop.permute.xlu0 %1927
    %1929 = vrot.lane.b32.xlu0 %v1880, 8
    %v1930 = vpop.permute.xlu0 %1929
    %1931 = vrot.lane.b32.xlu0 %v1883, 8
    %v1932 = vpop.permute.xlu0 %1931
    %vm1949 = vcmask 130112
    %1950 = vst.msk [vmem:[#allocation2] sm:$0xff] %vm1949, %v1902
    %1951 = vst.msk [vmem:[#allocation2 + $0x8] sm:$0xff] %vm1949, %v1904
    %1952 = vst.msk [vmem:[#allocation2 + $0x10] sm:$0xff] %vm1949, %v1906
    %1953 = vst.msk [vmem:[#allocation2 + $0x18] sm:$0xff] %vm1949, %v1908
    %1954 = vst.msk [vmem:[#allocation2 + $0x20] sm:$0xff] %vm1949, %v1910
    %1955 = vst.msk [vmem:[#allocation2 + $0x28] sm:$0xff] %vm1949, %v1912
    %1956 = vst.msk [vmem:[#allocation2 + $0x30] sm:$0xff] %vm1949, %v1914
    %1957 = vst.msk [vmem:[#allocation2 + $0x38] sm:$0xff] %vm1949, %v1916
    %1958 = vst.msk [vmem:[#allocation2 + $0x40] sm:$0xff] %vm1949, %v1918
    %1959 = vst.msk [vmem:[#allocation2 + $0x48] sm:$0xff] %vm1949, %v1920
    %1960 = vst.msk [vmem:[#allocation2 + $0x50] sm:$0xff] %vm1949, %v1922
    %1961 = vst.msk [vmem:[#allocation2 + $0x58] sm:$0xff] %vm1949, %v1924
    %1962 = vst.msk [vmem:[#allocation2 + $0x60] sm:$0xff] %vm1949, %v1926
    %1963 = vst.msk [vmem:[#allocation2 + $0x68] sm:$0xff] %vm1949, %v1928
    %1964 = vst.msk [vmem:[#allocation2 + $0x70] sm:$0xff] %vm1949, %v1930
    %1965 = vst.msk [vmem:[#allocation2 + $0x78] sm:$0xff] %vm1949, %v1932
    %1966 = vrot.lane.b32.xlu0 %v202, 112
    %v1967 = vpop.permute.xlu0 %1966
    %1968 = vrot.lane.b32.xlu0 %v205, 112
    %v1969 = vpop.permute.xlu0 %1968
    %1970 = vrot.lane.b32.xlu0 %v275, 112
    %v1971 = vpop.permute.xlu0 %1970
    %1972 = vrot.lane.b32.xlu0 %v278, 112
    %v1973 = vpop.permute.xlu0 %1972
    %v1974 = vsel %vm395, %v1967, 0
    %v1976 = vsel %vm395, %v1969, 0
    %v1978 = vsel %vm395, %v1971, 0
    %v1980 = vsel %vm395, %v1973, 0
    %1982 = vmatpush.xpose.msra.mxu0 0.0
    %1983 = vmatpush.xpose.msra.mxu0 0.0
    %1984 = vmatpush.xpose.msra.mxu0 0.0
    %1985 = vmatpush.xpose.msra.mxu0 0.0
    %1986 = vmatpush.xpose.msra.mxu0 0.0
    %1987 = vmatpush.xpose.msra.mxu0 0.0
    %1988 = vmatpush.xpose.msra.mxu0 0.0
    %1989 = vmatpush.xpose.msra.mxu0 0.0
    %1990 = vmatpush.xpose.msra.mxu0 0.0
    %1991 = vmatpush.xpose.msra.mxu0 0.0
    %1992 = vmatpush.xpose.msra.mxu0 0.0
    %1993 = vmatpush.xpose.msra.mxu0 0.0
    %1994 = vmatpush.xpose.msra.mxu0 0.0
    %1995 = vmatpush.xpose.msra.mxu0 0.0
    %1996 = vmatpush.xpose.msra.mxu0 %v1980
    %1997 = vmatpush.xpose.msra.mxu0 %v1978
    %1998 = vmatmul.f32.gmra.mxu0 %v1974
    %v1999 = vpop.f32.mrf.mxu0
    %v2000 = vadd.f32 0.0, %v1999
    %2001 = vmatmul.f32.gmra.mxu0 %v1976
    %v2002 = vpop.f32.mrf.mxu0
    %v2003 = vadd.f32 0.0, %v2002
    %2004 = vdwg.mxu0
    %2005 = vrot.lane.b32.xlu0 %v208, 112
    %v2006 = vpop.permute.xlu0 %2005
    %2007 = vrot.lane.b32.xlu0 %v211, 112
    %v2008 = vpop.permute.xlu0 %2007
    %2009 = vrot.lane.b32.xlu0 %v281, 112
    %v2010 = vpop.permute.xlu0 %2009
    %2011 = vrot.lane.b32.xlu0 %v284, 112
    %v2012 = vpop.permute.xlu0 %2011
    %v2013 = vsel %vm395, %v2006, 0
    %v2015 = vsel %vm395, %v2008, 0
    %v2017 = vsel %vm395, %v2010, 0
    %v2019 = vsel %vm395, %v2012, 0
    %2021 = vmatpush.xpose.msra.mxu0 0.0
    %2022 = vmatpush.xpose.msra.mxu0 0.0
    %2023 = vmatpush.xpose.msra.mxu0 0.0
    %2024 = vmatpush.xpose.msra.mxu0 0.0
    %2025 = vmatpush.xpose.msra.mxu0 0.0
    %2026 = vmatpush.xpose.msra.mxu0 0.0
    %2027 = vmatpush.xpose.msra.mxu0 0.0
    %2028 = vmatpush.xpose.msra.mxu0 0.0
    %2029 = vmatpush.xpose.msra.mxu0 0.0
    %2030 = vmatpush.xpose.msra.mxu0 0.0
    %2031 = vmatpush.xpose.msra.mxu0 0.0
    %2032 = vmatpush.xpose.msra.mxu0 0.0
    %2033 = vmatpush.xpose.msra.mxu0 0.0
    %2034 = vmatpush.xpose.msra.mxu0 0.0
    %2035 = vmatpush.xpose.msra.mxu0 %v2019
    %2036 = vmatpush.xpose.msra.mxu0 %v2017
    %2037 = vmatmul.f32.gmra.mxu0 %v2013
    %v2038 = vpop.f32.mrf.mxu0
    %v2039 = vadd.f32 0.0, %v2038
    %2040 = vmatmul.f32.gmra.mxu0 %v2015
    %v2041 = vpop.f32.mrf.mxu0
    %v2042 = vadd.f32 0.0, %v2041
    %2043 = vdwg.mxu0
    %2044 = vrot.lane.b32.xlu0 %v214, 112
    %v2045 = vpop.permute.xlu0 %2044
    %2046 = vrot.lane.b32.xlu0 %v217, 112
    %v2047 = vpop.permute.xlu0 %2046
    %2048 = vrot.lane.b32.xlu0 %v287, 112
    %v2049 = vpop.permute.xlu0 %2048
    %2050 = vrot.lane.b32.xlu0 %v290, 112
    %v2051 = vpop.permute.xlu0 %2050
    %v2052 = vsel %vm395, %v2045, 0
    %v2054 = vsel %vm395, %v2047, 0
    %v2056 = vsel %vm395, %v2049, 0
    %v2058 = vsel %vm395, %v2051, 0
    %2060 = vmatpush.xpose.msra.mxu0 0.0
    %2061 = vmatpush.xpose.msra.mxu0 0.0
    %2062 = vmatpush.xpose.msra.mxu0 0.0
    %2063 = vmatpush.xpose.msra.mxu0 0.0
    %2064 = vmatpush.xpose.msra.mxu0 0.0
    %2065 = vmatpush.xpose.msra.mxu0 0.0
    %2066 = vmatpush.xpose.msra.mxu0 0.0
    %2067 = vmatpush.xpose.msra.mxu0 0.0
    %2068 = vmatpush.xpose.msra.mxu0 0.0
    %2069 = vmatpush.xpose.msra.mxu0 0.0
    %2070 = vmatpush.xpose.msra.mxu0 0.0
    %2071 = vmatpush.xpose.msra.mxu0 0.0
    %2072 = vmatpush.xpose.msra.mxu0 0.0
    %2073 = vmatpush.xpose.msra.mxu0 0.0
    %2074 = vmatpush.xpose.msra.mxu0 %v2058
    %2075 = vmatpush.xpose.msra.mxu0 %v2056
    %2076 = vmatmul.f32.gmra.mxu0 %v2052
    %v2077 = vpop.f32.mrf.mxu0
    %v2078 = vadd.f32 0.0, %v2077
    %2079 = vmatmul.f32.gmra.mxu0 %v2054
    %v2080 = vpop.f32.mrf.mxu0
    %v2081 = vadd.f32 0.0, %v2080
    %2082 = vdwg.mxu0
    %2083 = vrot.lane.b32.xlu0 %v220, 112
    %v2084 = vpop.permute.xlu0 %2083
    %2085 = vrot.lane.b32.xlu0 %v223, 112
    %v2086 = vpop.permute.xlu0 %2085
    %2087 = vrot.lane.b32.xlu0 %v293, 112
    %v2088 = vpop.permute.xlu0 %2087
    %2089 = vrot.lane.b32.xlu0 %v296, 112
    %v2090 = vpop.permute.xlu0 %2089
    %v2091 = vsel %vm395, %v2084, 0
    %v2093 = vsel %vm395, %v2086, 0
    %v2095 = vsel %vm395, %v2088, 0
    %v2097 = vsel %vm395, %v2090, 0
    %2099 = vmatpush.xpose.msra.mxu0 0.0
    %2100 = vmatpush.xpose.msra.mxu0 0.0
    %2101 = vmatpush.xpose.msra.mxu0 0.0
    %2102 = vmatpush.xpose.msra.mxu0 0.0
    %2103 = vmatpush.xpose.msra.mxu0 0.0
    %2104 = vmatpush.xpose.msra.mxu0 0.0
    %2105 = vmatpush.xpose.msra.mxu0 0.0
    %2106 = vmatpush.xpose.msra.mxu0 0.0
    %2107 = vmatpush.xpose.msra.mxu0 0.0
    %2108 = vmatpush.xpose.msra.mxu0 0.0
    %2109 = vmatpush.xpose.msra.mxu0 0.0
    %2110 = vmatpush.xpose.msra.mxu0 0.0
    %2111 = vmatpush.xpose.msra.mxu0 0.0
    %2112 = vmatpush.xpose.msra.mxu0 0.0
    %2113 = vmatpush.xpose.msra.mxu0 %v2097
    %2114 = vmatpush.xpose.msra.mxu0 %v2095
    %2115 = vmatmul.f32.gmra.mxu0 %v2091
    %v2116 = vpop.f32.mrf.mxu0
    %v2117 = vadd.f32 0.0, %v2116
    %2118 = vmatmul.f32.gmra.mxu0 %v2093
    %v2119 = vpop.f32.mrf.mxu0
    %v2120 = vadd.f32 0.0, %v2119
    %2121 = vdwg.mxu0
    %2122 = vrot.lane.b32.xlu0 %v226, 112
    %v2123 = vpop.permute.xlu0 %2122
    %2124 = vrot.lane.b32.xlu0 %v229, 112
    %v2125 = vpop.permute.xlu0 %2124
    %2126 = vrot.lane.b32.xlu0 %v299, 112
    %v2127 = vpop.permute.xlu0 %2126
    %2128 = vrot.lane.b32.xlu0 %v302, 112
    %v2129 = vpop.permute.xlu0 %2128
    %v2130 = vsel %vm395, %v2123, 0
    %v2132 = vsel %vm395, %v2125, 0
    %v2134 = vsel %vm395, %v2127, 0
    %v2136 = vsel %vm395, %v2129, 0
    %2138 = vmatpush.xpose.msra.mxu0 0.0
    %2139 = vmatpush.xpose.msra.mxu0 0.0
    %2140 = vmatpush.xpose.msra.mxu0 0.0
    %2141 = vmatpush.xpose.msra.mxu0 0.0
    %2142 = vmatpush.xpose.msra.mxu0 0.0
    %2143 = vmatpush.xpose.msra.mxu0 0.0
    %2144 = vmatpush.xpose.msra.mxu0 0.0
    %2145 = vmatpush.xpose.msra.mxu0 0.0
    %2146 = vmatpush.xpose.msra.mxu0 0.0
    %2147 = vmatpush.xpose.msra.mxu0 0.0
    %2148 = vmatpush.xpose.msra.mxu0 0.0
    %2149 = vmatpush.xpose.msra.mxu0 0.0
    %2150 = vmatpush.xpose.msra.mxu0 0.0
    %2151 = vmatpush.xpose.msra.mxu0 0.0
    %2152 = vmatpush.xpose.msra.mxu0 %v2136
    %2153 = vmatpush.xpose.msra.mxu0 %v2134
    %2154 = vmatmul.f32.gmra.mxu0 %v2130
    %v2155 = vpop.f32.mrf.mxu0
    %v2156 = vadd.f32 0.0, %v2155
    %2157 = vmatmul.f32.gmra.mxu0 %v2132
    %v2158 = vpop.f32.mrf.mxu0
    %v2159 = vadd.f32 0.0, %v2158
    %2160 = vdwg.mxu0
    %2161 = vrot.lane.b32.xlu0 %v232, 112
    %v2162 = vpop.permute.xlu0 %2161
    %2163 = vrot.lane.b32.xlu0 %v235, 112
    %v2164 = vpop.permute.xlu0 %2163
    %2165 = vrot.lane.b32.xlu0 %v305, 112
    %v2166 = vpop.permute.xlu0 %2165
    %2167 = vrot.lane.b32.xlu0 %v308, 112
    %v2168 = vpop.permute.xlu0 %2167
    %v2169 = vsel %vm395, %v2162, 0
    %v2171 = vsel %vm395, %v2164, 0
    %v2173 = vsel %vm395, %v2166, 0
    %v2175 = vsel %vm395, %v2168, 0
    %2177 = vmatpush.xpose.msra.mxu0 0.0
    %2178 = vmatpush.xpose.msra.mxu0 0.0
    %2179 = vmatpush.xpose.msra.mxu0 0.0
    %2180 = vmatpush.xpose.msra.mxu0 0.0
    %2181 = vmatpush.xpose.msra.mxu0 0.0
    %2182 = vmatpush.xpose.msra.mxu0 0.0
    %2183 = vmatpush.xpose.msra.mxu0 0.0
    %2184 = vmatpush.xpose.msra.mxu0 0.0
    %2185 = vmatpush.xpose.msra.mxu0 0.0
    %2186 = vmatpush.xpose.msra.mxu0 0.0
    %2187 = vmatpush.xpose.msra.mxu0 0.0
    %2188 = vmatpush.xpose.msra.mxu0 0.0
    %2189 = vmatpush.xpose.msra.mxu0 0.0
    %2190 = vmatpush.xpose.msra.mxu0 0.0
    %2191 = vmatpush.xpose.msra.mxu0 %v2175
    %2192 = vmatpush.xpose.msra.mxu0 %v2173
    %2193 = vmatmul.f32.gmra.mxu0 %v2169
    %v2194 = vpop.f32.mrf.mxu0
    %v2195 = vadd.f32 0.0, %v2194
    %2196 = vmatmul.f32.gmra.mxu0 %v2171
    %v2197 = vpop.f32.mrf.mxu0
    %v2198 = vadd.f32 0.0, %v2197
    %2199 = vdwg.mxu0
    %2200 = vrot.lane.b32.xlu0 %v238, 112
    %v2201 = vpop.permute.xlu0 %2200
    %2202 = vrot.lane.b32.xlu0 %v241, 112
    %v2203 = vpop.permute.xlu0 %2202
    %2204 = vrot.lane.b32.xlu0 %v311, 112
    %v2205 = vpop.permute.xlu0 %2204
    %2206 = vrot.lane.b32.xlu0 %v314, 112
    %v2207 = vpop.permute.xlu0 %2206
    %v2208 = vsel %vm395, %v2201, 0
    %v2210 = vsel %vm395, %v2203, 0
    %v2212 = vsel %vm395, %v2205, 0
    %v2214 = vsel %vm395, %v2207, 0
    %2216 = vmatpush.xpose.msra.mxu0 0.0
    %2217 = vmatpush.xpose.msra.mxu0 0.0
    %2218 = vmatpush.xpose.msra.mxu0 0.0
    %2219 = vmatpush.xpose.msra.mxu0 0.0
    %2220 = vmatpush.xpose.msra.mxu0 0.0
    %2221 = vmatpush.xpose.msra.mxu0 0.0
    %2222 = vmatpush.xpose.msra.mxu0 0.0
    %2223 = vmatpush.xpose.msra.mxu0 0.0
    %2224 = vmatpush.xpose.msra.mxu0 0.0
    %2225 = vmatpush.xpose.msra.mxu0 0.0
    %2226 = vmatpush.xpose.msra.mxu0 0.0
    %2227 = vmatpush.xpose.msra.mxu0 0.0
    %2228 = vmatpush.xpose.msra.mxu0 0.0
    %2229 = vmatpush.xpose.msra.mxu0 0.0
    %2230 = vmatpush.xpose.msra.mxu0 %v2214
    %2231 = vmatpush.xpose.msra.mxu0 %v2212
    %2232 = vmatmul.f32.gmra.mxu0 %v2208
    %v2233 = vpop.f32.mrf.mxu0
    %v2234 = vadd.f32 0.0, %v2233
    %2235 = vmatmul.f32.gmra.mxu0 %v2210
    %v2236 = vpop.f32.mrf.mxu0
    %v2237 = vadd.f32 0.0, %v2236
    %2238 = vdwg.mxu0
    %2239 = vrot.lane.b32.xlu0 %v244, 112
    %v2240 = vpop.permute.xlu0 %2239
    %2241 = vrot.lane.b32.xlu0 %v247, 112
    %v2242 = vpop.permute.xlu0 %2241
    %2243 = vrot.lane.b32.xlu0 %v317, 112
    %v2244 = vpop.permute.xlu0 %2243
    %2245 = vrot.lane.b32.xlu0 %v320, 112
    %v2246 = vpop.permute.xlu0 %2245
    %v2247 = vsel %vm395, %v2240, 0
    %v2249 = vsel %vm395, %v2242, 0
    %v2251 = vsel %vm395, %v2244, 0
    %v2253 = vsel %vm395, %v2246, 0
    %2255 = vmatpush.xpose.msra.mxu0 0.0
    %2256 = vmatpush.xpose.msra.mxu0 0.0
    %2257 = vmatpush.xpose.msra.mxu0 0.0
    %2258 = vmatpush.xpose.msra.mxu0 0.0
    %2259 = vmatpush.xpose.msra.mxu0 0.0
    %2260 = vmatpush.xpose.msra.mxu0 0.0
    %2261 = vmatpush.xpose.msra.mxu0 0.0
    %2262 = vmatpush.xpose.msra.mxu0 0.0
    %2263 = vmatpush.xpose.msra.mxu0 0.0
    %2264 = vmatpush.xpose.msra.mxu0 0.0
    %2265 = vmatpush.xpose.msra.mxu0 0.0
    %2266 = vmatpush.xpose.msra.mxu0 0.0
    %2267 = vmatpush.xpose.msra.mxu0 0.0
    %2268 = vmatpush.xpose.msra.mxu0 0.0
    %2269 = vmatpush.xpose.msra.mxu0 %v2253
    %2270 = vmatpush.xpose.msra.mxu0 %v2251
    %2271 = vmatmul.f32.gmra.mxu0 %v2247
    %v2272 = vpop.f32.mrf.mxu0
    %v2273 = vadd.f32 0.0, %v2272
    %2274 = vmatmul.f32.gmra.mxu0 %v2249
    %v2275 = vpop.f32.mrf.mxu0
    %v2276 = vadd.f32 0.0, %v2275
    %2277 = vdwg.mxu0
    %v2278 = vsel %vm676, %v2000, -inf
    %2279 = vmax.xlane.f32.xlu0 %v2278
    %v2280 = vpop.xlane.xlu0 %2279
    %v2281 = vsel %vm676, %v2003, -inf
    %2282 = vmax.xlane.f32.xlu0 %v2281
    %v2283 = vpop.xlane.xlu0 %2282
    %v2284 = vsel %vm676, %v2039, -inf
    %2285 = vmax.xlane.f32.xlu0 %v2284
    %v2286 = vpop.xlane.xlu0 %2285
    %v2287 = vsel %vm676, %v2042, -inf
    %2288 = vmax.xlane.f32.xlu0 %v2287
    %v2289 = vpop.xlane.xlu0 %2288
    %v2290 = vsel %vm676, %v2078, -inf
    %2291 = vmax.xlane.f32.xlu0 %v2290
    %v2292 = vpop.xlane.xlu0 %2291
    %v2293 = vsel %vm676, %v2081, -inf
    %2294 = vmax.xlane.f32.xlu0 %v2293
    %v2295 = vpop.xlane.xlu0 %2294
    %v2296 = vsel %vm676, %v2117, -inf
    %2297 = vmax.xlane.f32.xlu0 %v2296
    %v2298 = vpop.xlane.xlu0 %2297
    %v2299 = vsel %vm676, %v2120, -inf
    %2300 = vmax.xlane.f32.xlu0 %v2299
    %v2301 = vpop.xlane.xlu0 %2300
    %v2302 = vsel %vm676, %v2156, -inf
    %2303 = vmax.xlane.f32.xlu0 %v2302
    %v2304 = vpop.xlane.xlu0 %2303
    %v2305 = vsel %vm676, %v2159, -inf
    %2306 = vmax.xlane.f32.xlu0 %v2305
    %v2307 = vpop.xlane.xlu0 %2306
    %v2308 = vsel %vm676, %v2195, -inf
    %2309 = vmax.xlane.f32.xlu0 %v2308
    %v2310 = vpop.xlane.xlu0 %2309
    %v2311 = vsel %vm676, %v2198, -inf
    %2312 = vmax.xlane.f32.xlu0 %v2311
    %v2313 = vpop.xlane.xlu0 %2312
    %v2314 = vsel %vm676, %v2234, -inf
    %2315 = vmax.xlane.f32.xlu0 %v2314
    %v2316 = vpop.xlane.xlu0 %2315
    %v2317 = vsel %vm676, %v2237, -inf
    %2318 = vmax.xlane.f32.xlu0 %v2317
    %v2319 = vpop.xlane.xlu0 %2318
    %v2320 = vsel %vm676, %v2273, -inf
    %2321 = vmax.xlane.f32.xlu0 %v2320
    %v2322 = vpop.xlane.xlu0 %2321
    %v2323 = vsel %vm676, %v2276, -inf
    %2324 = vmax.xlane.f32.xlu0 %v2323
    %v2325 = vpop.xlane.xlu0 %2324
    %v2326 = vsub.f32 %v2000, %v2280
    %v2327 = vsub.f32 %v2003, %v2283
    %v2328 = vsub.f32 %v2039, %v2286
    %v2329 = vsub.f32 %v2042, %v2289
    %v2330 = vsub.f32 %v2078, %v2292
    %v2331 = vsub.f32 %v2081, %v2295
    %v2332 = vsub.f32 %v2117, %v2298
    %v2333 = vsub.f32 %v2120, %v2301
    %v2334 = vsub.f32 %v2156, %v2304
    %v2335 = vsub.f32 %v2159, %v2307
    %v2336 = vsub.f32 %v2195, %v2310
    %v2337 = vsub.f32 %v2198, %v2313
    %v2338 = vsub.f32 %v2234, %v2316
    %v2339 = vsub.f32 %v2237, %v2319
    %v2340 = vsub.f32 %v2273, %v2322
    %v2341 = vsub.f32 %v2276, %v2325
    %v2342 = vmul.f32 %v2326, 1.442695
    %v2343 = vpow.pop %v2342
    %v2344 = vmul.f32 %v2327, 1.442695
    %v2345 = vpow.pop %v2344
    %v2346 = vmul.f32 %v2328, 1.442695
    %v2347 = vpow.pop %v2346
    %v2348 = vmul.f32 %v2329, 1.442695
    %v2349 = vpow.pop %v2348
    %v2350 = vmul.f32 %v2330, 1.442695
    %v2351 = vpow.pop %v2350
    %v2352 = vmul.f32 %v2331, 1.442695
    %v2353 = vpow.pop %v2352
    %v2354 = vmul.f32 %v2332, 1.442695
    %v2355 = vpow.pop %v2354
    %v2356 = vmul.f32 %v2333, 1.442695
    %v2357 = vpow.pop %v2356
    %v2358 = vmul.f32 %v2334, 1.442695
    %v2359 = vpow.pop %v2358
    %v2360 = vmul.f32 %v2335, 1.442695
    %v2361 = vpow.pop %v2360
    %v2362 = vmul.f32 %v2336, 1.442695
    %v2363 = vpow.pop %v2362
    %v2364 = vmul.f32 %v2337, 1.442695
    %v2365 = vpow.pop %v2364
    %v2366 = vmul.f32 %v2338, 1.442695
    %v2367 = vpow.pop %v2366
    %v2368 = vmul.f32 %v2339, 1.442695
    %v2369 = vpow.pop %v2368
    %v2370 = vmul.f32 %v2340, 1.442695
    %v2371 = vpow.pop %v2370
    %v2372 = vmul.f32 %v2341, 1.442695
    %v2373 = vpow.pop %v2372
    %v2374 = vsel %vm676, %v2343, 0.0
    %2375 = vadd.xlane.f32.xlu0 %v2374
    %v2376 = vpop.xlane.xlu0 %2375
    %v2377 = vsel %vm676, %v2345, 0.0
    %2378 = vadd.xlane.f32.xlu0 %v2377
    %v2379 = vpop.xlane.xlu0 %2378
    %v2380 = vsel %vm676, %v2347, 0.0
    %2381 = vadd.xlane.f32.xlu0 %v2380
    %v2382 = vpop.xlane.xlu0 %2381
    %v2383 = vsel %vm676, %v2349, 0.0
    %2384 = vadd.xlane.f32.xlu0 %v2383
    %v2385 = vpop.xlane.xlu0 %2384
    %v2386 = vsel %vm676, %v2351, 0.0
    %2387 = vadd.xlane.f32.xlu0 %v2386
    %v2388 = vpop.xlane.xlu0 %2387
    %v2389 = vsel %vm676, %v2353, 0.0
    %2390 = vadd.xlane.f32.xlu0 %v2389
    %v2391 = vpop.xlane.xlu0 %2390
    %v2392 = vsel %vm676, %v2355, 0.0
    %2393 = vadd.xlane.f32.xlu0 %v2392
    %v2394 = vpop.xlane.xlu0 %2393
    %v2395 = vsel %vm676, %v2357, 0.0
    %2396 = vadd.xlane.f32.xlu0 %v2395
    %v2397 = vpop.xlane.xlu0 %2396
    %v2398 = vsel %vm676, %v2359, 0.0
    %2399 = vadd.xlane.f32.xlu0 %v2398
    %v2400 = vpop.xlane.xlu0 %2399
    %v2401 = vsel %vm676, %v2361, 0.0
    %2402 = vadd.xlane.f32.xlu0 %v2401
    %v2403 = vpop.xlane.xlu0 %2402
    %v2404 = vsel %vm676, %v2363, 0.0
    %2405 = vadd.xlane.f32.xlu0 %v2404
    %v2406 = vpop.xlane.xlu0 %2405
    %v2407 = vsel %vm676, %v2365, 0.0
    %2408 = vadd.xlane.f32.xlu0 %v2407
    %v2409 = vpop.xlane.xlu0 %2408
    %v2410 = vsel %vm676, %v2367, 0.0
    %2411 = vadd.xlane.f32.xlu0 %v2410
    %v2412 = vpop.xlane.xlu0 %2411
    %v2413 = vsel %vm676, %v2369, 0.0
    %2414 = vadd.xlane.f32.xlu0 %v2413
    %v2415 = vpop.xlane.xlu0 %2414
    %v2416 = vsel %vm676, %v2371, 0.0
    %2417 = vadd.xlane.f32.xlu0 %v2416
    %v2418 = vpop.xlane.xlu0 %2417
    %v2419 = vsel %vm676, %v2373, 0.0
    %2420 = vadd.xlane.f32.xlu0 %v2419
    %v2421 = vpop.xlane.xlu0 %2420
    %v2422 = vrcp.pop %v2376
    %v2423 = vrcp.pop %v2379
    %v2424 = vrcp.pop %v2382
    %v2425 = vrcp.pop %v2385
    %v2426 = vrcp.pop %v2388
    %v2427 = vrcp.pop %v2391
    %v2428 = vrcp.pop %v2394
    %v2429 = vrcp.pop %v2397
    %v2430 = vrcp.pop %v2400
    %v2431 = vrcp.pop %v2403
    %v2432 = vrcp.pop %v2406
    %v2433 = vrcp.pop %v2409
    %v2434 = vrcp.pop %v2412
    %v2435 = vrcp.pop %v2415
    %v2436 = vrcp.pop %v2418
    %v2437 = vrcp.pop %v2421
    %v2438 = vmul.f32 %v2343, %v2422
    %v2439 = vmul.f32 %v2345, %v2423
    %v2440 = vmul.f32 %v2347, %v2424
    %v2441 = vmul.f32 %v2349, %v2425
    %v2442 = vmul.f32 %v2351, %v2426
    %v2443 = vmul.f32 %v2353, %v2427
    %v2444 = vmul.f32 %v2355, %v2428
    %v2445 = vmul.f32 %v2357, %v2429
    %v2446 = vmul.f32 %v2359, %v2430
    %v2447 = vmul.f32 %v2361, %v2431
    %v2448 = vmul.f32 %v2363, %v2432
    %v2449 = vmul.f32 %v2365, %v2433
    %v2450 = vmul.f32 %v2367, %v2434
    %v2451 = vmul.f32 %v2369, %v2435
    %v2452 = vmul.f32 %v2371, %v2436
    %v2453 = vmul.f32 %v2373, %v2437
    %2454 = vrot.lane.b32.xlu0 %v348, 112
    %v2455 = vpop.permute.xlu0 %2454
    %2456 = vrot.lane.b32.xlu0 %v351, 112
    %v2457 = vpop.permute.xlu0 %2456
    %v2461 = vsel %vm676, %v2438, 0
    %v2464 = vsel %vm676, %v2439, 0
    %2466 = vmatpush.msra.mxu0 0.0
    %2467 = vmatpush.msra.mxu0 0.0
    %2468 = vmatpush.msra.mxu0 0.0
    %2469 = vmatpush.msra.mxu0 0.0
    %2470 = vmatpush.msra.mxu0 0.0
    %2471 = vmatpush.msra.mxu0 0.0
    %2472 = vmatpush.msra.mxu0 0.0
    %2473 = vmatpush.msra.mxu0 0.0
    %2474 = vmatpush.msra.mxu0 0.0
    %2475 = vmatpush.msra.mxu0 0.0
    %2476 = vmatpush.msra.mxu0 0.0
    %2477 = vmatpush.msra.mxu0 0.0
    %2478 = vmatpush.msra.mxu0 0.0
    %2479 = vmatpush.msra.mxu0 0.0
    %2480 = vmatpush.msra.mxu0 %v2457
    %2481 = vmatpush.msra.mxu0 %v2455
    %2482 = vmatmul.f32.gmra.mxu0 %v2461
    %v2483 = vpop.f32.mrf.mxu0
    %v2484 = vadd.f32 0.0, %v2483
    %2485 = vmatmul.f32.gmra.mxu0 %v2464
    %v2486 = vpop.f32.mrf.mxu0
    %v2487 = vadd.f32 0.0, %v2486
    %2488 = vdwg.mxu0
    %2489 = vrot.lane.b32.xlu0 %v354, 112
    %v2490 = vpop.permute.xlu0 %2489
    %2491 = vrot.lane.b32.xlu0 %v357, 112
    %v2492 = vpop.permute.xlu0 %2491
    %v2496 = vsel %vm676, %v2440, 0
    %v2499 = vsel %vm676, %v2441, 0
    %2501 = vmatpush.msra.mxu0 0.0
    %2502 = vmatpush.msra.mxu0 0.0
    %2503 = vmatpush.msra.mxu0 0.0
    %2504 = vmatpush.msra.mxu0 0.0
    %2505 = vmatpush.msra.mxu0 0.0
    %2506 = vmatpush.msra.mxu0 0.0
    %2507 = vmatpush.msra.mxu0 0.0
    %2508 = vmatpush.msra.mxu0 0.0
    %2509 = vmatpush.msra.mxu0 0.0
    %2510 = vmatpush.msra.mxu0 0.0
    %2511 = vmatpush.msra.mxu0 0.0
    %2512 = vmatpush.msra.mxu0 0.0
    %2513 = vmatpush.msra.mxu0 0.0
    %2514 = vmatpush.msra.mxu0 0.0
    %2515 = vmatpush.msra.mxu0 %v2492
    %2516 = vmatpush.msra.mxu0 %v2490
    %2517 = vmatmul.f32.gmra.mxu0 %v2496
    %v2518 = vpop.f32.mrf.mxu0
    %v2519 = vadd.f32 0.0, %v2518
    %2520 = vmatmul.f32.gmra.mxu0 %v2499
    %v2521 = vpop.f32.mrf.mxu0
    %v2522 = vadd.f32 0.0, %v2521
    %2523 = vdwg.mxu0
    %2524 = vrot.lane.b32.xlu0 %v360, 112
    %v2525 = vpop.permute.xlu0 %2524
    %2526 = vrot.lane.b32.xlu0 %v363, 112
    %v2527 = vpop.permute.xlu0 %2526
    %v2531 = vsel %vm676, %v2442, 0
    %v2534 = vsel %vm676, %v2443, 0
    %2536 = vmatpush.msra.mxu0 0.0
    %2537 = vmatpush.msra.mxu0 0.0
    %2538 = vmatpush.msra.mxu0 0.0
    %2539 = vmatpush.msra.mxu0 0.0
    %2540 = vmatpush.msra.mxu0 0.0
    %2541 = vmatpush.msra.mxu0 0.0
    %2542 = vmatpush.msra.mxu0 0.0
    %2543 = vmatpush.msra.mxu0 0.0
    %2544 = vmatpush.msra.mxu0 0.0
    %2545 = vmatpush.msra.mxu0 0.0
    %2546 = vmatpush.msra.mxu0 0.0
    %2547 = vmatpush.msra.mxu0 0.0
    %2548 = vmatpush.msra.mxu0 0.0
    %2549 = vmatpush.msra.mxu0 0.0
    %2550 = vmatpush.msra.mxu0 %v2527
    %2551 = vmatpush.msra.mxu0 %v2525
    %2552 = vmatmul.f32.gmra.mxu0 %v2531
    %v2553 = vpop.f32.mrf.mxu0
    %v2554 = vadd.f32 0.0, %v2553
    %2555 = vmatmul.f32.gmra.mxu0 %v2534
    %v2556 = vpop.f32.mrf.mxu0
    %v2557 = vadd.f32 0.0, %v2556
    %2558 = vdwg.mxu0
    %2559 = vrot.lane.b32.xlu0 %v366, 112
    %v2560 = vpop.permute.xlu0 %2559
    %2561 = vrot.lane.b32.xlu0 %v369, 112
    %v2562 = vpop.permute.xlu0 %2561
    %v2566 = vsel %vm676, %v2444, 0
    %v2569 = vsel %vm676, %v2445, 0
    %2571 = vmatpush.msra.mxu0 0.0
    %2572 = vmatpush.msra.mxu0 0.0
    %2573 = vmatpush.msra.mxu0 0.0
    %2574 = vmatpush.msra.mxu0 0.0
    %2575 = vmatpush.msra.mxu0 0.0
    %2576 = vmatpush.msra.mxu0 0.0
    %2577 = vmatpush.msra.mxu0 0.0
    %2578 = vmatpush.msra.mxu0 0.0
    %2579 = vmatpush.msra.mxu0 0.0
    %2580 = vmatpush.msra.mxu0 0.0
    %2581 = vmatpush.msra.mxu0 0.0
    %2582 = vmatpush.msra.mxu0 0.0
    %2583 = vmatpush.msra.mxu0 0.0
    %2584 = vmatpush.msra.mxu0 0.0
    %2585 = vmatpush.msra.mxu0 %v2562
    %2586 = vmatpush.msra.mxu0 %v2560
    %2587 = vmatmul.f32.gmra.mxu0 %v2566
    %v2588 = vpop.f32.mrf.mxu0
    %v2589 = vadd.f32 0.0, %v2588
    %2590 = vmatmul.f32.gmra.mxu0 %v2569
    %v2591 = vpop.f32.mrf.mxu0
    %v2592 = vadd.f32 0.0, %v2591
    %2593 = vdwg.mxu0
    %2594 = vrot.lane.b32.xlu0 %v372, 112
    %v2595 = vpop.permute.xlu0 %2594
    %2596 = vrot.lane.b32.xlu0 %v375, 112
    %v2597 = vpop.permute.xlu0 %2596
    %v2601 = vsel %vm676, %v2446, 0
    %v2604 = vsel %vm676, %v2447, 0
    %2606 = vmatpush.msra.mxu0 0.0
    %2607 = vmatpush.msra.mxu0 0.0
    %2608 = vmatpush.msra.mxu0 0.0
    %2609 = vmatpush.msra.mxu0 0.0
    %2610 = vmatpush.msra.mxu0 0.0
    %2611 = vmatpush.msra.mxu0 0.0
    %2612 = vmatpush.msra.mxu0 0.0
    %2613 = vmatpush.msra.mxu0 0.0
    %2614 = vmatpush.msra.mxu0 0.0
    %2615 = vmatpush.msra.mxu0 0.0
    %2616 = vmatpush.msra.mxu0 0.0
    %2617 = vmatpush.msra.mxu0 0.0
    %2618 = vmatpush.msra.mxu0 0.0
    %2619 = vmatpush.msra.mxu0 0.0
    %2620 = vmatpush.msra.mxu0 %v2597
    %2621 = vmatpush.msra.mxu0 %v2595
    %2622 = vmatmul.f32.gmra.mxu0 %v2601
    %v2623 = vpop.f32.mrf.mxu0
    %v2624 = vadd.f32 0.0, %v2623
    %2625 = vmatmul.f32.gmra.mxu0 %v2604
    %v2626 = vpop.f32.mrf.mxu0
    %v2627 = vadd.f32 0.0, %v2626
    %2628 = vdwg.mxu0
    %2629 = vrot.lane.b32.xlu0 %v378, 112
    %v2630 = vpop.permute.xlu0 %2629
    %2631 = vrot.lane.b32.xlu0 %v381, 112
    %v2632 = vpop.permute.xlu0 %2631
    %v2636 = vsel %vm676, %v2448, 0
    %v2639 = vsel %vm676, %v2449, 0
    %2641 = vmatpush.msra.mxu0 0.0
    %2642 = vmatpush.msra.mxu0 0.0
    %2643 = vmatpush.msra.mxu0 0.0
    %2644 = vmatpush.msra.mxu0 0.0
    %2645 = vmatpush.msra.mxu0 0.0
    %2646 = vmatpush.msra.mxu0 0.0
    %2647 = vmatpush.msra.mxu0 0.0
    %2648 = vmatpush.msra.mxu0 0.0
    %2649 = vmatpush.msra.mxu0 0.0
    %2650 = vmatpush.msra.mxu0 0.0
    %2651 = vmatpush.msra.mxu0 0.0
    %2652 = vmatpush.msra.mxu0 0.0
    %2653 = vmatpush.msra.mxu0 0.0
    %2654 = vmatpush.msra.mxu0 0.0
    %2655 = vmatpush.msra.mxu0 %v2632
    %2656 = vmatpush.msra.mxu0 %v2630
    %2657 = vmatmul.f32.gmra.mxu0 %v2636
    %v2658 = vpop.f32.mrf.mxu0
    %v2659 = vadd.f32 0.0, %v2658
    %2660 = vmatmul.f32.gmra.mxu0 %v2639
    %v2661 = vpop.f32.mrf.mxu0
    %v2662 = vadd.f32 0.0, %v2661
    %2663 = vdwg.mxu0
    %2664 = vrot.lane.b32.xlu0 %v384, 112
    %v2665 = vpop.permute.xlu0 %2664
    %2666 = vrot.lane.b32.xlu0 %v387, 112
    %v2667 = vpop.permute.xlu0 %2666
    %v2671 = vsel %vm676, %v2450, 0
    %v2674 = vsel %vm676, %v2451, 0
    %2676 = vmatpush.msra.mxu0 0.0
    %2677 = vmatpush.msra.mxu0 0.0
    %2678 = vmatpush.msra.mxu0 0.0
    %2679 = vmatpush.msra.mxu0 0.0
    %2680 = vmatpush.msra.mxu0 0.0
    %2681 = vmatpush.msra.mxu0 0.0
    %2682 = vmatpush.msra.mxu0 0.0
    %2683 = vmatpush.msra.mxu0 0.0
    %2684 = vmatpush.msra.mxu0 0.0
    %2685 = vmatpush.msra.mxu0 0.0
    %2686 = vmatpush.msra.mxu0 0.0
    %2687 = vmatpush.msra.mxu0 0.0
    %2688 = vmatpush.msra.mxu0 0.0
    %2689 = vmatpush.msra.mxu0 0.0
    %2690 = vmatpush.msra.mxu0 %v2667
    %2691 = vmatpush.msra.mxu0 %v2665
    %2692 = vmatmul.f32.gmra.mxu0 %v2671
    %v2693 = vpop.f32.mrf.mxu0
    %v2694 = vadd.f32 0.0, %v2693
    %2695 = vmatmul.f32.gmra.mxu0 %v2674
    %v2696 = vpop.f32.mrf.mxu0
    %v2697 = vadd.f32 0.0, %v2696
    %2698 = vdwg.mxu0
    %2699 = vrot.lane.b32.xlu0 %v390, 112
    %v2700 = vpop.permute.xlu0 %2699
    %2701 = vrot.lane.b32.xlu0 %v393, 112
    %v2702 = vpop.permute.xlu0 %2701
    %v2706 = vsel %vm676, %v2452, 0
    %v2709 = vsel %vm676, %v2453, 0
    %2711 = vmatpush.msra.mxu0 0.0
    %2712 = vmatpush.msra.mxu0 0.0
    %2713 = vmatpush.msra.mxu0 0.0
    %2714 = vmatpush.msra.mxu0 0.0
    %2715 = vmatpush.msra.mxu0 0.0
    %2716 = vmatpush.msra.mxu0 0.0
    %2717 = vmatpush.msra.mxu0 0.0
    %2718 = vmatpush.msra.mxu0 0.0
    %2719 = vmatpush.msra.mxu0 0.0
    %2720 = vmatpush.msra.mxu0 0.0
    %2721 = vmatpush.msra.mxu0 0.0
    %2722 = vmatpush.msra.mxu0 0.0
    %2723 = vmatpush.msra.mxu0 0.0
    %2724 = vmatpush.msra.mxu0 0.0
    %2725 = vmatpush.msra.mxu0 %v2702
    %2726 = vmatpush.msra.mxu0 %v2700
    %2727 = vmatmul.f32.gmra.mxu0 %v2706
    %v2728 = vpop.f32.mrf.mxu0
    %v2729 = vadd.f32 0.0, %v2728
    %2730 = vmatmul.f32.gmra.mxu0 %v2709
    %v2731 = vpop.f32.mrf.mxu0
    %v2732 = vadd.f32 0.0, %v2731
    %2733 = vdwg.mxu0
    %2750 = vrot.lane.b32.xlu0 %v2484, 16
    %v2751 = vpop.permute.xlu0 %2750
    %2752 = vrot.lane.b32.xlu0 %v2487, 16
    %v2753 = vpop.permute.xlu0 %2752
    %2754 = vrot.lane.b32.xlu0 %v2519, 16
    %v2755 = vpop.permute.xlu0 %2754
    %2756 = vrot.lane.b32.xlu0 %v2522, 16
    %v2757 = vpop.permute.xlu0 %2756
    %2758 = vrot.lane.b32.xlu0 %v2554, 16
    %v2759 = vpop.permute.xlu0 %2758
    %2760 = vrot.lane.b32.xlu0 %v2557, 16
    %v2761 = vpop.permute.xlu0 %2760
    %2762 = vrot.lane.b32.xlu0 %v2589, 16
    %v2763 = vpop.permute.xlu0 %2762
    %2764 = vrot.lane.b32.xlu0 %v2592, 16
    %v2765 = vpop.permute.xlu0 %2764
    %2766 = vrot.lane.b32.xlu0 %v2624, 16
    %v2767 = vpop.permute.xlu0 %2766
    %2768 = vrot.lane.b32.xlu0 %v2627, 16
    %v2769 = vpop.permute.xlu0 %2768
    %2770 = vrot.lane.b32.xlu0 %v2659, 16
    %v2771 = vpop.permute.xlu0 %2770
    %2772 = vrot.lane.b32.xlu0 %v2662, 16
    %v2773 = vpop.permute.xlu0 %2772
    %2774 = vrot.lane.b32.xlu0 %v2694, 16
    %v2775 = vpop.permute.xlu0 %2774
    %2776 = vrot.lane.b32.xlu0 %v2697, 16
    %v2777 = vpop.permute.xlu0 %2776
    %2778 = vrot.lane.b32.xlu0 %v2729, 16
    %v2779 = vpop.permute.xlu0 %2778
    %2780 = vrot.lane.b32.xlu0 %v2732, 16
    %v2781 = vpop.permute.xlu0 %2780
    %vm2798 = vcmask 195712
    %2799 = vst.msk [vmem:[#allocation2] sm:$0xff] %vm2798, %v2751
    %2800 = vst.msk [vmem:[#allocation2 + $0x8] sm:$0xff] %vm2798, %v2753
    %2801 = vst.msk [vmem:[#allocation2 + $0x10] sm:$0xff] %vm2798, %v2755
    %2802 = vst.msk [vmem:[#allocation2 + $0x18] sm:$0xff] %vm2798, %v2757
    %2803 = vst.msk [vmem:[#allocation2 + $0x20] sm:$0xff] %vm2798, %v2759
    %2804 = vst.msk [vmem:[#allocation2 + $0x28] sm:$0xff] %vm2798, %v2761
    %2805 = vst.msk [vmem:[#allocation2 + $0x30] sm:$0xff] %vm2798, %v2763
    %2806 = vst.msk [vmem:[#allocation2 + $0x38] sm:$0xff] %vm2798, %v2765
    %2807 = vst.msk [vmem:[#allocation2 + $0x40] sm:$0xff] %vm2798, %v2767
    %2808 = vst.msk [vmem:[#allocation2 + $0x48] sm:$0xff] %vm2798, %v2769
    %2809 = vst.msk [vmem:[#allocation2 + $0x50] sm:$0xff] %vm2798, %v2771
    %2810 = vst.msk [vmem:[#allocation2 + $0x58] sm:$0xff] %vm2798, %v2773
    %2811 = vst.msk [vmem:[#allocation2 + $0x60] sm:$0xff] %vm2798, %v2775
    %2812 = vst.msk [vmem:[#allocation2 + $0x68] sm:$0xff] %vm2798, %v2777
    %2813 = vst.msk [vmem:[#allocation2 + $0x70] sm:$0xff] %vm2798, %v2779
    %2814 = vst.msk [vmem:[#allocation2 + $0x78] sm:$0xff] %vm2798, %v2781
    %2815 = vrot.lane.b32.xlu0 %v202, 104
    %v2816 = vpop.permute.xlu0 %2815
    %2817 = vrot.lane.b32.xlu0 %v205, 104
    %v2818 = vpop.permute.xlu0 %2817
    %2819 = vrot.lane.b32.xlu0 %v275, 104
    %v2820 = vpop.permute.xlu0 %2819
    %2821 = vrot.lane.b32.xlu0 %v278, 104
    %v2822 = vpop.permute.xlu0 %2821
    %v2823 = vsel %vm395, %v2816, 0
    %v2825 = vsel %vm395, %v2818, 0
    %v2827 = vsel %vm395, %v2820, 0
    %v2829 = vsel %vm395, %v2822, 0
    %2831 = vmatpush.xpose.msra.mxu0 0.0
    %2832 = vmatpush.xpose.msra.mxu0 0.0
    %2833 = vmatpush.xpose.msra.mxu0 0.0
    %2834 = vmatpush.xpose.msra.mxu0 0.0
    %2835 = vmatpush.xpose.msra.mxu0 0.0
    %2836 = vmatpush.xpose.msra.mxu0 0.0
    %2837 = vmatpush.xpose.msra.mxu0 0.0
    %2838 = vmatpush.xpose.msra.mxu0 0.0
    %2839 = vmatpush.xpose.msra.mxu0 0.0
    %2840 = vmatpush.xpose.msra.mxu0 0.0
    %2841 = vmatpush.xpose.msra.mxu0 0.0
    %2842 = vmatpush.xpose.msra.mxu0 0.0
    %2843 = vmatpush.xpose.msra.mxu0 0.0
    %2844 = vmatpush.xpose.msra.mxu0 0.0
    %2845 = vmatpush.xpose.msra.mxu0 %v2829
    %2846 = vmatpush.xpose.msra.mxu0 %v2827
    %2847 = vmatmul.f32.gmra.mxu0 %v2823
    %v2848 = vpop.f32.mrf.mxu0
    %v2849 = vadd.f32 0.0, %v2848
    %2850 = vmatmul.f32.gmra.mxu0 %v2825
    %v2851 = vpop.f32.mrf.mxu0
    %v2852 = vadd.f32 0.0, %v2851
    %2853 = vdwg.mxu0
    %2854 = vrot.lane.b32.xlu0 %v208, 104
    %v2855 = vpop.permute.xlu0 %2854
    %2856 = vrot.lane.b32.xlu0 %v211, 104
    %v2857 = vpop.permute.xlu0 %2856
    %2858 = vrot.lane.b32.xlu0 %v281, 104
    %v2859 = vpop.permute.xlu0 %2858
    %2860 = vrot.lane.b32.xlu0 %v284, 104
    %v2861 = vpop.permute.xlu0 %2860
    %v2862 = vsel %vm395, %v2855, 0
    %v2864 = vsel %vm395, %v2857, 0
    %v2866 = vsel %vm395, %v2859, 0
    %v2868 = vsel %vm395, %v2861, 0
    %2870 = vmatpush.xpose.msra.mxu0 0.0
    %2871 = vmatpush.xpose.msra.mxu0 0.0
    %2872 = vmatpush.xpose.msra.mxu0 0.0
    %2873 = vmatpush.xpose.msra.mxu0 0.0
    %2874 = vmatpush.xpose.msra.mxu0 0.0
    %2875 = vmatpush.xpose.msra.mxu0 0.0
    %2876 = vmatpush.xpose.msra.mxu0 0.0
    %2877 = vmatpush.xpose.msra.mxu0 0.0
    %2878 = vmatpush.xpose.msra.mxu0 0.0
    %2879 = vmatpush.xpose.msra.mxu0 0.0
    %2880 = vmatpush.xpose.msra.mxu0 0.0
    %2881 = vmatpush.xpose.msra.mxu0 0.0
    %2882 = vmatpush.xpose.msra.mxu0 0.0
    %2883 = vmatpush.xpose.msra.mxu0 0.0
    %2884 = vmatpush.xpose.msra.mxu0 %v2868
    %2885 = vmatpush.xpose.msra.mxu0 %v2866
    %2886 = vmatmul.f32.gmra.mxu0 %v2862
    %v2887 = vpop.f32.mrf.mxu0
    %v2888 = vadd.f32 0.0, %v2887
    %2889 = vmatmul.f32.gmra.mxu0 %v2864
    %v2890 = vpop.f32.mrf.mxu0
    %v2891 = vadd.f32 0.0, %v2890
    %2892 = vdwg.mxu0
    %2893 = vrot.lane.b32.xlu0 %v214, 104
    %v2894 = vpop.permute.xlu0 %2893
    %2895 = vrot.lane.b32.xlu0 %v217, 104
    %v2896 = vpop.permute.xlu0 %2895
    %2897 = vrot.lane.b32.xlu0 %v287, 104
    %v2898 = vpop.permute.xlu0 %2897
    %2899 = vrot.lane.b32.xlu0 %v290, 104
    %v2900 = vpop.permute.xlu0 %2899
    %v2901 = vsel %vm395, %v2894, 0
    %v2903 = vsel %vm395, %v2896, 0
    %v2905 = vsel %vm395, %v2898, 0
    %v2907 = vsel %vm395, %v2900, 0
    %2909 = vmatpush.xpose.msra.mxu0 0.0
    %2910 = vmatpush.xpose.msra.mxu0 0.0
    %2911 = vmatpush.xpose.msra.mxu0 0.0
    %2912 = vmatpush.xpose.msra.mxu0 0.0
    %2913 = vmatpush.xpose.msra.mxu0 0.0
    %2914 = vmatpush.xpose.msra.mxu0 0.0
    %2915 = vmatpush.xpose.msra.mxu0 0.0
    %2916 = vmatpush.xpose.msra.mxu0 0.0
    %2917 = vmatpush.xpose.msra.mxu0 0.0
    %2918 = vmatpush.xpose.msra.mxu0 0.0
    %2919 = vmatpush.xpose.msra.mxu0 0.0
    %2920 = vmatpush.xpose.msra.mxu0 0.0
    %2921 = vmatpush.xpose.msra.mxu0 0.0
    %2922 = vmatpush.xpose.msra.mxu0 0.0
    %2923 = vmatpush.xpose.msra.mxu0 %v2907
    %2924 = vmatpush.xpose.msra.mxu0 %v2905
    %2925 = vmatmul.f32.gmra.mxu0 %v2901
    %v2926 = vpop.f32.mrf.mxu0
    %v2927 = vadd.f32 0.0, %v2926
    %2928 = vmatmul.f32.gmra.mxu0 %v2903
    %v2929 = vpop.f32.mrf.mxu0
    %v2930 = vadd.f32 0.0, %v2929
    %2931 = vdwg.mxu0
    %2932 = vrot.lane.b32.xlu0 %v220, 104
    %v2933 = vpop.permute.xlu0 %2932
    %2934 = vrot.lane.b32.xlu0 %v223, 104
    %v2935 = vpop.permute.xlu0 %2934
    %2936 = vrot.lane.b32.xlu0 %v293, 104
    %v2937 = vpop.permute.xlu0 %2936
    %2938 = vrot.lane.b32.xlu0 %v296, 104
    %v2939 = vpop.permute.xlu0 %2938
    %v2940 = vsel %vm395, %v2933, 0
    %v2942 = vsel %vm395, %v2935, 0
    %v2944 = vsel %vm395, %v2937, 0
    %v2946 = vsel %vm395, %v2939, 0
    %2948 = vmatpush.xpose.msra.mxu0 0.0
    %2949 = vmatpush.xpose.msra.mxu0 0.0
    %2950 = vmatpush.xpose.msra.mxu0 0.0
    %2951 = vmatpush.xpose.msra.mxu0 0.0
    %2952 = vmatpush.xpose.msra.mxu0 0.0
    %2953 = vmatpush.xpose.msra.mxu0 0.0
    %2954 = vmatpush.xpose.msra.mxu0 0.0
    %2955 = vmatpush.xpose.msra.mxu0 0.0
    %2956 = vmatpush.xpose.msra.mxu0 0.0
    %2957 = vmatpush.xpose.msra.mxu0 0.0
    %2958 = vmatpush.xpose.msra.mxu0 0.0
    %2959 = vmatpush.xpose.msra.mxu0 0.0
    %2960 = vmatpush.xpose.msra.mxu0 0.0
    %2961 = vmatpush.xpose.msra.mxu0 0.0
    %2962 = vmatpush.xpose.msra.mxu0 %v2946
    %2963 = vmatpush.xpose.msra.mxu0 %v2944
    %2964 = vmatmul.f32.gmra.mxu0 %v2940
    %v2965 = vpop.f32.mrf.mxu0
    %v2966 = vadd.f32 0.0, %v2965
    %2967 = vmatmul.f32.gmra.mxu0 %v2942
    %v2968 = vpop.f32.mrf.mxu0
    %v2969 = vadd.f32 0.0, %v2968
    %2970 = vdwg.mxu0
    %2971 = vrot.lane.b32.xlu0 %v226, 104
    %v2972 = vpop.permute.xlu0 %2971
    %2973 = vrot.lane.b32.xlu0 %v229, 104
    %v2974 = vpop.permute.xlu0 %2973
    %2975 = vrot.lane.b32.xlu0 %v299, 104
    %v2976 = vpop.permute.xlu0 %2975
    %2977 = vrot.lane.b32.xlu0 %v302, 104
    %v2978 = vpop.permute.xlu0 %2977
    %v2979 = vsel %vm395, %v2972, 0
    %v2981 = vsel %vm395, %v2974, 0
    %v2983 = vsel %vm395, %v2976, 0
    %v2985 = vsel %vm395, %v2978, 0
    %2987 = vmatpush.xpose.msra.mxu0 0.0
    %2988 = vmatpush.xpose.msra.mxu0 0.0
    %2989 = vmatpush.xpose.msra.mxu0 0.0
    %2990 = vmatpush.xpose.msra.mxu0 0.0
    %2991 = vmatpush.xpose.msra.mxu0 0.0
    %2992 = vmatpush.xpose.msra.mxu0 0.0
    %2993 = vmatpush.xpose.msra.mxu0 0.0
    %2994 = vmatpush.xpose.msra.mxu0 0.0
    %2995 = vmatpush.xpose.msra.mxu0 0.0
    %2996 = vmatpush.xpose.msra.mxu0 0.0
    %2997 = vmatpush.xpose.msra.mxu0 0.0
    %2998 = vmatpush.xpose.msra.mxu0 0.0
    %2999 = vmatpush.xpose.msra.mxu0 0.0
    %3000 = vmatpush.xpose.msra.mxu0 0.0
    %3001 = vmatpush.xpose.msra.mxu0 %v2985
    %3002 = vmatpush.xpose.msra.mxu0 %v2983
    %3003 = vmatmul.f32.gmra.mxu0 %v2979
    %v3004 = vpop.f32.mrf.mxu0
    %v3005 = vadd.f32 0.0, %v3004
    %3006 = vmatmul.f32.gmra.mxu0 %v2981
    %v3007 = vpop.f32.mrf.mxu0
    %v3008 = vadd.f32 0.0, %v3007
    %3009 = vdwg.mxu0
    %3010 = vrot.lane.b32.xlu0 %v232, 104
    %v3011 = vpop.permute.xlu0 %3010
    %3012 = vrot.lane.b32.xlu0 %v235, 104
    %v3013 = vpop.permute.xlu0 %3012
    %3014 = vrot.lane.b32.xlu0 %v305, 104
    %v3015 = vpop.permute.xlu0 %3014
    %3016 = vrot.lane.b32.xlu0 %v308, 104
    %v3017 = vpop.permute.xlu0 %3016
    %v3018 = vsel %vm395, %v3011, 0
    %v3020 = vsel %vm395, %v3013, 0
    %v3022 = vsel %vm395, %v3015, 0
    %v3024 = vsel %vm395, %v3017, 0
    %3026 = vmatpush.xpose.msra.mxu0 0.0
    %3027 = vmatpush.xpose.msra.mxu0 0.0
    %3028 = vmatpush.xpose.msra.mxu0 0.0
    %3029 = vmatpush.xpose.msra.mxu0 0.0
    %3030 = vmatpush.xpose.msra.mxu0 0.0
    %3031 = vmatpush.xpose.msra.mxu0 0.0
    %3032 = vmatpush.xpose.msra.mxu0 0.0
    %3033 = vmatpush.xpose.msra.mxu0 0.0
    %3034 = vmatpush.xpose.msra.mxu0 0.0
    %3035 = vmatpush.xpose.msra.mxu0 0.0
    %3036 = vmatpush.xpose.msra.mxu0 0.0
    %3037 = vmatpush.xpose.msra.mxu0 0.0
    %3038 = vmatpush.xpose.msra.mxu0 0.0
    %3039 = vmatpush.xpose.msra.mxu0 0.0
    %3040 = vmatpush.xpose.msra.mxu0 %v3024
    %3041 = vmatpush.xpose.msra.mxu0 %v3022
    %3042 = vmatmul.f32.gmra.mxu0 %v3018
    %v3043 = vpop.f32.mrf.mxu0
    %v3044 = vadd.f32 0.0, %v3043
    %3045 = vmatmul.f32.gmra.mxu0 %v3020
    %v3046 = vpop.f32.mrf.mxu0
    %v3047 = vadd.f32 0.0, %v3046
    %3048 = vdwg.mxu0
    %3049 = vrot.lane.b32.xlu0 %v238, 104
    %v3050 = vpop.permute.xlu0 %3049
    %3051 = vrot.lane.b32.xlu0 %v241, 104
    %v3052 = vpop.permute.xlu0 %3051
    %3053 = vrot.lane.b32.xlu0 %v311, 104
    %v3054 = vpop.permute.xlu0 %3053
    %3055 = vrot.lane.b32.xlu0 %v314, 104
    %v3056 = vpop.permute.xlu0 %3055
    %v3057 = vsel %vm395, %v3050, 0
    %v3059 = vsel %vm395, %v3052, 0
    %v3061 = vsel %vm395, %v3054, 0
    %v3063 = vsel %vm395, %v3056, 0
    %3065 = vmatpush.xpose.msra.mxu0 0.0
    %3066 = vmatpush.xpose.msra.mxu0 0.0
    %3067 = vmatpush.xpose.msra.mxu0 0.0
    %3068 = vmatpush.xpose.msra.mxu0 0.0
    %3069 = vmatpush.xpose.msra.mxu0 0.0
    %3070 = vmatpush.xpose.msra.mxu0 0.0
    %3071 = vmatpush.xpose.msra.mxu0 0.0
    %3072 = vmatpush.xpose.msra.mxu0 0.0
    %3073 = vmatpush.xpose.msra.mxu0 0.0
    %3074 = vmatpush.xpose.msra.mxu0 0.0
    %3075 = vmatpush.xpose.msra.mxu0 0.0
    %3076 = vmatpush.xpose.msra.mxu0 0.0
    %3077 = vmatpush.xpose.msra.mxu0 0.0
    %3078 = vmatpush.xpose.msra.mxu0 0.0
    %3079 = vmatpush.xpose.msra.mxu0 %v3063
    %3080 = vmatpush.xpose.msra.mxu0 %v3061
    %3081 = vmatmul.f32.gmra.mxu0 %v3057
    %v3082 = vpop.f32.mrf.mxu0
    %v3083 = vadd.f32 0.0, %v3082
    %3084 = vmatmul.f32.gmra.mxu0 %v3059
    %v3085 = vpop.f32.mrf.mxu0
    %v3086 = vadd.f32 0.0, %v3085
    %3087 = vdwg.mxu0
    %3088 = vrot.lane.b32.xlu0 %v244, 104
    %v3089 = vpop.permute.xlu0 %3088
    %3090 = vrot.lane.b32.xlu0 %v247, 104
    %v3091 = vpop.permute.xlu0 %3090
    %3092 = vrot.lane.b32.xlu0 %v317, 104
    %v3093 = vpop.permute.xlu0 %3092
    %3094 = vrot.lane.b32.xlu0 %v320, 104
    %v3095 = vpop.permute.xlu0 %3094
    %v3096 = vsel %vm395, %v3089, 0
    %v3098 = vsel %vm395, %v3091, 0
    %v3100 = vsel %vm395, %v3093, 0
    %v3102 = vsel %vm395, %v3095, 0
    %3104 = vmatpush.xpose.msra.mxu0 0.0
    %3105 = vmatpush.xpose.msra.mxu0 0.0
    %3106 = vmatpush.xpose.msra.mxu0 0.0
    %3107 = vmatpush.xpose.msra.mxu0 0.0
    %3108 = vmatpush.xpose.msra.mxu0 0.0
    %3109 = vmatpush.xpose.msra.mxu0 0.0
    %3110 = vmatpush.xpose.msra.mxu0 0.0
    %3111 = vmatpush.xpose.msra.mxu0 0.0
    %3112 = vmatpush.xpose.msra.mxu0 0.0
    %3113 = vmatpush.xpose.msra.mxu0 0.0
    %3114 = vmatpush.xpose.msra.mxu0 0.0
    %3115 = vmatpush.xpose.msra.mxu0 0.0
    %3116 = vmatpush.xpose.msra.mxu0 0.0
    %3117 = vmatpush.xpose.msra.mxu0 0.0
    %3118 = vmatpush.xpose.msra.mxu0 %v3102
    %3119 = vmatpush.xpose.msra.mxu0 %v3100
    %3120 = vmatmul.f32.gmra.mxu0 %v3096
    %v3121 = vpop.f32.mrf.mxu0
    %v3122 = vadd.f32 0.0, %v3121
    %3123 = vmatmul.f32.gmra.mxu0 %v3098
    %v3124 = vpop.f32.mrf.mxu0
    %v3125 = vadd.f32 0.0, %v3124
    %3126 = vdwg.mxu0
    %v3127 = vsel %vm676, %v2849, -inf
    %3128 = vmax.xlane.f32.xlu0 %v3127
    %v3129 = vpop.xlane.xlu0 %3128
    %v3130 = vsel %vm676, %v2852, -inf
    %3131 = vmax.xlane.f32.xlu0 %v3130
    %v3132 = vpop.xlane.xlu0 %3131
    %v3133 = vsel %vm676, %v2888, -inf
    %3134 = vmax.xlane.f32.xlu0 %v3133
    %v3135 = vpop.xlane.xlu0 %3134
    %v3136 = vsel %vm676, %v2891, -inf
    %3137 = vmax.xlane.f32.xlu0 %v3136
    %v3138 = vpop.xlane.xlu0 %3137
    %v3139 = vsel %vm676, %v2927, -inf
    %3140 = vmax.xlane.f32.xlu0 %v3139
    %v3141 = vpop.xlane.xlu0 %3140
    %v3142 = vsel %vm676, %v2930, -inf
    %3143 = vmax.xlane.f32.xlu0 %v3142
    %v3144 = vpop.xlane.xlu0 %3143
    %v3145 = vsel %vm676, %v2966, -inf
    %3146 = vmax.xlane.f32.xlu0 %v3145
    %v3147 = vpop.xlane.xlu0 %3146
    %v3148 = vsel %vm676, %v2969, -inf
    %3149 = vmax.xlane.f32.xlu0 %v3148
    %v3150 = vpop.xlane.xlu0 %3149
    %v3151 = vsel %vm676, %v3005, -inf
    %3152 = vmax.xlane.f32.xlu0 %v3151
    %v3153 = vpop.xlane.xlu0 %3152
    %v3154 = vsel %vm676, %v3008, -inf
    %3155 = vmax.xlane.f32.xlu0 %v3154
    %v3156 = vpop.xlane.xlu0 %3155
    %v3157 = vsel %vm676, %v3044, -inf
    %3158 = vmax.xlane.f32.xlu0 %v3157
    %v3159 = vpop.xlane.xlu0 %3158
    %v3160 = vsel %vm676, %v3047, -inf
    %3161 = vmax.xlane.f32.xlu0 %v3160
    %v3162 = vpop.xlane.xlu0 %3161
    %v3163 = vsel %vm676, %v3083, -inf
    %3164 = vmax.xlane.f32.xlu0 %v3163
    %v3165 = vpop.xlane.xlu0 %3164
    %v3166 = vsel %vm676, %v3086, -inf
    %3167 = vmax.xlane.f32.xlu0 %v3166
    %v3168 = vpop.xlane.xlu0 %3167
    %v3169 = vsel %vm676, %v3122, -inf
    %3170 = vmax.xlane.f32.xlu0 %v3169
    %v3171 = vpop.xlane.xlu0 %3170
    %v3172 = vsel %vm676, %v3125, -inf
    %3173 = vmax.xlane.f32.xlu0 %v3172
    %v3174 = vpop.xlane.xlu0 %3173
    %v3175 = vsub.f32 %v2849, %v3129
    %v3176 = vsub.f32 %v2852, %v3132
    %v3177 = vsub.f32 %v2888, %v3135
    %v3178 = vsub.f32 %v2891, %v3138
    %v3179 = vsub.f32 %v2927, %v3141
    %v3180 = vsub.f32 %v2930, %v3144
    %v3181 = vsub.f32 %v2966, %v3147
    %v3182 = vsub.f32 %v2969, %v3150
    %v3183 = vsub.f32 %v3005, %v3153
    %v3184 = vsub.f32 %v3008, %v3156
    %v3185 = vsub.f32 %v3044, %v3159
    %v3186 = vsub.f32 %v3047, %v3162
    %v3187 = vsub.f32 %v3083, %v3165
    %v3188 = vsub.f32 %v3086, %v3168
    %v3189 = vsub.f32 %v3122, %v3171
    %v3190 = vsub.f32 %v3125, %v3174
    %v3191 = vmul.f32 %v3175, 1.442695
    %v3192 = vpow.pop %v3191
    %v3193 = vmul.f32 %v3176, 1.442695
    %v3194 = vpow.pop %v3193
    %v3195 = vmul.f32 %v3177, 1.442695
    %v3196 = vpow.pop %v3195
    %v3197 = vmul.f32 %v3178, 1.442695
    %v3198 = vpow.pop %v3197
    %v3199 = vmul.f32 %v3179, 1.442695
    %v3200 = vpow.pop %v3199
    %v3201 = vmul.f32 %v3180, 1.442695
    %v3202 = vpow.pop %v3201
    %v3203 = vmul.f32 %v3181, 1.442695
    %v3204 = vpow.pop %v3203
    %v3205 = vmul.f32 %v3182, 1.442695
    %v3206 = vpow.pop %v3205
    %v3207 = vmul.f32 %v3183, 1.442695
    %v3208 = vpow.pop %v3207
    %v3209 = vmul.f32 %v3184, 1.442695
    %v3210 = vpow.pop %v3209
    %v3211 = vmul.f32 %v3185, 1.442695
    %v3212 = vpow.pop %v3211
    %v3213 = vmul.f32 %v3186, 1.442695
    %v3214 = vpow.pop %v3213
    %v3215 = vmul.f32 %v3187, 1.442695
    %v3216 = vpow.pop %v3215
    %v3217 = vmul.f32 %v3188, 1.442695
    %v3218 = vpow.pop %v3217
    %v3219 = vmul.f32 %v3189, 1.442695
    %v3220 = vpow.pop %v3219
    %v3221 = vmul.f32 %v3190, 1.442695
    %v3222 = vpow.pop %v3221
    %v3223 = vsel %vm676, %v3192, 0.0
    %3224 = vadd.xlane.f32.xlu0 %v3223
    %v3225 = vpop.xlane.xlu0 %3224
    %v3226 = vsel %vm676, %v3194, 0.0
    %3227 = vadd.xlane.f32.xlu0 %v3226
    %v3228 = vpop.xlane.xlu0 %3227
    %v3229 = vsel %vm676, %v3196, 0.0
    %3230 = vadd.xlane.f32.xlu0 %v3229
    %v3231 = vpop.xlane.xlu0 %3230
    %v3232 = vsel %vm676, %v3198, 0.0
    %3233 = vadd.xlane.f32.xlu0 %v3232
    %v3234 = vpop.xlane.xlu0 %3233
    %v3235 = vsel %vm676, %v3200, 0.0
    %3236 = vadd.xlane.f32.xlu0 %v3235
    %v3237 = vpop.xlane.xlu0 %3236
    %v3238 = vsel %vm676, %v3202, 0.0
    %3239 = vadd.xlane.f32.xlu0 %v3238
    %v3240 = vpop.xlane.xlu0 %3239
    %v3241 = vsel %vm676, %v3204, 0.0
    %3242 = vadd.xlane.f32.xlu0 %v3241
    %v3243 = vpop.xlane.xlu0 %3242
    %v3244 = vsel %vm676, %v3206, 0.0
    %3245 = vadd.xlane.f32.xlu0 %v3244
    %v3246 = vpop.xlane.xlu0 %3245
    %v3247 = vsel %vm676, %v3208, 0.0
    %3248 = vadd.xlane.f32.xlu0 %v3247
    %v3249 = vpop.xlane.xlu0 %3248
    %v3250 = vsel %vm676, %v3210, 0.0
    %3251 = vadd.xlane.f32.xlu0 %v3250
    %v3252 = vpop.xlane.xlu0 %3251
    %v3253 = vsel %vm676, %v3212, 0.0
    %3254 = vadd.xlane.f32.xlu0 %v3253
    %v3255 = vpop.xlane.xlu0 %3254
    %v3256 = vsel %vm676, %v3214, 0.0
    %3257 = vadd.xlane.f32.xlu0 %v3256
    %v3258 = vpop.xlane.xlu0 %3257
    %v3259 = vsel %vm676, %v3216, 0.0
    %3260 = vadd.xlane.f32.xlu0 %v3259
    %v3261 = vpop.xlane.xlu0 %3260
    %v3262 = vsel %vm676, %v3218, 0.0
    %3263 = vadd.xlane.f32.xlu0 %v3262
    %v3264 = vpop.xlane.xlu0 %3263
    %v3265 = vsel %vm676, %v3220, 0.0
    %3266 = vadd.xlane.f32.xlu0 %v3265
    %v3267 = vpop.xlane.xlu0 %3266
    %v3268 = vsel %vm676, %v3222, 0.0
    %3269 = vadd.xlane.f32.xlu0 %v3268
    %v3270 = vpop.xlane.xlu0 %3269
    %v3271 = vrcp.pop %v3225
    %v3272 = vrcp.pop %v3228
    %v3273 = vrcp.pop %v3231
    %v3274 = vrcp.pop %v3234
    %v3275 = vrcp.pop %v3237
    %v3276 = vrcp.pop %v3240
    %v3277 = vrcp.pop %v3243
    %v3278 = vrcp.pop %v3246
    %v3279 = vrcp.pop %v3249
    %v3280 = vrcp.pop %v3252
    %v3281 = vrcp.pop %v3255
    %v3282 = vrcp.pop %v3258
    %v3283 = vrcp.pop %v3261
    %v3284 = vrcp.pop %v3264
    %v3285 = vrcp.pop %v3267
    %v3286 = vrcp.pop %v3270
    %v3287 = vmul.f32 %v3192, %v3271
    %v3288 = vmul.f32 %v3194, %v3272
    %v3289 = vmul.f32 %v3196, %v3273
    %v3290 = vmul.f32 %v3198, %v3274
    %v3291 = vmul.f32 %v3200, %v3275
    %v3292 = vmul.f32 %v3202, %v3276
    %v3293 = vmul.f32 %v3204, %v3277
    %v3294 = vmul.f32 %v3206, %v3278
    %v3295 = vmul.f32 %v3208, %v3279
    %v3296 = vmul.f32 %v3210, %v3280
    %v3297 = vmul.f32 %v3212, %v3281
    %v3298 = vmul.f32 %v3214, %v3282
    %v3299 = vmul.f32 %v3216, %v3283
    %v3300 = vmul.f32 %v3218, %v3284
    %v3301 = vmul.f32 %v3220, %v3285
    %v3302 = vmul.f32 %v3222, %v3286
    %3303 = vrot.lane.b32.xlu0 %v348, 104
    %v3304 = vpop.permute.xlu0 %3303
    %3305 = vrot.lane.b32.xlu0 %v351, 104
    %v3306 = vpop.permute.xlu0 %3305
    %v3310 = vsel %vm676, %v3287, 0
    %v3313 = vsel %vm676, %v3288, 0
    %3315 = vmatpush.msra.mxu0 0.0
    %3316 = vmatpush.msra.mxu0 0.0
    %3317 = vmatpush.msra.mxu0 0.0
    %3318 = vmatpush.msra.mxu0 0.0
    %3319 = vmatpush.msra.mxu0 0.0
    %3320 = vmatpush.msra.mxu0 0.0
    %3321 = vmatpush.msra.mxu0 0.0
    %3322 = vmatpush.msra.mxu0 0.0
    %3323 = vmatpush.msra.mxu0 0.0
    %3324 = vmatpush.msra.mxu0 0.0
    %3325 = vmatpush.msra.mxu0 0.0
    %3326 = vmatpush.msra.mxu0 0.0
    %3327 = vmatpush.msra.mxu0 0.0
    %3328 = vmatpush.msra.mxu0 0.0
    %3329 = vmatpush.msra.mxu0 %v3306
    %3330 = vmatpush.msra.mxu0 %v3304
    %3331 = vmatmul.f32.gmra.mxu0 %v3310
    %v3332 = vpop.f32.mrf.mxu0
    %v3333 = vadd.f32 0.0, %v3332
    %3334 = vmatmul.f32.gmra.mxu0 %v3313
    %v3335 = vpop.f32.mrf.mxu0
    %v3336 = vadd.f32 0.0, %v3335
    %3337 = vdwg.mxu0
    %3338 = vrot.lane.b32.xlu0 %v354, 104
    %v3339 = vpop.permute.xlu0 %3338
    %3340 = vrot.lane.b32.xlu0 %v357, 104
    %v3341 = vpop.permute.xlu0 %3340
    %v3345 = vsel %vm676, %v3289, 0
    %v3348 = vsel %vm676, %v3290, 0
    %3350 = vmatpush.msra.mxu0 0.0
    %3351 = vmatpush.msra.mxu0 0.0
    %3352 = vmatpush.msra.mxu0 0.0
    %3353 = vmatpush.msra.mxu0 0.0
    %3354 = vmatpush.msra.mxu0 0.0
    %3355 = vmatpush.msra.mxu0 0.0
    %3356 = vmatpush.msra.mxu0 0.0
    %3357 = vmatpush.msra.mxu0 0.0
    %3358 = vmatpush.msra.mxu0 0.0
    %3359 = vmatpush.msra.mxu0 0.0
    %3360 = vmatpush.msra.mxu0 0.0
    %3361 = vmatpush.msra.mxu0 0.0
    %3362 = vmatpush.msra.mxu0 0.0
    %3363 = vmatpush.msra.mxu0 0.0
    %3364 = vmatpush.msra.mxu0 %v3341
    %3365 = vmatpush.msra.mxu0 %v3339
    %3366 = vmatmul.f32.gmra.mxu0 %v3345
    %v3367 = vpop.f32.mrf.mxu0
    %v3368 = vadd.f32 0.0, %v3367
    %3369 = vmatmul.f32.gmra.mxu0 %v3348
    %v3370 = vpop.f32.mrf.mxu0
    %v3371 = vadd.f32 0.0, %v3370
    %3372 = vdwg.mxu0
    %3373 = vrot.lane.b32.xlu0 %v360, 104
    %v3374 = vpop.permute.xlu0 %3373
    %3375 = vrot.lane.b32.xlu0 %v363, 104
    %v3376 = vpop.permute.xlu0 %3375
    %v3380 = vsel %vm676, %v3291, 0
    %v3383 = vsel %vm676, %v3292, 0
    %3385 = vmatpush.msra.mxu0 0.0
    %3386 = vmatpush.msra.mxu0 0.0
    %3387 = vmatpush.msra.mxu0 0.0
    %3388 = vmatpush.msra.mxu0 0.0
    %3389 = vmatpush.msra.mxu0 0.0
    %3390 = vmatpush.msra.mxu0 0.0
    %3391 = vmatpush.msra.mxu0 0.0
    %3392 = vmatpush.msra.mxu0 0.0
    %3393 = vmatpush.msra.mxu0 0.0
    %3394 = vmatpush.msra.mxu0 0.0
    %3395 = vmatpush.msra.mxu0 0.0
    %3396 = vmatpush.msra.mxu0 0.0
    %3397 = vmatpush.msra.mxu0 0.0
    %3398 = vmatpush.msra.mxu0 0.0
    %3399 = vmatpush.msra.mxu0 %v3376
    %3400 = vmatpush.msra.mxu0 %v3374
    %3401 = vmatmul.f32.gmra.mxu0 %v3380
    %v3402 = vpop.f32.mrf.mxu0
    %v3403 = vadd.f32 0.0, %v3402
    %3404 = vmatmul.f32.gmra.mxu0 %v3383
    %v3405 = vpop.f32.mrf.mxu0
    %v3406 = vadd.f32 0.0, %v3405
    %3407 = vdwg.mxu0
    %3408 = vrot.lane.b32.xlu0 %v366, 104
    %v3409 = vpop.permute.xlu0 %3408
    %3410 = vrot.lane.b32.xlu0 %v369, 104
    %v3411 = vpop.permute.xlu0 %3410
    %v3415 = vsel %vm676, %v3293, 0
    %v3418 = vsel %vm676, %v3294, 0
    %3420 = vmatpush.msra.mxu0 0.0
    %3421 = vmatpush.msra.mxu0 0.0
    %3422 = vmatpush.msra.mxu0 0.0
    %3423 = vmatpush.msra.mxu0 0.0
    %3424 = vmatpush.msra.mxu0 0.0
    %3425 = vmatpush.msra.mxu0 0.0
    %3426 = vmatpush.msra.mxu0 0.0
    %3427 = vmatpush.msra.mxu0 0.0
    %3428 = vmatpush.msra.mxu0 0.0
    %3429 = vmatpush.msra.mxu0 0.0
    %3430 = vmatpush.msra.mxu0 0.0
    %3431 = vmatpush.msra.mxu0 0.0
    %3432 = vmatpush.msra.mxu0 0.0
    %3433 = vmatpush.msra.mxu0 0.0
    %3434 = vmatpush.msra.mxu0 %v3411
    %3435 = vmatpush.msra.mxu0 %v3409
    %3436 = vmatmul.f32.gmra.mxu0 %v3415
    %v3437 = vpop.f32.mrf.mxu0
    %v3438 = vadd.f32 0.0, %v3437
    %3439 = vmatmul.f32.gmra.mxu0 %v3418
    %v3440 = vpop.f32.mrf.mxu0
    %v3441 = vadd.f32 0.0, %v3440
    %3442 = vdwg.mxu0
    %3443 = vrot.lane.b32.xlu0 %v372, 104
    %v3444 = vpop.permute.xlu0 %3443
    %3445 = vrot.lane.b32.xlu0 %v375, 104
    %v3446 = vpop.permute.xlu0 %3445
    %v3450 = vsel %vm676, %v3295, 0
    %v3453 = vsel %vm676, %v3296, 0
    %3455 = vmatpush.msra.mxu0 0.0
    %3456 = vmatpush.msra.mxu0 0.0
    %3457 = vmatpush.msra.mxu0 0.0
    %3458 = vmatpush.msra.mxu0 0.0
    %3459 = vmatpush.msra.mxu0 0.0
    %3460 = vmatpush.msra.mxu0 0.0
    %3461 = vmatpush.msra.mxu0 0.0
    %3462 = vmatpush.msra.mxu0 0.0
    %3463 = vmatpush.msra.mxu0 0.0
    %3464 = vmatpush.msra.mxu0 0.0
    %3465 = vmatpush.msra.mxu0 0.0
    %3466 = vmatpush.msra.mxu0 0.0
    %3467 = vmatpush.msra.mxu0 0.0
    %3468 = vmatpush.msra.mxu0 0.0
    %3469 = vmatpush.msra.mxu0 %v3446
    %3470 = vmatpush.msra.mxu0 %v3444
    %3471 = vmatmul.f32.gmra.mxu0 %v3450
    %v3472 = vpop.f32.mrf.mxu0
    %v3473 = vadd.f32 0.0, %v3472
    %3474 = vmatmul.f32.gmra.mxu0 %v3453
    %v3475 = vpop.f32.mrf.mxu0
    %v3476 = vadd.f32 0.0, %v3475
    %3477 = vdwg.mxu0
    %3478 = vrot.lane.b32.xlu0 %v378, 104
    %v3479 = vpop.permute.xlu0 %3478
    %3480 = vrot.lane.b32.xlu0 %v381, 104
    %v3481 = vpop.permute.xlu0 %3480
    %v3485 = vsel %vm676, %v3297, 0
    %v3488 = vsel %vm676, %v3298, 0
    %3490 = vmatpush.msra.mxu0 0.0
    %3491 = vmatpush.msra.mxu0 0.0
    %3492 = vmatpush.msra.mxu0 0.0
    %3493 = vmatpush.msra.mxu0 0.0
    %3494 = vmatpush.msra.mxu0 0.0
    %3495 = vmatpush.msra.mxu0 0.0
    %3496 = vmatpush.msra.mxu0 0.0
    %3497 = vmatpush.msra.mxu0 0.0
    %3498 = vmatpush.msra.mxu0 0.0
    %3499 = vmatpush.msra.mxu0 0.0
    %3500 = vmatpush.msra.mxu0 0.0
    %3501 = vmatpush.msra.mxu0 0.0
    %3502 = vmatpush.msra.mxu0 0.0
    %3503 = vmatpush.msra.mxu0 0.0
    %3504 = vmatpush.msra.mxu0 %v3481
    %3505 = vmatpush.msra.mxu0 %v3479
    %3506 = vmatmul.f32.gmra.mxu0 %v3485
    %v3507 = vpop.f32.mrf.mxu0
    %v3508 = vadd.f32 0.0, %v3507
    %3509 = vmatmul.f32.gmra.mxu0 %v3488
    %v3510 = vpop.f32.mrf.mxu0
    %v3511 = vadd.f32 0.0, %v3510
    %3512 = vdwg.mxu0
    %3513 = vrot.lane.b32.xlu0 %v384, 104
    %v3514 = vpop.permute.xlu0 %3513
    %3515 = vrot.lane.b32.xlu0 %v387, 104
    %v3516 = vpop.permute.xlu0 %3515
    %v3520 = vsel %vm676, %v3299, 0
    %v3523 = vsel %vm676, %v3300, 0
    %3525 = vmatpush.msra.mxu0 0.0
    %3526 = vmatpush.msra.mxu0 0.0
    %3527 = vmatpush.msra.mxu0 0.0
    %3528 = vmatpush.msra.mxu0 0.0
    %3529 = vmatpush.msra.mxu0 0.0
    %3530 = vmatpush.msra.mxu0 0.0
    %3531 = vmatpush.msra.mxu0 0.0
    %3532 = vmatpush.msra.mxu0 0.0
    %3533 = vmatpush.msra.mxu0 0.0
    %3534 = vmatpush.msra.mxu0 0.0
    %3535 = vmatpush.msra.mxu0 0.0
    %3536 = vmatpush.msra.mxu0 0.0
    %3537 = vmatpush.msra.mxu0 0.0
    %3538 = vmatpush.msra.mxu0 0.0
    %3539 = vmatpush.msra.mxu0 %v3516
    %3540 = vmatpush.msra.mxu0 %v3514
    %3541 = vmatmul.f32.gmra.mxu0 %v3520
    %v3542 = vpop.f32.mrf.mxu0
    %v3543 = vadd.f32 0.0, %v3542
    %3544 = vmatmul.f32.gmra.mxu0 %v3523
    %v3545 = vpop.f32.mrf.mxu0
    %v3546 = vadd.f32 0.0, %v3545
    %3547 = vdwg.mxu0
    %3548 = vrot.lane.b32.xlu0 %v390, 104
    %v3549 = vpop.permute.xlu0 %3548
    %3550 = vrot.lane.b32.xlu0 %v393, 104
    %v3551 = vpop.permute.xlu0 %3550
    %v3555 = vsel %vm676, %v3301, 0
    %v3558 = vsel %vm676, %v3302, 0
    %3560 = vmatpush.msra.mxu0 0.0
    %3561 = vmatpush.msra.mxu0 0.0
    %3562 = vmatpush.msra.mxu0 0.0
    %3563 = vmatpush.msra.mxu0 0.0
    %3564 = vmatpush.msra.mxu0 0.0
    %3565 = vmatpush.msra.mxu0 0.0
    %3566 = vmatpush.msra.mxu0 0.0
    %3567 = vmatpush.msra.mxu0 0.0
    %3568 = vmatpush.msra.mxu0 0.0
    %3569 = vmatpush.msra.mxu0 0.0
    %3570 = vmatpush.msra.mxu0 0.0
    %3571 = vmatpush.msra.mxu0 0.0
    %3572 = vmatpush.msra.mxu0 0.0
    %3573 = vmatpush.msra.mxu0 0.0
    %3574 = vmatpush.msra.mxu0 %v3551
    %3575 = vmatpush.msra.mxu0 %v3549
    %3576 = vmatmul.f32.gmra.mxu0 %v3555
    %v3577 = vpop.f32.mrf.mxu0
    %v3578 = vadd.f32 0.0, %v3577
    %3579 = vmatmul.f32.gmra.mxu0 %v3558
    %v3580 = vpop.f32.mrf.mxu0
    %v3581 = vadd.f32 0.0, %v3580
    %3582 = vdwg.mxu0
    %3599 = vrot.lane.b32.xlu0 %v3333, 24
    %v3600 = vpop.permute.xlu0 %3599
    %3601 = vrot.lane.b32.xlu0 %v3336, 24
    %v3602 = vpop.permute.xlu0 %3601
    %3603 = vrot.lane.b32.xlu0 %v3368, 24
    %v3604 = vpop.permute.xlu0 %3603
    %3605 = vrot.lane.b32.xlu0 %v3371, 24
    %v3606 = vpop.permute.xlu0 %3605
    %3607 = vrot.lane.b32.xlu0 %v3403, 24
    %v3608 = vpop.permute.xlu0 %3607
    %3609 = vrot.lane.b32.xlu0 %v3406, 24
    %v3610 = vpop.permute.xlu0 %3609
    %3611 = vrot.lane.b32.xlu0 %v3438, 24
    %v3612 = vpop.permute.xlu0 %3611
    %3613 = vrot.lane.b32.xlu0 %v3441, 24
    %v3614 = vpop.permute.xlu0 %3613
    %3615 = vrot.lane.b32.xlu0 %v3473, 24
    %v3616 = vpop.permute.xlu0 %3615
    %3617 = vrot.lane.b32.xlu0 %v3476, 24
    %v3618 = vpop.permute.xlu0 %3617
    %3619 = vrot.lane.b32.xlu0 %v3508, 24
    %v3620 = vpop.permute.xlu0 %3619
    %3621 = vrot.lane.b32.xlu0 %v3511, 24
    %v3622 = vpop.permute.xlu0 %3621
    %3623 = vrot.lane.b32.xlu0 %v3543, 24
    %v3624 = vpop.permute.xlu0 %3623
    %3625 = vrot.lane.b32.xlu0 %v3546, 24
    %v3626 = vpop.permute.xlu0 %3625
    %3627 = vrot.lane.b32.xlu0 %v3578, 24
    %v3628 = vpop.permute.xlu0 %3627
    %3629 = vrot.lane.b32.xlu0 %v3581, 24
    %v3630 = vpop.permute.xlu0 %3629
    %vm3647 = vcmask 261312
    %3648 = vst.msk [vmem:[#allocation2] sm:$0xff] %vm3647, %v3600
    %3649 = vst.msk [vmem:[#allocation2 + $0x8] sm:$0xff] %vm3647, %v3602
    %3650 = vst.msk [vmem:[#allocation2 + $0x10] sm:$0xff] %vm3647, %v3604
    %3651 = vst.msk [vmem:[#allocation2 + $0x18] sm:$0xff] %vm3647, %v3606
    %3652 = vst.msk [vmem:[#allocation2 + $0x20] sm:$0xff] %vm3647, %v3608
    %3653 = vst.msk [vmem:[#allocation2 + $0x28] sm:$0xff] %vm3647, %v3610
    %3654 = vst.msk [vmem:[#allocation2 + $0x30] sm:$0xff] %vm3647, %v3612
    %3655 = vst.msk [vmem:[#allocation2 + $0x38] sm:$0xff] %vm3647, %v3614
    %3656 = vst.msk [vmem:[#allocation2 + $0x40] sm:$0xff] %vm3647, %v3616
    %3657 = vst.msk [vmem:[#allocation2 + $0x48] sm:$0xff] %vm3647, %v3618
    %3658 = vst.msk [vmem:[#allocation2 + $0x50] sm:$0xff] %vm3647, %v3620
    %3659 = vst.msk [vmem:[#allocation2 + $0x58] sm:$0xff] %vm3647, %v3622
    %3660 = vst.msk [vmem:[#allocation2 + $0x60] sm:$0xff] %vm3647, %v3624
    %3661 = vst.msk [vmem:[#allocation2 + $0x68] sm:$0xff] %vm3647, %v3626
    %3662 = vst.msk [vmem:[#allocation2 + $0x70] sm:$0xff] %vm3647, %v3628
    %3663 = vst.msk [vmem:[#allocation2 + $0x78] sm:$0xff] %vm3647, %v3630
    %v3664 = vld [vmem:[#allocation2] sm:$0xff]
    %v3665 = vld [vmem:[#allocation2 + $0x8] sm:$0xff]
    %v3666 = vld [vmem:[#allocation2 + $0x10] sm:$0xff]
    %v3667 = vld [vmem:[#allocation2 + $0x18] sm:$0xff]
    %v3668 = vld [vmem:[#allocation2 + $0x20] sm:$0xff]
    %v3669 = vld [vmem:[#allocation2 + $0x28] sm:$0xff]
    %v3670 = vld [vmem:[#allocation2 + $0x30] sm:$0xff]
    %v3671 = vld [vmem:[#allocation2 + $0x38] sm:$0xff]
    %v3672 = vld [vmem:[#allocation2 + $0x40] sm:$0xff]
    %v3673 = vld [vmem:[#allocation2 + $0x48] sm:$0xff]
    %v3674 = vld [vmem:[#allocation2 + $0x50] sm:$0xff]
    %v3675 = vld [vmem:[#allocation2 + $0x58] sm:$0xff]
    %v3676 = vld [vmem:[#allocation2 + $0x60] sm:$0xff]
    %v3677 = vld [vmem:[#allocation2 + $0x68] sm:$0xff]
    %v3678 = vld [vmem:[#allocation2 + $0x70] sm:$0xff]
    %v3679 = vld [vmem:[#allocation2 + $0x78] sm:$0xff]
    %v3680 = vld [vmem:[#allocation11] sm:$0xff]
    %v3681 = vld [vmem:[#allocation11 + $0x8] sm:$0xff]
    %v3682 = vld [vmem:[#allocation11 + $0x10] sm:$0xff]
    %v3683 = vld [vmem:[#allocation11 + $0x18] sm:$0xff]
    %v3684 = vld [vmem:[%s8] sm:$0x1]
    %v3686 = vperm.slane %v3684, 0
    %v3689 = vsel %vm135, %v3664, 0
    %v3692 = vsel %vm135, %v3665, 0
    %v3695 = vsel %vm135, %v3666, 0
    %v3698 = vsel %vm135, %v3667, 0
    %v3701 = vsel %vm135, %v3668, 0
    %v3704 = vsel %vm135, %v3669, 0
    %v3707 = vsel %vm135, %v3670, 0
    %v3710 = vsel %vm135, %v3671, 0
    %v3713 = vsel %vm135, %v3672, 0
    %v3716 = vsel %vm135, %v3673, 0
    %v3719 = vsel %vm135, %v3674, 0
    %v3722 = vsel %vm135, %v3675, 0
    %v3725 = vsel %vm135, %v3676, 0
    %v3728 = vsel %vm135, %v3677, 0
    %v3731 = vsel %vm135, %v3678, 0
    %v3734 = vsel %vm135, %v3679, 0
    %3736 = vmatpush.msra.mxu0 0.0
    %3737 = vmatpush.msra.mxu0 0.0
    %3738 = vmatpush.msra.mxu0 0.0
    %3739 = vmatpush.msra.mxu0 0.0
    %3740 = vmatpush.msra.mxu0 0.0
    %3741 = vmatpush.msra.mxu0 0.0
    %3742 = vmatpush.msra.mxu0 0.0
    %3743 = vmatpush.msra.mxu0 0.0
    %3744 = vmatpush.msra.mxu0 0.0
    %3745 = vmatpush.msra.mxu0 0.0
    %3746 = vmatpush.msra.mxu0 0.0
    %3747 = vmatpush.msra.mxu0 0.0
    %3748 = vmatpush.msra.mxu0 %v3683
    %3749 = vmatpush.msra.mxu0 %v3682
    %3750 = vmatpush.msra.mxu0 %v3681
    %3751 = vmatpush.msra.mxu0 %v3680
    %3752 = vmatmul.f32.gmra.mxu0 %v3689
    %v3753 = vpop.f32.mrf.mxu0
    %v3754 = vadd.f32 %v3686, %v3753
    %3755 = vmatmul.f32.gmra.mxu0 %v3692
    %v3756 = vpop.f32.mrf.mxu0
    %v3757 = vadd.f32 %v3686, %v3756
    %3758 = vmatmul.f32.gmra.mxu0 %v3695
    %v3759 = vpop.f32.mrf.mxu0
    %v3760 = vadd.f32 %v3686, %v3759
    %3761 = vmatmul.f32.gmra.mxu0 %v3698
    %v3762 = vpop.f32.mrf.mxu0
    %v3763 = vadd.f32 %v3686, %v3762
    %3764 = vmatmul.f32.gmra.mxu0 %v3701
    %v3765 = vpop.f32.mrf.mxu0
    %v3766 = vadd.f32 %v3686, %v3765
    %3767 = vmatmul.f32.gmra.mxu0 %v3704
    %v3768 = vpop.f32.mrf.mxu0
    %v3769 = vadd.f32 %v3686, %v3768
    %3770 = vmatmul.f32.gmra.mxu0 %v3707
    %v3771 = vpop.f32.mrf.mxu0
    %v3772 = vadd.f32 %v3686, %v3771
    %3773 = vmatmul.f32.gmra.mxu0 %v3710
    %v3774 = vpop.f32.mrf.mxu0
    %v3775 = vadd.f32 %v3686, %v3774
    %3776 = vmatmul.f32.gmra.mxu0 %v3713
    %v3777 = vpop.f32.mrf.mxu0
    %v3778 = vadd.f32 %v3686, %v3777
    %3779 = vmatmul.f32.gmra.mxu0 %v3716
    %v3780 = vpop.f32.mrf.mxu0
    %v3781 = vadd.f32 %v3686, %v3780
    %3782 = vmatmul.f32.gmra.mxu0 %v3719
    %v3783 = vpop.f32.mrf.mxu0
    %v3784 = vadd.f32 %v3686, %v3783
    %3785 = vmatmul.f32.gmra.mxu0 %v3722
    %v3786 = vpop.f32.mrf.mxu0
    %v3787 = vadd.f32 %v3686, %v3786
    %3788 = vmatmul.f32.gmra.mxu0 %v3725
    %v3789 = vpop.f32.mrf.mxu0
    %v3790 = vadd.f32 %v3686, %v3789
    %3791 = vmatmul.f32.gmra.mxu0 %v3728
    %v3792 = vpop.f32.mrf.mxu0
    %v3793 = vadd.f32 %v3686, %v3792
    %3794 = vmatmul.f32.gmra.mxu0 %v3731
    %v3795 = vpop.f32.mrf.mxu0
    %v3796 = vadd.f32 %v3686, %v3795
    %3797 = vmatmul.f32.gmra.mxu0 %v3734
    %v3798 = vpop.f32.mrf.mxu0
    %v3799 = vadd.f32 %v3686, %v3798
    %3800 = vdwg.mxu0
    %3801 = vst.msk [vmem:[#allocation12] sm:$0xff] %vm135, %v3754
    %3802 = vst.msk [vmem:[#allocation12 + $0x8] sm:$0xff] %vm135, %v3757
    %3803 = vst.msk [vmem:[#allocation12 + $0x10] sm:$0xff] %vm135, %v3760
    %3804 = vst.msk [vmem:[#allocation12 + $0x18] sm:$0xff] %vm135, %v3763
    %3805 = vst.msk [vmem:[#allocation12 + $0x20] sm:$0xff] %vm135, %v3766
    %3806 = vst.msk [vmem:[#allocation12 + $0x28] sm:$0xff] %vm135, %v3769
    %3807 = vst.msk [vmem:[#allocation12 + $0x30] sm:$0xff] %vm135, %v3772
    %3808 = vst.msk [vmem:[#allocation12 + $0x38] sm:$0xff] %vm135, %v3775
    %3809 = vst.msk [vmem:[#allocation12 + $0x40] sm:$0xff] %vm135, %v3778
    %3810 = vst.msk [vmem:[#allocation12 + $0x48] sm:$0xff] %vm135, %v3781
    %3811 = vst.msk [vmem:[#allocation12 + $0x50] sm:$0xff] %vm135, %v3784
    %3812 = vst.msk [vmem:[#allocation12 + $0x58] sm:$0xff] %vm135, %v3787
    %3813 = vst.msk [vmem:[#allocation12 + $0x60] sm:$0xff] %vm135, %v3790
    %3814 = vst.msk [vmem:[#allocation12 + $0x68] sm:$0xff] %vm135, %v3793
    %3815 = vst.msk [vmem:[#allocation12 + $0x70] sm:$0xff] %vm135, %v3796
    %3816 = vst.msk [vmem:[#allocation12 + $0x78] sm:$0xff] %vm135, %v3799
    // Predicated region
    $region58: #{tpu_custom_call.1} parent=1 // pred_check
      _
    $region59: #{tpu_custom_call.1} parent=1 // pred_check_branch
      %3818 = sbr.rel (0) target = $region61
    $region60: #{tpu_custom_call.1} parent=1 // pred_region
      %3820 = vsyncadd [#allocation5], 0
      %s3821 = sshll.u32 [#allocation12], 4
      %s3822 = int_to_ptr.vmem [resolvable:$true] %s3821
      %s3823 = sshll.u32 %s9, 4
      %s3824 = int_to_ptr.hbm [resolvable:$true] %s3823
      %3829 = dma.vmem_to_hbm [thread:$0]  %s3822, 2048, %s3824, [#allocation5], 128, 128, 8
    $region61: #{tpu_custom_call.1} parent=1 // pred_fallthru
      _
    // Predicated region
    $region62: #{tpu_custom_call.1} parent=1 // pred_check
      _
    $region63: #{tpu_custom_call.1} parent=1 // pred_check_branch
      %3831 = sbr.rel (0) target = $region65
    $region64: #{tpu_custom_call.1} parent=1 // pred_region
      %3833 = dma.done [#allocation5], 2048
    $region65: #{tpu_custom_call.1} parent=1 // pred_fallthru
      _
    %3834 = vsyncpa [#allocation4], 1
    %3835 = vsyncpa [#allocation7], 1
    %3836 = vsyncpa [#allocation10], 1
    %3837 = vsyncpa [#allocation5], 1

</llo_original>
